<compile_context>
chip_gen: v7x
topology: tpu7x:2x2x1
jax: 0.10.0
libtpu: 0.0.40
codegen_flags: <defaults>
</compile_context>

<pallas_src>
import functools
import math

import jax
import jax.numpy as jnp
from jax import lax
from jax.experimental import pallas as pl
from jax.experimental.pallas import tpu as pltpu

LANE = 128
EPS = 1e-5


def _round_up(x, m):
    return (x + m - 1) // m * m


# ---------------------------------------------------------------------------
# Pallas kernels
# ---------------------------------------------------------------------------
def _matmul_kernel_act(x_ref, s_ref, t_ref, w_ref, b_ref, o_ref, acc_ref):
    """out = relu(x*scale + shift) @ w + b   (scale/shift fold a BatchNorm)."""
    @pl.when(pl.program_id(2) == 0)
    def _():
        acc_ref[...] = jnp.zeros_like(acc_ref)

    x = jnp.maximum(x_ref[...].astype(jnp.float32) * s_ref[...] + t_ref[...], 0.0)
    acc_ref[...] += jnp.dot(x.astype(w_ref.dtype), w_ref[...],
                            preferred_element_type=jnp.float32)

    @pl.when(pl.program_id(2) == pl.num_programs(2) - 1)
    def _():
        o_ref[...] = (acc_ref[...] + b_ref[...]).astype(o_ref.dtype)


def _matmul_kernel_plain(x_ref, w_ref, b_ref, o_ref, acc_ref):
    """out = x @ w + b."""
    @pl.when(pl.program_id(2) == 0)
    def _():
        acc_ref[...] = jnp.zeros_like(acc_ref)

    acc_ref[...] += jnp.dot(x_ref[...], w_ref[...],
                            preferred_element_type=jnp.float32)

    @pl.when(pl.program_id(2) == pl.num_programs(2) - 1)
    def _():
        o_ref[...] = (acc_ref[...] + b_ref[...]).astype(o_ref.dtype)


def _bn_relu_kernel(x_ref, s_ref, t_ref, o_ref):
    """out = relu(x*scale + shift), lane-dense, row-tiled."""
    y = jnp.maximum(x_ref[...].astype(jnp.float32) * s_ref[...] + t_ref[...], 0.0)
    o_ref[...] = y.astype(o_ref.dtype)


# ---------------------------------------------------------------------------
# Tile selection + cached pallas_call builders
# ---------------------------------------------------------------------------
def _pick_m_tile(m):
    """Row padding + row tile. <=128 rows: single full-dim block (bf16-friendly
    multiple of 32); otherwise 128/256-row tiles (>=2 blocks helps megacore)."""
    mp = _round_up(max(m, 1), 32)
    if mp <= 128:
        return mp, mp
    mp = _round_up(mp, 128)
    return mp, (256 if mp % 256 == 0 else 128)


@functools.lru_cache(maxsize=None)
def _build_matmul(Mp, Kp, Np, TM, TK, TN, apply_act, out_dtype):
    grid = (Mp // TM, Np // TN, Kp // TK)
    if apply_act:
        kernel = _matmul_kernel_act
        in_specs = [
            pl.BlockSpec((TM, TK), lambda i, j, kk: (i, kk)),
            pl.BlockSpec((1, TK), lambda i, j, kk: (0, kk)),
            pl.BlockSpec((1, TK), lambda i, j, kk: (0, kk)),
            pl.BlockSpec((TK, TN), lambda i, j, kk: (kk, j)),
            pl.BlockSpec((1, TN), lambda i, j, kk: (0, j)),
        ]
    else:
        kernel = _matmul_kernel_plain
        in_specs = [
            pl.BlockSpec((TM, TK), lambda i, j, kk: (i, kk)),
            pl.BlockSpec((TK, TN), lambda i, j, kk: (kk, j)),
            pl.BlockSpec((1, TN), lambda i, j, kk: (0, j)),
        ]
    return pl.pallas_call(
        kernel,
        out_shape=jax.ShapeDtypeStruct((Mp, Np), out_dtype),
        grid_spec=pltpu.PrefetchScalarGridSpec(
            num_scalar_prefetch=0,
            grid=grid,
            in_specs=in_specs,
            out_specs=pl.BlockSpec((TM, TN), lambda i, j, kk: (i, j)),
            scratch_shapes=[pltpu.VMEM((TM, TN), jnp.float32)],
        ),
        compiler_params=pltpu.CompilerParams(
            dimension_semantics=("parallel", "parallel", "arbitrary")),
    )


@functools.lru_cache(maxsize=None)
def _build_bn_relu(Mp, Cp, TM, out_dtype):
    return pl.pallas_call(
        _bn_relu_kernel,
        out_shape=jax.ShapeDtypeStruct((Mp, Cp), out_dtype),
        grid_spec=pltpu.PrefetchScalarGridSpec(
            num_scalar_prefetch=0,
            grid=(Mp // TM,),
            in_specs=[pl.BlockSpec((TM, Cp), lambda i: (i, 0)),
                      pl.BlockSpec((1, Cp), lambda i: (0, 0)),
                      pl.BlockSpec((1, Cp), lambda i: (0, 0))],
            out_specs=pl.BlockSpec((TM, Cp), lambda i: (i, 0)),
        ),
        compiler_params=pltpu.CompilerParams(dimension_semantics=("parallel",)),
    )


# ---------------------------------------------------------------------------
# Pallas-backed ops (weights are pre-padded; only activations get padded here)
# ---------------------------------------------------------------------------
def pallas_matmul(x, w, b, scale=None, shift=None, out_dtype=jnp.float32):
    """x:(M,K) @ w:(Kp,Np) + b with optional fused relu(x*scale+shift).

    w, b (and scale/shift in the usual case) are pre-padded lane-dense; x is
    padded to (Mp, Kp) with zeros and padded rows are sliced off the result.
    """
    M, K = x.shape
    Kp, Np = w.shape
    Mp, TM = _pick_m_tile(M)
    TK = 256 if Kp % 256 == 0 else 128
    TN = 256 if Np % 256 == 0 else 128

    xp = x.astype(jnp.bfloat16)
    if Mp != M or Kp != K:
        xp = jnp.pad(xp, ((0, Mp - M), (0, Kp - K)))
    bp = b.astype(jnp.float32).reshape(1, Np)

    apply_act = scale is not None
    fn = _build_matmul(Mp, Kp, Np, TM, TK, TN, apply_act, out_dtype)
    if apply_act:
        sp = scale.astype(jnp.float32)
        tp = shift.astype(jnp.float32)
        if sp.shape[0] != Kp:
            sp = jnp.pad(sp, (0, Kp - sp.shape[0]))
            tp = jnp.pad(tp, (0, Kp - tp.shape[0]))
        out = fn(xp, sp.reshape(1, Kp), tp.reshape(1, Kp), w, bp)
    else:
        out = fn(xp, w, bp)
    return out[:M] if Mp != M else out


def pallas_bn_relu(x2d, scale, shift, out_dtype=jnp.float32):
    M, C = x2d.shape
    Cp = _round_up(C, LANE)
    Mp, TM = _pick_m_tile(M)
    xp = x2d
    if Mp != M or Cp != C:
        xp = jnp.pad(xp, ((0, Mp - M), (0, Cp - C)))
        scale = jnp.pad(scale, (0, Cp - C))
        shift = jnp.pad(shift, (0, Cp - C))
    fn = _build_bn_relu(Mp, Cp, TM, out_dtype)
    out = fn(xp,
             scale.astype(jnp.float32).reshape(1, Cp),
             shift.astype(jnp.float32).reshape(1, Cp))
    if Mp != M or Cp != C:
        out = out[:M, :C]
    return out


# ---------------------------------------------------------------------------
# JAX glue
# ---------------------------------------------------------------------------
def _bn_fold(x2d, gamma, beta):
    """Training-mode BatchNorm2d fold: batch statistics, biased variance."""
    xf = x2d.astype(jnp.float32)
    mean = jnp.mean(xf, axis=0)
    var = jnp.maximum(jnp.mean(xf * xf, axis=0) - mean * mean, 0.0)
    scale = gamma * lax.rsqrt(var + EPS)
    shift = beta - mean * scale
    return scale, shift


def _fold_from_sums(csum, csumsq, m_rows, gamma, beta):
    """BN fold from maintained per-channel sum / sum-of-squares (f32)."""
    inv_m = 1.0 / float(m_rows)
    mean = csum * inv_m
    var = jnp.maximum(csumsq * inv_m - mean * mean, 0.0)
    scale = gamma * lax.rsqrt(var + EPS)
    shift = beta - mean * scale
    return scale, shift


def _channel_sums(x2d_f32):
    return jnp.sum(x2d_f32, axis=0), jnp.sum(x2d_f32 * x2d_f32, axis=0)


def _im2col(x, kh, kw, stride, pad):
    # x: (N, H, W, C) -> (N*Ho*Wo, kh*kw*C), column ordering (ki, kj, c)
    N, H, W, C = x.shape
    xp = jnp.pad(x, ((0, 0), (pad, pad), (pad, pad), (0, 0)))
    Ho = (H + 2 * pad - kh) // stride + 1
    Wo = (W + 2 * pad - kw) // stride + 1
    cols = []
    for i in range(kh):
        for j in range(kw):
            cols.append(xp[:, i:i + stride * Ho:stride, j:j + stride * Wo:stride, :])
    cols = jnp.concatenate(cols, axis=-1)
    return cols.reshape(N * Ho * Wo, kh * kw * C), Ho, Wo


# ---------------------------------------------------------------------------
# DenseNet forward (jit this whole function)
# ---------------------------------------------------------------------------
def densenet_forward(arch, params, x_nchw):
    growth = arch['k']
    out1 = arch['bottleneck'] * growth

    x = jnp.transpose(x_nchw, (0, 2, 3, 1)).astype(jnp.bfloat16)   # NCHW -> NHWC
    N = x.shape[0]

    # ---- Stem: Conv7x7/s2/p3 -> BN -> ReLU -> MaxPool3x3/s2/p1 --------------
    cols, Ho, Wo = _im2col(x, 7, 7, 2, 3)
    y = pallas_matmul(cols, params['stem_w'], params['stem_b'],
                      out_dtype=jnp.float32)                        # (M, Cs)
    Cs = params['stem_w'].shape[1]
    s, t = _bn_fold(y, params['stem_g'], params['stem_be'])
    y = pallas_bn_relu(y, s, t, out_dtype=jnp.float32).reshape(N, Ho, Wo, Cs)
    y = lax.reduce_window(y, -jnp.inf, lax.max, (1, 3, 3, 1), (1, 2, 2, 1),
                          [(0, 0), (1, 1), (1, 1), (0, 0)])
    y = y.astype(jnp.bfloat16)

    # ---- Dense blocks (+ transitions) ----------------------------------------
    ch = arch['channels']
    csum = csumsq = None
    M = 1
    for nt, bp in zip(arch['block'], params['blocks']):
        Nb, Hb, Wb, Cy = y.shape
        M = Nb * Hb * Wb
        ch_final = ch + nt * growth
        Cp = _round_up(ch_final, LANE)
        # One lane-dense feature buffer per block (replaces O(L^2) concat).
        buf = jnp.pad(y, ((0, 0), (0, 0), (0, 0), (0, Cp - Cy)))

        # Incremental per-channel statistics for this block's buffer: existing
        # channels never change, so sums only get updated with the k new
        # channels each layer writes (avoids re-reading the whole buffer).
        y0f = y.reshape(M, Cy).astype(jnp.float32)
        s0, q0 = _channel_sums(y0f)
        csum = jnp.pad(s0, (0, Cp - Cy))
        csumsq = jnp.pad(q0, (0, Cp - Cy))

        for i, lp in enumerate(bp['layers']):
            cin = ch + i * growth
            x2d = buf.reshape(M, Cp)
            # BN1 folded into the 1x1 conv: relu(x*s+t) @ w1 + b1 on the MXU.
            s1, t1 = _fold_from_sums(csum, csumsq, M, lp['g1'], lp['be1'])
            y1 = pallas_matmul(x2d, lp['w1'], lp['b1'], scale=s1, shift=t1,
                               out_dtype=jnp.float32)               # (M, OUT1P)
            # BN2+ReLU (lane-dense Pallas kernel) must precede the 3x3 conv's
            # spatial zero padding, so it runs as its own pass; then im2col of
            # the tiny bottleneck tensor + MXU matmul.
            s2, t2 = _bn_fold(y1, lp['g2'], lp['be2'])
            y1a = pallas_bn_relu(y1, s2, t2, out_dtype=jnp.bfloat16)
            y1a = y1a.reshape(Nb, Hb, Wb, -1)[..., :out1]
            cols, _, _ = _im2col(y1a, 3, 3, 1, 1)
            ynew2d = pallas_matmul(cols, lp['w2'], lp['b2'],
                                   out_dtype=jnp.bfloat16)[:, :growth]
            # Update running stats with the new channels (as stored in bf16).
            ynf = ynew2d.astype(jnp.float32)
            ns, nq = _channel_sums(ynf)
            csum = csum.at[cin:cin + growth].set(ns)
            csumsq = csumsq.at[cin:cin + growth].set(nq)
            # TODO(synk): Dropout(p=0.0) is identity; nonzero dropout is not implemented.
            buf = buf.at[..., cin:cin + growth].set(
                ynew2d.reshape(Nb, Hb, Wb, growth))
        ch = ch_final
        y = buf

        # ---- Transition: BN -> ReLU -> Conv1x1 (fused) -> AvgPool2d(2,2) -----
        if bp['trans'] is not None:
            tpz = bp['trans']
            x2d = y.reshape(M, Cp)
            s, t = _fold_from_sums(csum, csumsq, M, tpz['g'], tpz['be'])
            z = pallas_matmul(x2d, tpz['w'], tpz['b'], scale=s, shift=t,
                              out_dtype=jnp.bfloat16)               # (M, COUTP)
            Ct = tpz['w'].shape[1]
            z = z.reshape(Nb, Hb, Wb, Ct)[:, :Hb // 2 * 2, :Wb // 2 * 2, :]
            z = z.reshape(Nb, Hb // 2, 2, Wb // 2, 2, Ct).astype(jnp.float32)
            y = z.mean(axis=(2, 4)).astype(jnp.bfloat16)            # avg-pool 2x2/s2
            ch = ch // 2

    # ---- Final BN -> ReLU -> AdaptiveAvgPool2d((1,1)) -> Flatten -> Linear ----
    Nb, Hf, Wf, Cf = y.shape
    x2d = y.reshape(Nb * Hf * Wf, Cf)
    s, t = _fold_from_sums(csum, csumsq, M, params['final_g'], params['final_be'])
    ya = pallas_bn_relu(x2d, s, t, out_dtype=jnp.float32).reshape(Nb, Hf, Wf, Cf)
    pooled = jnp.mean(ya, axis=(1, 2))                              # (Nb, Cf)
    logits = pallas_matmul(pooled, params['fc_w'], params['fc_b'],
                           out_dtype=jnp.float32)
    return logits[:, :arch['num_classes']]


# ---------------------------------------------------------------------------
# Deterministic parameter init (mirrors module __init__ / _init_layers),
# with weights pre-padded lane-dense and pre-cast to bf16 once.
# ---------------------------------------------------------------------------
def _conv_w(key, cin, cout, kh, kw):
    fan_in = cin * kh * kw
    k1, k2 = jax.random.split(key)
    # kaiming_normal_ (fan_in, gain sqrt(2)); weight stored as (kh*kw*cin, cout)
    w = jax.random.normal(k1, (kh, kw, cin, cout), jnp.float32) * math.sqrt(2.0 / fan_in)
    bound = 1.0 / math.sqrt(fan_in)
    b = jax.random.uniform(k2, (cout,), jnp.float32, -bound, bound)
    return w.reshape(kh * kw * cin, cout), b


def _pad2(a, rows, cols):
    return jnp.pad(a, ((0, rows - a.shape[0]), (0, cols - a.shape[1])))


def _pad1(a, n):
    return jnp.pad(a, (0, n - a.shape[0]))


def init_densenet(key, num_layers=121, num_classes=10, channels=8, k=4,
                  bottleneck_size=2):
    block_config = {121: (6, 12, 24, 16), 169: (6, 12, 32, 32),
                    201: (6, 12, 48, 32), 264: (6, 12, 64, 48)}
    block = block_config[num_layers]
    keys = iter(jax.random.split(key, 4 * sum(block) + 16))

    arch = dict(block=block, channels=channels, k=k, bottleneck=bottleneck_size,
                num_classes=num_classes)
    params = {}

    out1 = bottleneck_size * k
    OUT1P = _round_up(out1, LANE)
    KOUTP = _round_up(k, LANE)
    K2P = _round_up(9 * out1, LANE)

    # Stem conv 7x7
    Cs = _round_up(channels, LANE)
    w, b = _conv_w(next(keys), 3, channels, 7, 7)
    params['stem_w'] = _pad2(w, _round_up(49 * 3, LANE), Cs).astype(jnp.bfloat16)
    params['stem_b'] = _pad1(b, Cs)
    params['stem_g'] = _pad1(jnp.ones((channels,), jnp.float32), Cs)
    params['stem_be'] = jnp.zeros((Cs,), jnp.float32)

    ch = channels
    Cp = Cs
    blocks = []
    for bi, nt in enumerate(block):
        ch_final = ch + nt * k
        Cp = _round_up(ch_final, LANE)
        layers = []
        for i in range(nt):
            cin = ch + i * k
            w1, b1 = _conv_w(next(keys), cin, out1, 1, 1)
            w2, b2 = _conv_w(next(keys), out1, k, 3, 3)
            layers.append(dict(
                g1=_pad1(jnp.ones((cin,), jnp.float32), Cp),
                be1=jnp.zeros((Cp,), jnp.float32),
                w1=_pad2(w1, Cp, OUT1P).astype(jnp.bfloat16),
                b1=_pad1(b1, OUT1P),
                g2=_pad1(jnp.ones((out1,), jnp.float32), OUT1P),
                be2=jnp.zeros((OUT1P,), jnp.float32),
                w2=_pad2(w2, K2P, KOUTP).astype(jnp.bfloat16),
                b2=_pad1(b2, KOUTP)))
        ch = ch_final
        trans = None
        if bi != len(block) - 1:
            cout = ch // 2
            COUTP = _round_up(cout, LANE)
            wt, bt = _conv_w(next(keys), ch, cout, 1, 1)
            trans = dict(g=_pad1(jnp.ones((ch,), jnp.float32), Cp),
                         be=jnp.zeros((Cp,), jnp.float32),
                         w=_pad2(wt, Cp, COUTP).astype(jnp.bfloat16),
                         b=_pad1(bt, COUTP))
            ch = cout
        blocks.append(dict(layers=layers, trans=trans))
    params['blocks'] = blocks

    # Final BN + classifier (Linear bias = 0 per _init_layers).
    NCP = _round_up(num_classes, LANE)
    params['final_g'] = _pad1(jnp.ones((ch,), jnp.float32), Cp)
    params['final_be'] = jnp.zeros((Cp,), jnp.float32)
    fcw = jax.random.normal(next(keys), (ch, num_classes), jnp.float32) / math.sqrt(ch)
    params['fc_w'] = _pad2(fcw, Cp, NCP).astype(jnp.bfloat16)
    params['fc_b'] = jnp.zeros((NCP,), jnp.float32)
    return arch, params


if __name__ == "__main__":
    key = jax.random.PRNGKey(0)
    pkey, xkey = jax.random.split(key)
    # Small but architecture-consistent config: num_layers=121 -> blocks (6,12,24,16)
    arch, params = init_densenet(pkey, num_layers=121, num_classes=10,
                                 channels=8, k=4, bottleneck_size=2)
    x = jax.random.normal(xkey, (2, 3, 32, 32), jnp.float32)   # NCHW, like PyTorch
    fwd = jax.jit(functools.partial(densenet_forward, arch))
    out = jax.block_until_ready(fwd(params, x))
    assert out.shape == (2, 10) and out.dtype == jnp.float32
    print("KERNEL_OK")
</pallas_src>

<mosaic_0001>
module attributes {stable_mosaic.version = 11 : i64} {
  func.func @_matmul_kernel_plain(%arg0: i32, %arg1: i32, %arg2: i32, %arg3: memref<256x256xbf16, #tpu.memory_space<vmem>>, %arg4: memref<256x128xbf16, #tpu.memory_space<vmem>>, %arg5: memref<1x128xf32, #tpu.memory_space<vmem>>, %arg6: memref<256x128xf32, #tpu.memory_space<vmem>>, %arg7: memref<256x128xf32, #tpu.memory_space<vmem>>) attributes {dimension_semantics = [#tpu.dimension_semantics<parallel>, #tpu.dimension_semantics<parallel>, #tpu.dimension_semantics<arbitrary>], iteration_bounds = array<i64: 2, 1, 1>, scalar_prefetch = 0 : i64, scratch_operands = 1 : i64, tpu.core_type = #tpu.core_type<tc>, window_params = [{transform_indices = @transform_0, window_bounds = array<i64: 256, 256>}, {transform_indices = @transform_1, window_bounds = array<i64: 256, 128>}, {transform_indices = @transform_2, window_bounds = array<i64: 1, 128>}, {transform_indices = @transform_3, window_bounds = array<i64: 256, 128>}]} {
    %c0_i32 = arith.constant 0 : i32
    %0 = arith.cmpi eq, %arg2, %c0_i32 : i32
    %1 = arith.extui %0 : i1 to i32
    %c0_i32_0 = arith.constant 0 : i32
    %2 = arith.cmpi ne, %1, %c0_i32_0 : i32
    scf.if %2 {
      %cst_10 = arith.constant 0.000000e+00 : f32
      %12 = vector.broadcast %cst_10 : f32 to vector<256x128xf32>
      %c0_11 = arith.constant 0 : index
      %c0_12 = arith.constant 0 : index
      %13 = vector.load %arg7[%c0_11, %c0_12] : memref<256x128xf32, #tpu.memory_space<vmem>>, vector<256x128xf32>
      tpu.vector_store %arg7[%c0_11, %c0_12], %12 {strides = array<i32>} : memref<256x128xf32, #tpu.memory_space<vmem>>, vector<256x128xf32>,
    } else {
    }
    %c0 = arith.constant 0 : index
    %c0_1 = arith.constant 0 : index
    %3 = vector.load %arg7[%c0, %c0_1] : memref<256x128xf32, #tpu.memory_space<vmem>>, vector<256x128xf32>
    %c0_2 = arith.constant 0 : index
    %c0_3 = arith.constant 0 : index
    %4 = vector.load %arg3[%c0_2, %c0_3] : memref<256x256xbf16, #tpu.memory_space<vmem>>, vector<256x256xbf16>
    %c0_4 = arith.constant 0 : index
    %c0_5 = arith.constant 0 : index
    %5 = vector.load %arg4[%c0_4, %c0_5] : memref<256x128xbf16, #tpu.memory_space<vmem>>, vector<256x128xbf16>
    %cst = arith.constant dense<0.000000e+00> : vector<256x128xf32>
    %6 = tpu.matmul %4, %5, %cst {dimension_numbers = #tpu.dot_dimension_numbers<[1], [0], [0], [1], [0, 0, 1, 1], [], []>} : vector<256x256xbf16>, vector<256x128xbf16>, vector<256x128xf32> -> vector<256x128xf32>
    %7 = arith.addf %3, %6 : vector<256x128xf32>
    %c0_6 = arith.constant 0 : index
    %c0_7 = arith.constant 0 : index
    %8 = vector.load %arg7[%c0_6, %c0_7] : memref<256x128xf32, #tpu.memory_space<vmem>>, vector<256x128xf32>
    tpu.vector_store %arg7[%c0_6, %c0_7], %7 {strides = array<i32>} : memref<256x128xf32, #tpu.memory_space<vmem>>, vector<256x128xf32>,
    %c0_i32_8 = arith.constant 0 : i32
    %9 = arith.cmpi eq, %arg2, %c0_i32_8 : i32
    %10 = arith.extui %9 : i1 to i32
    %c0_i32_9 = arith.constant 0 : i32
    %11 = arith.cmpi ne, %10, %c0_i32_9 : i32
    scf.if %11 {
      %c0_10 = arith.constant 0 : index
      %c0_11 = arith.constant 0 : index
      %12 = vector.load %arg7[%c0_10, %c0_11] : memref<256x128xf32, #tpu.memory_space<vmem>>, vector<256x128xf32>
      %c0_12 = arith.constant 0 : index
      %c0_13 = arith.constant 0 : index
      %13 = vector.load %arg5[%c0_12, %c0_13] : memref<1x128xf32, #tpu.memory_space<vmem>>, vector<1x128xf32>
      %14 = vector.broadcast %13 : vector<1x128xf32> to vector<256x128xf32>
      %15 = arith.addf %12, %14 : vector<256x128xf32>
      %c0_14 = arith.constant 0 : index
      %c0_15 = arith.constant 0 : index
      %16 = vector.load %arg6[%c0_14, %c0_15] : memref<256x128xf32, #tpu.memory_space<vmem>>, vector<256x128xf32>
      tpu.vector_store %arg6[%c0_14, %c0_15], %15 {strides = array<i32>} : memref<256x128xf32, #tpu.memory_space<vmem>>, vector<256x128xf32>,
    } else {
    }
    return
  }
  func.func @transform_0(%arg0: i32, %arg1: i32, %arg2: i32) -> (i32, i32) {
    %c0_i32 = arith.constant 0 : i32
    return %arg0, %arg2 : i32, i32
  }
  func.func @transform_1(%arg0: i32, %arg1: i32, %arg2: i32) -> (i32, i32) {
    %c0_i32 = arith.constant 0 : i32
    return %arg2, %arg1 : i32, i32
  }
  func.func @transform_2(%arg0: i32, %arg1: i32, %arg2: i32) -> (i32, i32) {
    %c0_i32 = arith.constant 0 : i32
    %c0_i32_0 = arith.constant 0 : i32
    return %c0_i32, %arg1 : i32, i32
  }
  func.func @transform_3(%arg0: i32, %arg1: i32, %arg2: i32) -> (i32, i32) {
    %c0_i32 = arith.constant 0 : i32
    return %arg0, %arg1 : i32, i32
  }
}

module attributes {stable_mosaic.version = 11 : i64} {
  func.func @_matmul_kernel_act(%arg0: i32, %arg1: i32, %arg2: i32, %arg3: memref<128x128xbf16, #tpu.memory_space<vmem>>, %arg4: memref<1x128xf32, #tpu.memory_space<vmem>>, %arg5: memref<1x128xf32, #tpu.memory_space<vmem>>, %arg6: memref<128x128xbf16, #tpu.memory_space<vmem>>, %arg7: memref<1x128xf32, #tpu.memory_space<vmem>>, %arg8: memref<128x128xf32, #tpu.memory_space<vmem>>, %arg9: memref<128x128xf32, #tpu.memory_space<vmem>>) attributes {dimension_semantics = [#tpu.dimension_semantics<parallel>, #tpu.dimension_semantics<parallel>, #tpu.dimension_semantics<arbitrary>], iteration_bounds = array<i64: 1, 1, 1>, scalar_prefetch = 0 : i64, scratch_operands = 1 : i64, tpu.core_type = #tpu.core_type<tc>, window_params = [{transform_indices = @transform_0, window_bounds = array<i64: 128, 128>}, {transform_indices = @transform_1, window_bounds = array<i64: 1, 128>}, {transform_indices = @transform_2, window_bounds = array<i64: 1, 128>}, {transform_indices = @transform_3, window_bounds = array<i64: 128, 128>}, {transform_indices = @transform_4, window_bounds = array<i64: 1, 128>}, {transform_indices = @transform_5, window_bounds = array<i64: 128, 128>}]} {
    %c0_i32 = arith.constant 0 : i32
    %0 = arith.cmpi eq, %arg2, %c0_i32 : i32
    %1 = arith.extui %0 : i1 to i32
    %c0_i32_0 = arith.constant 0 : i32
    %2 = arith.cmpi ne, %1, %c0_i32_0 : i32
    scf.if %2 {
      %cst_15 = arith.constant 0.000000e+00 : f32
      %22 = vector.broadcast %cst_15 : f32 to vector<128x128xf32>
      %c0_16 = arith.constant 0 : index
      %c0_17 = arith.constant 0 : index
      %23 = vector.load %arg9[%c0_16, %c0_17] : memref<128x128xf32, #tpu.memory_space<vmem>>, vector<128x128xf32>
      tpu.vector_store %arg9[%c0_16, %c0_17], %22 {strides = array<i32>} : memref<128x128xf32, #tpu.memory_space<vmem>>, vector<128x128xf32>,
    } else {
    }
    %c0 = arith.constant 0 : index
    %c0_1 = arith.constant 0 : index
    %3 = vector.load %arg3[%c0, %c0_1] : memref<128x128xbf16, #tpu.memory_space<vmem>>, vector<128x128xbf16>
    %4 = arith.extf %3 : vector<128x128xbf16> to vector<128x128xf32>
    %c0_2 = arith.constant 0 : index
    %c0_3 = arith.constant 0 : index
    %5 = vector.load %arg4[%c0_2, %c0_3] : memref<1x128xf32, #tpu.memory_space<vmem>>, vector<1x128xf32>
    %6 = vector.broadcast %5 : vector<1x128xf32> to vector<128x128xf32>
    %7 = arith.mulf %4, %6 : vector<128x128xf32>
    %c0_4 = arith.constant 0 : index
    %c0_5 = arith.constant 0 : index
    %8 = vector.load %arg5[%c0_4, %c0_5] : memref<1x128xf32, #tpu.memory_space<vmem>>, vector<1x128xf32>
    %9 = vector.broadcast %8 : vector<1x128xf32> to vector<128x128xf32>
    %10 = arith.addf %7, %9 : vector<128x128xf32>
    %cst = arith.constant 0.000000e+00 : f32
    %11 = vector.broadcast %cst : f32 to vector<128x128xf32>
    %12 = arith.maximumf %10, %11 : vector<128x128xf32>
    %c0_6 = arith.constant 0 : index
    %c0_7 = arith.constant 0 : index
    %13 = vector.load %arg9[%c0_6, %c0_7] : memref<128x128xf32, #tpu.memory_space<vmem>>, vector<128x128xf32>
    %14 = arith.truncf %12 : vector<128x128xf32> to vector<128x128xbf16>
    %c0_8 = arith.constant 0 : index
    %c0_9 = arith.constant 0 : index
    %15 = vector.load %arg6[%c0_8, %c0_9] : memref<128x128xbf16, #tpu.memory_space<vmem>>, vector<128x128xbf16>
    %cst_10 = arith.constant dense<0.000000e+00> : vector<128x128xf32>
    %16 = tpu.matmul %14, %15, %cst_10 {dimension_numbers = #tpu.dot_dimension_numbers<[1], [0], [0], [1], [0, 0, 1, 1], [], []>} : vector<128x128xbf16>, vector<128x128xbf16>, vector<128x128xf32> -> vector<128x128xf32>
    %17 = arith.addf %13, %16 : vector<128x128xf32>
    %c0_11 = arith.constant 0 : index
    %c0_12 = arith.constant 0 : index
    %18 = vector.load %arg9[%c0_11, %c0_12] : memref<128x128xf32, #tpu.memory_space<vmem>>, vector<128x128xf32>
    tpu.vector_store %arg9[%c0_11, %c0_12], %17 {strides = array<i32>} : memref<128x128xf32, #tpu.memory_space<vmem>>, vector<128x128xf32>,
    %c0_i32_13 = arith.constant 0 : i32
    %19 = arith.cmpi eq, %arg2, %c0_i32_13 : i32
    %20 = arith.extui %19 : i1 to i32
    %c0_i32_14 = arith.constant 0 : i32
    %21 = arith.cmpi ne, %20, %c0_i32_14 : i32
    scf.if %21 {
      %c0_15 = arith.constant 0 : index
      %c0_16 = arith.constant 0 : index
      %22 = vector.load %arg9[%c0_15, %c0_16] : memref<128x128xf32, #tpu.memory_space<vmem>>, vector<128x128xf32>
      %c0_17 = arith.constant 0 : index
      %c0_18 = arith.constant 0 : index
      %23 = vector.load %arg7[%c0_17, %c0_18] : memref<1x128xf32, #tpu.memory_space<vmem>>, vector<1x128xf32>
      %24 = vector.broadcast %23 : vector<1x128xf32> to vector<128x128xf32>
      %25 = arith.addf %22, %24 : vector<128x128xf32>
      %c0_19 = arith.constant 0 : index
      %c0_20 = arith.constant 0 : index
      %26 = vector.load %arg8[%c0_19, %c0_20] : memref<128x128xf32, #tpu.memory_space<vmem>>, vector<128x128xf32>
      tpu.vector_store %arg8[%c0_19, %c0_20], %25 {strides = array<i32>} : memref<128x128xf32, #tpu.memory_space<vmem>>, vector<128x128xf32>,
    } else {
    }
    return
  }
  func.func @transform_0(%arg0: i32, %arg1: i32, %arg2: i32) -> (i32, i32) {
    %c0_i32 = arith.constant 0 : i32
    return %arg0, %arg2 : i32, i32
  }
  func.func @transform_1(%arg0: i32, %arg1: i32, %arg2: i32) -> (i32, i32) {
    %c0_i32 = arith.constant 0 : i32
    %c0_i32_0 = arith.constant 0 : i32
    return %c0_i32, %arg2 : i32, i32
  }
  func.func @transform_2(%arg0: i32, %arg1: i32, %arg2: i32) -> (i32, i32) {
    %c0_i32 = arith.constant 0 : i32
    %c0_i32_0 = arith.constant 0 : i32
    return %c0_i32, %arg2 : i32, i32
  }
  func.func @transform_3(%arg0: i32, %arg1: i32, %arg2: i32) -> (i32, i32) {
    %c0_i32 = arith.constant 0 : i32
    return %arg2, %arg1 : i32, i32
  }
  func.func @transform_4(%arg0: i32, %arg1: i32, %arg2: i32) -> (i32, i32) {
    %c0_i32 = arith.constant 0 : i32
    %c0_i32_0 = arith.constant 0 : i32
    return %c0_i32, %arg1 : i32, i32
  }
  func.func @transform_5(%arg0: i32, %arg1: i32, %arg2: i32) -> (i32, i32) {
    %c0_i32 = arith.constant 0 : i32
    return %arg0, %arg1 : i32, i32
  }
}

module attributes {stable_mosaic.version = 11 : i64} {
  func.func @_bn_relu_kernel(%arg0: i32, %arg1: memref<256x128xf32, #tpu.memory_space<vmem>>, %arg2: memref<1x128xf32, #tpu.memory_space<vmem>>, %arg3: memref<1x128xf32, #tpu.memory_space<vmem>>, %arg4: memref<256x128xf32, #tpu.memory_space<vmem>>) attributes {dimension_semantics = [#tpu.dimension_semantics<parallel>], iteration_bounds = array<i64: 2>, scalar_prefetch = 0 : i64, scratch_operands = 0 : i64, tpu.core_type = #tpu.core_type<tc>, window_params = [{transform_indices = @transform_0, window_bounds = array<i64: 256, 128>}, {pipeline_mode = #tpu.pipeline_mode<synchronous>, transform_indices = @transform_1, window_bounds = array<i64: 1, 128>}, {pipeline_mode = #tpu.pipeline_mode<synchronous>, transform_indices = @transform_2, window_bounds = array<i64: 1, 128>}, {transform_indices = @transform_3, window_bounds = array<i64: 256, 128>}]} {
    %c0 = arith.constant 0 : index
    %c0_0 = arith.constant 0 : index
    %0 = vector.load %arg1[%c0, %c0_0] : memref<256x128xf32, #tpu.memory_space<vmem>>, vector<256x128xf32>
    %c0_1 = arith.constant 0 : index
    %c0_2 = arith.constant 0 : index
    %1 = vector.load %arg2[%c0_1, %c0_2] : memref<1x128xf32, #tpu.memory_space<vmem>>, vector<1x128xf32>
    %2 = vector.broadcast %1 : vector<1x128xf32> to vector<256x128xf32>
    %3 = arith.mulf %0, %2 : vector<256x128xf32>
    %c0_3 = arith.constant 0 : index
    %c0_4 = arith.constant 0 : index
    %4 = vector.load %arg3[%c0_3, %c0_4] : memref<1x128xf32, #tpu.memory_space<vmem>>, vector<1x128xf32>
    %5 = vector.broadcast %4 : vector<1x128xf32> to vector<256x128xf32>
    %6 = arith.addf %3, %5 : vector<256x128xf32>
    %cst = arith.constant 0.000000e+00 : f32
    %7 = vector.broadcast %cst : f32 to vector<256x128xf32>
    %8 = arith.maximumf %6, %7 : vector<256x128xf32>
    %c0_5 = arith.constant 0 : index
    %c0_6 = arith.constant 0 : index
    %9 = vector.load %arg4[%c0_5, %c0_6] : memref<256x128xf32, #tpu.memory_space<vmem>>, vector<256x128xf32>
    tpu.vector_store %arg4[%c0_5, %c0_6], %8 {strides = array<i32>} : memref<256x128xf32, #tpu.memory_space<vmem>>, vector<256x128xf32>,
    return
  }
  func.func @transform_0(%arg0: i32) -> (i32, i32) {
    %c0_i32 = arith.constant 0 : i32
    %c0_i32_0 = arith.constant 0 : i32
    return %arg0, %c0_i32 : i32, i32
  }
  func.func @transform_1(%arg0: i32) -> (i32, i32) {
    %c0_i32 = arith.constant 0 : i32
    %c0_i32_0 = arith.constant 0 : i32
    %c0_i32_1 = arith.constant 0 : i32
    return %c0_i32, %c0_i32_0 : i32, i32
  }
  func.func @transform_2(%arg0: i32) -> (i32, i32) {
    %c0_i32 = arith.constant 0 : i32
    %c0_i32_0 = arith.constant 0 : i32
    %c0_i32_1 = arith.constant 0 : i32
    return %c0_i32, %c0_i32_0 : i32, i32
  }
  func.func @transform_3(%arg0: i32) -> (i32, i32) {
    %c0_i32 = arith.constant 0 : i32
    %c0_i32_0 = arith.constant 0 : i32
    return %arg0, %c0_i32 : i32, i32
  }
}

module attributes {stable_mosaic.version = 11 : i64} {
  func.func @_bn_relu_kernel(%arg0: i32, %arg1: memref<128x128xf32, #tpu.memory_space<vmem>>, %arg2: memref<1x128xf32, #tpu.memory_space<vmem>>, %arg3: memref<1x128xf32, #tpu.memory_space<vmem>>, %arg4: memref<128x128xbf16, #tpu.memory_space<vmem>>) attributes {dimension_semantics = [#tpu.dimension_semantics<parallel>], iteration_bounds = array<i64: 1>, scalar_prefetch = 0 : i64, scratch_operands = 0 : i64, tpu.core_type = #tpu.core_type<tc>, window_params = [{transform_indices = @transform_0, window_bounds = array<i64: 128, 128>}, {pipeline_mode = #tpu.pipeline_mode<synchronous>, transform_indices = @transform_1, window_bounds = array<i64: 1, 128>}, {pipeline_mode = #tpu.pipeline_mode<synchronous>, transform_indices = @transform_2, window_bounds = array<i64: 1, 128>}, {transform_indices = @transform_3, window_bounds = array<i64: 128, 128>}]} {
    %c0 = arith.constant 0 : index
    %c0_0 = arith.constant 0 : index
    %0 = vector.load %arg1[%c0, %c0_0] : memref<128x128xf32, #tpu.memory_space<vmem>>, vector<128x128xf32>
    %c0_1 = arith.constant 0 : index
    %c0_2 = arith.constant 0 : index
    %1 = vector.load %arg2[%c0_1, %c0_2] : memref<1x128xf32, #tpu.memory_space<vmem>>, vector<1x128xf32>
    %2 = vector.broadcast %1 : vector<1x128xf32> to vector<128x128xf32>
    %3 = arith.mulf %0, %2 : vector<128x128xf32>
    %c0_3 = arith.constant 0 : index
    %c0_4 = arith.constant 0 : index
    %4 = vector.load %arg3[%c0_3, %c0_4] : memref<1x128xf32, #tpu.memory_space<vmem>>, vector<1x128xf32>
    %5 = vector.broadcast %4 : vector<1x128xf32> to vector<128x128xf32>
    %6 = arith.addf %3, %5 : vector<128x128xf32>
    %cst = arith.constant 0.000000e+00 : f32
    %7 = vector.broadcast %cst : f32 to vector<128x128xf32>
    %8 = arith.maximumf %6, %7 : vector<128x128xf32>
    %9 = arith.truncf %8 : vector<128x128xf32> to vector<128x128xbf16>
    %c0_5 = arith.constant 0 : index
    %c0_6 = arith.constant 0 : index
    %10 = vector.load %arg4[%c0_5, %c0_6] : memref<128x128xbf16, #tpu.memory_space<vmem>>, vector<128x128xbf16>
    tpu.vector_store %arg4[%c0_5, %c0_6], %9 {strides = array<i32>} : memref<128x128xbf16, #tpu.memory_space<vmem>>, vector<128x128xbf16>,
    return
  }
  func.func @transform_0(%arg0: i32) -> (i32, i32) {
    %c0_i32 = arith.constant 0 : i32
    %c0_i32_0 = arith.constant 0 : i32
    return %arg0, %c0_i32 : i32, i32
  }
  func.func @transform_1(%arg0: i32) -> (i32, i32) {
    %c0_i32 = arith.constant 0 : i32
    %c0_i32_0 = arith.constant 0 : i32
    %c0_i32_1 = arith.constant 0 : i32
    return %c0_i32, %c0_i32_0 : i32, i32
  }
  func.func @transform_2(%arg0: i32) -> (i32, i32) {
    %c0_i32 = arith.constant 0 : i32
    %c0_i32_0 = arith.constant 0 : i32
    %c0_i32_1 = arith.constant 0 : i32
    return %c0_i32, %c0_i32_0 : i32, i32
  }
  func.func @transform_3(%arg0: i32) -> (i32, i32) {
    %c0_i32 = arith.constant 0 : i32
    %c0_i32_0 = arith.constant 0 : i32
    return %arg0, %c0_i32 : i32, i32
  }
}

module attributes {stable_mosaic.version = 11 : i64} {
  func.func @_matmul_kernel_plain(%arg0: i32, %arg1: i32, %arg2: i32, %arg3: memref<128x128xbf16, #tpu.memory_space<vmem>>, %arg4: memref<128x128xbf16, #tpu.memory_space<vmem>>, %arg5: memref<1x128xf32, #tpu.memory_space<vmem>>, %arg6: memref<128x128xbf16, #tpu.memory_space<vmem>>, %arg7: memref<128x128xf32, #tpu.memory_space<vmem>>) attributes {dimension_semantics = [#tpu.dimension_semantics<parallel>, #tpu.dimension_semantics<parallel>, #tpu.dimension_semantics<arbitrary>], iteration_bounds = array<i64: 1, 1, 1>, scalar_prefetch = 0 : i64, scratch_operands = 1 : i64, tpu.core_type = #tpu.core_type<tc>, window_params = [{transform_indices = @transform_0, window_bounds = array<i64: 128, 128>}, {transform_indices = @transform_1, window_bounds = array<i64: 128, 128>}, {transform_indices = @transform_2, window_bounds = array<i64: 1, 128>}, {transform_indices = @transform_3, window_bounds = array<i64: 128, 128>}]} {
    %c0_i32 = arith.constant 0 : i32
    %0 = arith.cmpi eq, %arg2, %c0_i32 : i32
    %1 = arith.extui %0 : i1 to i32
    %c0_i32_0 = arith.constant 0 : i32
    %2 = arith.cmpi ne, %1, %c0_i32_0 : i32
    scf.if %2 {
      %cst_10 = arith.constant 0.000000e+00 : f32
      %12 = vector.broadcast %cst_10 : f32 to vector<128x128xf32>
      %c0_11 = arith.constant 0 : index
      %c0_12 = arith.constant 0 : index
      %13 = vector.load %arg7[%c0_11, %c0_12] : memref<128x128xf32, #tpu.memory_space<vmem>>, vector<128x128xf32>
      tpu.vector_store %arg7[%c0_11, %c0_12], %12 {strides = array<i32>} : memref<128x128xf32, #tpu.memory_space<vmem>>, vector<128x128xf32>,
    } else {
    }
    %c0 = arith.constant 0 : index
    %c0_1 = arith.constant 0 : index
    %3 = vector.load %arg7[%c0, %c0_1] : memref<128x128xf32, #tpu.memory_space<vmem>>, vector<128x128xf32>
    %c0_2 = arith.constant 0 : index
    %c0_3 = arith.constant 0 : index
    %4 = vector.load %arg3[%c0_2, %c0_3] : memref<128x128xbf16, #tpu.memory_space<vmem>>, vector<128x128xbf16>
    %c0_4 = arith.constant 0 : index
    %c0_5 = arith.constant 0 : index
    %5 = vector.load %arg4[%c0_4, %c0_5] : memref<128x128xbf16, #tpu.memory_space<vmem>>, vector<128x128xbf16>
    %cst = arith.constant dense<0.000000e+00> : vector<128x128xf32>
    %6 = tpu.matmul %4, %5, %cst {dimension_numbers = #tpu.dot_dimension_numbers<[1], [0], [0], [1], [0, 0, 1, 1], [], []>} : vector<128x128xbf16>, vector<128x128xbf16>, vector<128x128xf32> -> vector<128x128xf32>
    %7 = arith.addf %3, %6 : vector<128x128xf32>
    %c0_6 = arith.constant 0 : index
    %c0_7 = arith.constant 0 : index
    %8 = vector.load %arg7[%c0_6, %c0_7] : memref<128x128xf32, #tpu.memory_space<vmem>>, vector<128x128xf32>
    tpu.vector_store %arg7[%c0_6, %c0_7], %7 {strides = array<i32>} : memref<128x128xf32, #tpu.memory_space<vmem>>, vector<128x128xf32>,
    %c0_i32_8 = arith.constant 0 : i32
    %9 = arith.cmpi eq, %arg2, %c0_i32_8 : i32
    %10 = arith.extui %9 : i1 to i32
    %c0_i32_9 = arith.constant 0 : i32
    %11 = arith.cmpi ne, %10, %c0_i32_9 : i32
    scf.if %11 {
      %c0_10 = arith.constant 0 : index
      %c0_11 = arith.constant 0 : index
      %12 = vector.load %arg7[%c0_10, %c0_11] : memref<128x128xf32, #tpu.memory_space<vmem>>, vector<128x128xf32>
      %c0_12 = arith.constant 0 : index
      %c0_13 = arith.constant 0 : index
      %13 = vector.load %arg5[%c0_12, %c0_13] : memref<1x128xf32, #tpu.memory_space<vmem>>, vector<1x128xf32>
      %14 = vector.broadcast %13 : vector<1x128xf32> to vector<128x128xf32>
      %15 = arith.addf %12, %14 : vector<128x128xf32>
      %16 = arith.truncf %15 : vector<128x128xf32> to vector<128x128xbf16>
      %c0_14 = arith.constant 0 : index
      %c0_15 = arith.constant 0 : index
      %17 = vector.load %arg6[%c0_14, %c0_15] : memref<128x128xbf16, #tpu.memory_space<vmem>>, vector<128x128xbf16>
      tpu.vector_store %arg6[%c0_14, %c0_15], %16 {strides = array<i32>} : memref<128x128xbf16, #tpu.memory_space<vmem>>, vector<128x128xbf16>,
    } else {
    }
    return
  }
  func.func @transform_0(%arg0: i32, %arg1: i32, %arg2: i32) -> (i32, i32) {
    %c0_i32 = arith.constant 0 : i32
    return %arg0, %arg2 : i32, i32
  }
  func.func @transform_1(%arg0: i32, %arg1: i32, %arg2: i32) -> (i32, i32) {
    %c0_i32 = arith.constant 0 : i32
    return %arg2, %arg1 : i32, i32
  }
  func.func @transform_2(%arg0: i32, %arg1: i32, %arg2: i32) -> (i32, i32) {
    %c0_i32 = arith.constant 0 : i32
    %c0_i32_0 = arith.constant 0 : i32
    return %c0_i32, %arg1 : i32, i32
  }
  func.func @transform_3(%arg0: i32, %arg1: i32, %arg2: i32) -> (i32, i32) {
    %c0_i32 = arith.constant 0 : i32
    return %arg0, %arg1 : i32, i32
  }
}

module attributes {stable_mosaic.version = 11 : i64} {
  func.func @_matmul_kernel_act(%arg0: i32, %arg1: i32, %arg2: i32, %arg3: memref<128x128xbf16, #tpu.memory_space<vmem>>, %arg4: memref<1x128xf32, #tpu.memory_space<vmem>>, %arg5: memref<1x128xf32, #tpu.memory_space<vmem>>, %arg6: memref<128x128xbf16, #tpu.memory_space<vmem>>, %arg7: memref<1x128xf32, #tpu.memory_space<vmem>>, %arg8: memref<128x128xbf16, #tpu.memory_space<vmem>>, %arg9: memref<128x128xf32, #tpu.memory_space<vmem>>) attributes {dimension_semantics = [#tpu.dimension_semantics<parallel>, #tpu.dimension_semantics<parallel>, #tpu.dimension_semantics<arbitrary>], iteration_bounds = array<i64: 1, 1, 1>, scalar_prefetch = 0 : i64, scratch_operands = 1 : i64, tpu.core_type = #tpu.core_type<tc>, window_params = [{transform_indices = @transform_0, window_bounds = array<i64: 128, 128>}, {transform_indices = @transform_1, window_bounds = array<i64: 1, 128>}, {transform_indices = @transform_2, window_bounds = array<i64: 1, 128>}, {transform_indices = @transform_3, window_bounds = array<i64: 128, 128>}, {transform_indices = @transform_4, window_bounds = array<i64: 1, 128>}, {transform_indices = @transform_5, window_bounds = array<i64: 128, 128>}]} {
    %c0_i32 = arith.constant 0 : i32
    %0 = arith.cmpi eq, %arg2, %c0_i32 : i32
    %1 = arith.extui %0 : i1 to i32
    %c0_i32_0 = arith.constant 0 : i32
    %2 = arith.cmpi ne, %1, %c0_i32_0 : i32
    scf.if %2 {
      %cst_15 = arith.constant 0.000000e+00 : f32
      %22 = vector.broadcast %cst_15 : f32 to vector<128x128xf32>
      %c0_16 = arith.constant 0 : index
      %c0_17 = arith.constant 0 : index
      %23 = vector.load %arg9[%c0_16, %c0_17] : memref<128x128xf32, #tpu.memory_space<vmem>>, vector<128x128xf32>
      tpu.vector_store %arg9[%c0_16, %c0_17], %22 {strides = array<i32>} : memref<128x128xf32, #tpu.memory_space<vmem>>, vector<128x128xf32>,
    } else {
    }
    %c0 = arith.constant 0 : index
    %c0_1 = arith.constant 0 : index
    %3 = vector.load %arg3[%c0, %c0_1] : memref<128x128xbf16, #tpu.memory_space<vmem>>, vector<128x128xbf16>
    %4 = arith.extf %3 : vector<128x128xbf16> to vector<128x128xf32>
    %c0_2 = arith.constant 0 : index
    %c0_3 = arith.constant 0 : index
    %5 = vector.load %arg4[%c0_2, %c0_3] : memref<1x128xf32, #tpu.memory_space<vmem>>, vector<1x128xf32>
    %6 = vector.broadcast %5 : vector<1x128xf32> to vector<128x128xf32>
    %7 = arith.mulf %4, %6 : vector<128x128xf32>
    %c0_4 = arith.constant 0 : index
    %c0_5 = arith.constant 0 : index
    %8 = vector.load %arg5[%c0_4, %c0_5] : memref<1x128xf32, #tpu.memory_space<vmem>>, vector<1x128xf32>
    %9 = vector.broadcast %8 : vector<1x128xf32> to vector<128x128xf32>
    %10 = arith.addf %7, %9 : vector<128x128xf32>
    %cst = arith.constant 0.000000e+00 : f32
    %11 = vector.broadcast %cst : f32 to vector<128x128xf32>
    %12 = arith.maximumf %10, %11 : vector<128x128xf32>
    %c0_6 = arith.constant 0 : index
    %c0_7 = arith.constant 0 : index
    %13 = vector.load %arg9[%c0_6, %c0_7] : memref<128x128xf32, #tpu.memory_space<vmem>>, vector<128x128xf32>
    %14 = arith.truncf %12 : vector<128x128xf32> to vector<128x128xbf16>
    %c0_8 = arith.constant 0 : index
    %c0_9 = arith.constant 0 : index
    %15 = vector.load %arg6[%c0_8, %c0_9] : memref<128x128xbf16, #tpu.memory_space<vmem>>, vector<128x128xbf16>
    %cst_10 = arith.constant dense<0.000000e+00> : vector<128x128xf32>
    %16 = tpu.matmul %14, %15, %cst_10 {dimension_numbers = #tpu.dot_dimension_numbers<[1], [0], [0], [1], [0, 0, 1, 1], [], []>} : vector<128x128xbf16>, vector<128x128xbf16>, vector<128x128xf32> -> vector<128x128xf32>
    %17 = arith.addf %13, %16 : vector<128x128xf32>
    %c0_11 = arith.constant 0 : index
    %c0_12 = arith.constant 0 : index
    %18 = vector.load %arg9[%c0_11, %c0_12] : memref<128x128xf32, #tpu.memory_space<vmem>>, vector<128x128xf32>
    tpu.vector_store %arg9[%c0_11, %c0_12], %17 {strides = array<i32>} : memref<128x128xf32, #tpu.memory_space<vmem>>, vector<128x128xf32>,
    %c0_i32_13 = arith.constant 0 : i32
    %19 = arith.cmpi eq, %arg2, %c0_i32_13 : i32
    %20 = arith.extui %19 : i1 to i32
    %c0_i32_14 = arith.constant 0 : i32
    %21 = arith.cmpi ne, %20, %c0_i32_14 : i32
    scf.if %21 {
      %c0_15 = arith.constant 0 : index
      %c0_16 = arith.constant 0 : index
      %22 = vector.load %arg9[%c0_15, %c0_16] : memref<128x128xf32, #tpu.memory_space<vmem>>, vector<128x128xf32>
      %c0_17 = arith.constant 0 : index
      %c0_18 = arith.constant 0 : index
      %23 = vector.load %arg7[%c0_17, %c0_18] : memref<1x128xf32, #tpu.memory_space<vmem>>, vector<1x128xf32>
      %24 = vector.broadcast %23 : vector<1x128xf32> to vector<128x128xf32>
      %25 = arith.addf %22, %24 : vector<128x128xf32>
      %26 = arith.truncf %25 : vector<128x128xf32> to vector<128x128xbf16>
      %c0_19 = arith.constant 0 : index
      %c0_20 = arith.constant 0 : index
      %27 = vector.load %arg8[%c0_19, %c0_20] : memref<128x128xbf16, #tpu.memory_space<vmem>>, vector<128x128xbf16>
      tpu.vector_store %arg8[%c0_19, %c0_20], %26 {strides = array<i32>} : memref<128x128xbf16, #tpu.memory_space<vmem>>, vector<128x128xbf16>,
    } else {
    }
    return
  }
  func.func @transform_0(%arg0: i32, %arg1: i32, %arg2: i32) -> (i32, i32) {
    %c0_i32 = arith.constant 0 : i32
    return %arg0, %arg2 : i32, i32
  }
  func.func @transform_1(%arg0: i32, %arg1: i32, %arg2: i32) -> (i32, i32) {
    %c0_i32 = arith.constant 0 : i32
    %c0_i32_0 = arith.constant 0 : i32
    return %c0_i32, %arg2 : i32, i32
  }
  func.func @transform_2(%arg0: i32, %arg1: i32, %arg2: i32) -> (i32, i32) {
    %c0_i32 = arith.constant 0 : i32
    %c0_i32_0 = arith.constant 0 : i32
    return %c0_i32, %arg2 : i32, i32
  }
  func.func @transform_3(%arg0: i32, %arg1: i32, %arg2: i32) -> (i32, i32) {
    %c0_i32 = arith.constant 0 : i32
    return %arg2, %arg1 : i32, i32
  }
  func.func @transform_4(%arg0: i32, %arg1: i32, %arg2: i32) -> (i32, i32) {
    %c0_i32 = arith.constant 0 : i32
    %c0_i32_0 = arith.constant 0 : i32
    return %c0_i32, %arg1 : i32, i32
  }
  func.func @transform_5(%arg0: i32, %arg1: i32, %arg2: i32) -> (i32, i32) {
    %c0_i32 = arith.constant 0 : i32
    return %arg0, %arg1 : i32, i32
  }
}

module attributes {stable_mosaic.version = 11 : i64} {
  func.func @_bn_relu_kernel(%arg0: i32, %arg1: memref<32x128xf32, #tpu.memory_space<vmem>>, %arg2: memref<1x128xf32, #tpu.memory_space<vmem>>, %arg3: memref<1x128xf32, #tpu.memory_space<vmem>>, %arg4: memref<32x128xbf16, #tpu.memory_space<vmem>>) attributes {dimension_semantics = [#tpu.dimension_semantics<parallel>], iteration_bounds = array<i64: 1>, scalar_prefetch = 0 : i64, scratch_operands = 0 : i64, tpu.core_type = #tpu.core_type<tc>, window_params = [{transform_indices = @transform_0, window_bounds = array<i64: 32, 128>}, {pipeline_mode = #tpu.pipeline_mode<synchronous>, transform_indices = @transform_1, window_bounds = array<i64: 1, 128>}, {pipeline_mode = #tpu.pipeline_mode<synchronous>, transform_indices = @transform_2, window_bounds = array<i64: 1, 128>}, {transform_indices = @transform_3, window_bounds = array<i64: 32, 128>}]} {
    %c0 = arith.constant 0 : index
    %c0_0 = arith.constant 0 : index
    %0 = vector.load %arg1[%c0, %c0_0] : memref<32x128xf32, #tpu.memory_space<vmem>>, vector<32x128xf32>
    %c0_1 = arith.constant 0 : index
    %c0_2 = arith.constant 0 : index
    %1 = vector.load %arg2[%c0_1, %c0_2] : memref<1x128xf32, #tpu.memory_space<vmem>>, vector<1x128xf32>
    %2 = vector.broadcast %1 : vector<1x128xf32> to vector<32x128xf32>
    %3 = arith.mulf %0, %2 : vector<32x128xf32>
    %c0_3 = arith.constant 0 : index
    %c0_4 = arith.constant 0 : index
    %4 = vector.load %arg3[%c0_3, %c0_4] : memref<1x128xf32, #tpu.memory_space<vmem>>, vector<1x128xf32>
    %5 = vector.broadcast %4 : vector<1x128xf32> to vector<32x128xf32>
    %6 = arith.addf %3, %5 : vector<32x128xf32>
    %cst = arith.constant 0.000000e+00 : f32
    %7 = vector.broadcast %cst : f32 to vector<32x128xf32>
    %8 = arith.maximumf %6, %7 : vector<32x128xf32>
    %9 = arith.truncf %8 : vector<32x128xf32> to vector<32x128xbf16>
    %c0_5 = arith.constant 0 : index
    %c0_6 = arith.constant 0 : index
    %10 = vector.load %arg4[%c0_5, %c0_6] : memref<32x128xbf16, #tpu.memory_space<vmem>>, vector<32x128xbf16>
    tpu.vector_store %arg4[%c0_5, %c0_6], %9 {strides = array<i32>} : memref<32x128xbf16, #tpu.memory_space<vmem>>, vector<32x128xbf16>,
    return
  }
  func.func @transform_0(%arg0: i32) -> (i32, i32) {
    %c0_i32 = arith.constant 0 : i32
    %c0_i32_0 = arith.constant 0 : i32
    return %arg0, %c0_i32 : i32, i32
  }
  func.func @transform_1(%arg0: i32) -> (i32, i32) {
    %c0_i32 = arith.constant 0 : i32
    %c0_i32_0 = arith.constant 0 : i32
    %c0_i32_1 = arith.constant 0 : i32
    return %c0_i32, %c0_i32_0 : i32, i32
  }
  func.func @transform_2(%arg0: i32) -> (i32, i32) {
    %c0_i32 = arith.constant 0 : i32
    %c0_i32_0 = arith.constant 0 : i32
    %c0_i32_1 = arith.constant 0 : i32
    return %c0_i32, %c0_i32_0 : i32, i32
  }
  func.func @transform_3(%arg0: i32) -> (i32, i32) {
    %c0_i32 = arith.constant 0 : i32
    %c0_i32_0 = arith.constant 0 : i32
    return %arg0, %c0_i32 : i32, i32
  }
}

module attributes {stable_mosaic.version = 11 : i64} {
  func.func @_matmul_kernel_act(%arg0: i32, %arg1: i32, %arg2: i32, %arg3: memref<32x128xbf16, #tpu.memory_space<vmem>>, %arg4: memref<1x128xf32, #tpu.memory_space<vmem>>, %arg5: memref<1x128xf32, #tpu.memory_space<vmem>>, %arg6: memref<128x128xbf16, #tpu.memory_space<vmem>>, %arg7: memref<1x128xf32, #tpu.memory_space<vmem>>, %arg8: memref<32x128xf32, #tpu.memory_space<vmem>>, %arg9: memref<32x128xf32, #tpu.memory_space<vmem>>) attributes {dimension_semantics = [#tpu.dimension_semantics<parallel>, #tpu.dimension_semantics<parallel>, #tpu.dimension_semantics<arbitrary>], iteration_bounds = array<i64: 1, 1, 1>, scalar_prefetch = 0 : i64, scratch_operands = 1 : i64, tpu.core_type = #tpu.core_type<tc>, window_params = [{transform_indices = @transform_0, window_bounds = array<i64: 32, 128>}, {transform_indices = @transform_1, window_bounds = array<i64: 1, 128>}, {transform_indices = @transform_2, window_bounds = array<i64: 1, 128>}, {transform_indices = @transform_3, window_bounds = array<i64: 128, 128>}, {transform_indices = @transform_4, window_bounds = array<i64: 1, 128>}, {transform_indices = @transform_5, window_bounds = array<i64: 32, 128>}]} {
    %c0_i32 = arith.constant 0 : i32
    %0 = arith.cmpi eq, %arg2, %c0_i32 : i32
    %1 = arith.extui %0 : i1 to i32
    %c0_i32_0 = arith.constant 0 : i32
    %2 = arith.cmpi ne, %1, %c0_i32_0 : i32
    scf.if %2 {
      %cst_15 = arith.constant 0.000000e+00 : f32
      %22 = vector.broadcast %cst_15 : f32 to vector<32x128xf32>
      %c0_16 = arith.constant 0 : index
      %c0_17 = arith.constant 0 : index
      %23 = vector.load %arg9[%c0_16, %c0_17] : memref<32x128xf32, #tpu.memory_space<vmem>>, vector<32x128xf32>
      tpu.vector_store %arg9[%c0_16, %c0_17], %22 {strides = array<i32>} : memref<32x128xf32, #tpu.memory_space<vmem>>, vector<32x128xf32>,
    } else {
    }
    %c0 = arith.constant 0 : index
    %c0_1 = arith.constant 0 : index
    %3 = vector.load %arg3[%c0, %c0_1] : memref<32x128xbf16, #tpu.memory_space<vmem>>, vector<32x128xbf16>
    %4 = arith.extf %3 : vector<32x128xbf16> to vector<32x128xf32>
    %c0_2 = arith.constant 0 : index
    %c0_3 = arith.constant 0 : index
    %5 = vector.load %arg4[%c0_2, %c0_3] : memref<1x128xf32, #tpu.memory_space<vmem>>, vector<1x128xf32>
    %6 = vector.broadcast %5 : vector<1x128xf32> to vector<32x128xf32>
    %7 = arith.mulf %4, %6 : vector<32x128xf32>
    %c0_4 = arith.constant 0 : index
    %c0_5 = arith.constant 0 : index
    %8 = vector.load %arg5[%c0_4, %c0_5] : memref<1x128xf32, #tpu.memory_space<vmem>>, vector<1x128xf32>
    %9 = vector.broadcast %8 : vector<1x128xf32> to vector<32x128xf32>
    %10 = arith.addf %7, %9 : vector<32x128xf32>
    %cst = arith.constant 0.000000e+00 : f32
    %11 = vector.broadcast %cst : f32 to vector<32x128xf32>
    %12 = arith.maximumf %10, %11 : vector<32x128xf32>
    %c0_6 = arith.constant 0 : index
    %c0_7 = arith.constant 0 : index
    %13 = vector.load %arg9[%c0_6, %c0_7] : memref<32x128xf32, #tpu.memory_space<vmem>>, vector<32x128xf32>
    %14 = arith.truncf %12 : vector<32x128xf32> to vector<32x128xbf16>
    %c0_8 = arith.constant 0 : index
    %c0_9 = arith.constant 0 : index
    %15 = vector.load %arg6[%c0_8, %c0_9] : memref<128x128xbf16, #tpu.memory_space<vmem>>, vector<128x128xbf16>
    %cst_10 = arith.constant dense<0.000000e+00> : vector<32x128xf32>
    %16 = tpu.matmul %14, %15, %cst_10 {dimension_numbers = #tpu.dot_dimension_numbers<[1], [0], [0], [1], [0, 0, 1, 1], [], []>} : vector<32x128xbf16>, vector<128x128xbf16>, vector<32x128xf32> -> vector<32x128xf32>
    %17 = arith.addf %13, %16 : vector<32x128xf32>
    %c0_11 = arith.constant 0 : index
    %c0_12 = arith.constant 0 : index
    %18 = vector.load %arg9[%c0_11, %c0_12] : memref<32x128xf32, #tpu.memory_space<vmem>>, vector<32x128xf32>
    tpu.vector_store %arg9[%c0_11, %c0_12], %17 {strides = array<i32>} : memref<32x128xf32, #tpu.memory_space<vmem>>, vector<32x128xf32>,
    %c0_i32_13 = arith.constant 0 : i32
    %19 = arith.cmpi eq, %arg2, %c0_i32_13 : i32
    %20 = arith.extui %19 : i1 to i32
    %c0_i32_14 = arith.constant 0 : i32
    %21 = arith.cmpi ne, %20, %c0_i32_14 : i32
    scf.if %21 {
      %c0_15 = arith.constant 0 : index
      %c0_16 = arith.constant 0 : index
      %22 = vector.load %arg9[%c0_15, %c0_16] : memref<32x128xf32, #tpu.memory_space<vmem>>, vector<32x128xf32>
      %c0_17 = arith.constant 0 : index
      %c0_18 = arith.constant 0 : index
      %23 = vector.load %arg7[%c0_17, %c0_18] : memref<1x128xf32, #tpu.memory_space<vmem>>, vector<1x128xf32>
      %24 = vector.broadcast %23 : vector<1x128xf32> to vector<32x128xf32>
      %25 = arith.addf %22, %24 : vector<32x128xf32>
      %c0_19 = arith.constant 0 : index
      %c0_20 = arith.constant 0 : index
      %26 = vector.load %arg8[%c0_19, %c0_20] : memref<32x128xf32, #tpu.memory_space<vmem>>, vector<32x128xf32>
      tpu.vector_store %arg8[%c0_19, %c0_20], %25 {strides = array<i32>} : memref<32x128xf32, #tpu.memory_space<vmem>>, vector<32x128xf32>,
    } else {
    }
    return
  }
  func.func @transform_0(%arg0: i32, %arg1: i32, %arg2: i32) -> (i32, i32) {
    %c0_i32 = arith.constant 0 : i32
    return %arg0, %arg2 : i32, i32
  }
  func.func @transform_1(%arg0: i32, %arg1: i32, %arg2: i32) -> (i32, i32) {
    %c0_i32 = arith.constant 0 : i32
    %c0_i32_0 = arith.constant 0 : i32
    return %c0_i32, %arg2 : i32, i32
  }
  func.func @transform_2(%arg0: i32, %arg1: i32, %arg2: i32) -> (i32, i32) {
    %c0_i32 = arith.constant 0 : i32
    %c0_i32_0 = arith.constant 0 : i32
    return %c0_i32, %arg2 : i32, i32
  }
  func.func @transform_3(%arg0: i32, %arg1: i32, %arg2: i32) -> (i32, i32) {
    %c0_i32 = arith.constant 0 : i32
    return %arg2, %arg1 : i32, i32
  }
  func.func @transform_4(%arg0: i32, %arg1: i32, %arg2: i32) -> (i32, i32) {
    %c0_i32 = arith.constant 0 : i32
    %c0_i32_0 = arith.constant 0 : i32
    return %c0_i32, %arg1 : i32, i32
  }
  func.func @transform_5(%arg0: i32, %arg1: i32, %arg2: i32) -> (i32, i32) {
    %c0_i32 = arith.constant 0 : i32
    return %arg0, %arg1 : i32, i32
  }
}

module attributes {stable_mosaic.version = 11 : i64} {
  func.func @_matmul_kernel_plain(%arg0: i32, %arg1: i32, %arg2: i32, %arg3: memref<32x128xbf16, #tpu.memory_space<vmem>>, %arg4: memref<128x128xbf16, #tpu.memory_space<vmem>>, %arg5: memref<1x128xf32, #tpu.memory_space<vmem>>, %arg6: memref<32x128xbf16, #tpu.memory_space<vmem>>, %arg7: memref<32x128xf32, #tpu.memory_space<vmem>>) attributes {dimension_semantics = [#tpu.dimension_semantics<parallel>, #tpu.dimension_semantics<parallel>, #tpu.dimension_semantics<arbitrary>], iteration_bounds = array<i64: 1, 1, 1>, scalar_prefetch = 0 : i64, scratch_operands = 1 : i64, tpu.core_type = #tpu.core_type<tc>, window_params = [{transform_indices = @transform_0, window_bounds = array<i64: 32, 128>}, {transform_indices = @transform_1, window_bounds = array<i64: 128, 128>}, {transform_indices = @transform_2, window_bounds = array<i64: 1, 128>}, {transform_indices = @transform_3, window_bounds = array<i64: 32, 128>}]} {
    %c0_i32 = arith.constant 0 : i32
    %0 = arith.cmpi eq, %arg2, %c0_i32 : i32
    %1 = arith.extui %0 : i1 to i32
    %c0_i32_0 = arith.constant 0 : i32
    %2 = arith.cmpi ne, %1, %c0_i32_0 : i32
    scf.if %2 {
      %cst_10 = arith.constant 0.000000e+00 : f32
      %12 = vector.broadcast %cst_10 : f32 to vector<32x128xf32>
      %c0_11 = arith.constant 0 : index
      %c0_12 = arith.constant 0 : index
      %13 = vector.load %arg7[%c0_11, %c0_12] : memref<32x128xf32, #tpu.memory_space<vmem>>, vector<32x128xf32>
      tpu.vector_store %arg7[%c0_11, %c0_12], %12 {strides = array<i32>} : memref<32x128xf32, #tpu.memory_space<vmem>>, vector<32x128xf32>,
    } else {
    }
    %c0 = arith.constant 0 : index
    %c0_1 = arith.constant 0 : index
    %3 = vector.load %arg7[%c0, %c0_1] : memref<32x128xf32, #tpu.memory_space<vmem>>, vector<32x128xf32>
    %c0_2 = arith.constant 0 : index
    %c0_3 = arith.constant 0 : index
    %4 = vector.load %arg3[%c0_2, %c0_3] : memref<32x128xbf16, #tpu.memory_space<vmem>>, vector<32x128xbf16>
    %c0_4 = arith.constant 0 : index
    %c0_5 = arith.constant 0 : index
    %5 = vector.load %arg4[%c0_4, %c0_5] : memref<128x128xbf16, #tpu.memory_space<vmem>>, vector<128x128xbf16>
    %cst = arith.constant dense<0.000000e+00> : vector<32x128xf32>
    %6 = tpu.matmul %4, %5, %cst {dimension_numbers = #tpu.dot_dimension_numbers<[1], [0], [0], [1], [0, 0, 1, 1], [], []>} : vector<32x128xbf16>, vector<128x128xbf16>, vector<32x128xf32> -> vector<32x128xf32>
    %7 = arith.addf %3, %6 : vector<32x128xf32>
    %c0_6 = arith.constant 0 : index
    %c0_7 = arith.constant 0 : index
    %8 = vector.load %arg7[%c0_6, %c0_7] : memref<32x128xf32, #tpu.memory_space<vmem>>, vector<32x128xf32>
    tpu.vector_store %arg7[%c0_6, %c0_7], %7 {strides = array<i32>} : memref<32x128xf32, #tpu.memory_space<vmem>>, vector<32x128xf32>,
    %c0_i32_8 = arith.constant 0 : i32
    %9 = arith.cmpi eq, %arg2, %c0_i32_8 : i32
    %10 = arith.extui %9 : i1 to i32
    %c0_i32_9 = arith.constant 0 : i32
    %11 = arith.cmpi ne, %10, %c0_i32_9 : i32
    scf.if %11 {
      %c0_10 = arith.constant 0 : index
      %c0_11 = arith.constant 0 : index
      %12 = vector.load %arg7[%c0_10, %c0_11] : memref<32x128xf32, #tpu.memory_space<vmem>>, vector<32x128xf32>
      %c0_12 = arith.constant 0 : index
      %c0_13 = arith.constant 0 : index
      %13 = vector.load %arg5[%c0_12, %c0_13] : memref<1x128xf32, #tpu.memory_space<vmem>>, vector<1x128xf32>
      %14 = vector.broadcast %13 : vector<1x128xf32> to vector<32x128xf32>
      %15 = arith.addf %12, %14 : vector<32x128xf32>
      %16 = arith.truncf %15 : vector<32x128xf32> to vector<32x128xbf16>
      %c0_14 = arith.constant 0 : index
      %c0_15 = arith.constant 0 : index
      %17 = vector.load %arg6[%c0_14, %c0_15] : memref<32x128xbf16, #tpu.memory_space<vmem>>, vector<32x128xbf16>
      tpu.vector_store %arg6[%c0_14, %c0_15], %16 {strides = array<i32>} : memref<32x128xbf16, #tpu.memory_space<vmem>>, vector<32x128xbf16>,
    } else {
    }
    return
  }
  func.func @transform_0(%arg0: i32, %arg1: i32, %arg2: i32) -> (i32, i32) {
    %c0_i32 = arith.constant 0 : i32
    return %arg0, %arg2 : i32, i32
  }
  func.func @transform_1(%arg0: i32, %arg1: i32, %arg2: i32) -> (i32, i32) {
    %c0_i32 = arith.constant 0 : i32
    return %arg2, %arg1 : i32, i32
  }
  func.func @transform_2(%arg0: i32, %arg1: i32, %arg2: i32) -> (i32, i32) {
    %c0_i32 = arith.constant 0 : i32
    %c0_i32_0 = arith.constant 0 : i32
    return %c0_i32, %arg1 : i32, i32
  }
  func.func @transform_3(%arg0: i32, %arg1: i32, %arg2: i32) -> (i32, i32) {
    %c0_i32 = arith.constant 0 : i32
    return %arg0, %arg1 : i32, i32
  }
}

module attributes {stable_mosaic.version = 11 : i64} {
  func.func @_matmul_kernel_act(%arg0: i32, %arg1: i32, %arg2: i32, %arg3: memref<32x128xbf16, #tpu.memory_space<vmem>>, %arg4: memref<1x128xf32, #tpu.memory_space<vmem>>, %arg5: memref<1x128xf32, #tpu.memory_space<vmem>>, %arg6: memref<128x128xbf16, #tpu.memory_space<vmem>>, %arg7: memref<1x128xf32, #tpu.memory_space<vmem>>, %arg8: memref<32x128xbf16, #tpu.memory_space<vmem>>, %arg9: memref<32x128xf32, #tpu.memory_space<vmem>>) attributes {dimension_semantics = [#tpu.dimension_semantics<parallel>, #tpu.dimension_semantics<parallel>, #tpu.dimension_semantics<arbitrary>], iteration_bounds = array<i64: 1, 1, 1>, scalar_prefetch = 0 : i64, scratch_operands = 1 : i64, tpu.core_type = #tpu.core_type<tc>, window_params = [{transform_indices = @transform_0, window_bounds = array<i64: 32, 128>}, {transform_indices = @transform_1, window_bounds = array<i64: 1, 128>}, {transform_indices = @transform_2, window_bounds = array<i64: 1, 128>}, {transform_indices = @transform_3, window_bounds = array<i64: 128, 128>}, {transform_indices = @transform_4, window_bounds = array<i64: 1, 128>}, {transform_indices = @transform_5, window_bounds = array<i64: 32, 128>}]} {
    %c0_i32 = arith.constant 0 : i32
    %0 = arith.cmpi eq, %arg2, %c0_i32 : i32
    %1 = arith.extui %0 : i1 to i32
    %c0_i32_0 = arith.constant 0 : i32
    %2 = arith.cmpi ne, %1, %c0_i32_0 : i32
    scf.if %2 {
      %cst_15 = arith.constant 0.000000e+00 : f32
      %22 = vector.broadcast %cst_15 : f32 to vector<32x128xf32>
      %c0_16 = arith.constant 0 : index
      %c0_17 = arith.constant 0 : index
      %23 = vector.load %arg9[%c0_16, %c0_17] : memref<32x128xf32, #tpu.memory_space<vmem>>, vector<32x128xf32>
      tpu.vector_store %arg9[%c0_16, %c0_17], %22 {strides = array<i32>} : memref<32x128xf32, #tpu.memory_space<vmem>>, vector<32x128xf32>,
    } else {
    }
    %c0 = arith.constant 0 : index
    %c0_1 = arith.constant 0 : index
    %3 = vector.load %arg3[%c0, %c0_1] : memref<32x128xbf16, #tpu.memory_space<vmem>>, vector<32x128xbf16>
    %4 = arith.extf %3 : vector<32x128xbf16> to vector<32x128xf32>
    %c0_2 = arith.constant 0 : index
    %c0_3 = arith.constant 0 : index
    %5 = vector.load %arg4[%c0_2, %c0_3] : memref<1x128xf32, #tpu.memory_space<vmem>>, vector<1x128xf32>
    %6 = vector.broadcast %5 : vector<1x128xf32> to vector<32x128xf32>
    %7 = arith.mulf %4, %6 : vector<32x128xf32>
    %c0_4 = arith.constant 0 : index
    %c0_5 = arith.constant 0 : index
    %8 = vector.load %arg5[%c0_4, %c0_5] : memref<1x128xf32, #tpu.memory_space<vmem>>, vector<1x128xf32>
    %9 = vector.broadcast %8 : vector<1x128xf32> to vector<32x128xf32>
    %10 = arith.addf %7, %9 : vector<32x128xf32>
    %cst = arith.constant 0.000000e+00 : f32
    %11 = vector.broadcast %cst : f32 to vector<32x128xf32>
    %12 = arith.maximumf %10, %11 : vector<32x128xf32>
    %c0_6 = arith.constant 0 : index
    %c0_7 = arith.constant 0 : index
    %13 = vector.load %arg9[%c0_6, %c0_7] : memref<32x128xf32, #tpu.memory_space<vmem>>, vector<32x128xf32>
    %14 = arith.truncf %12 : vector<32x128xf32> to vector<32x128xbf16>
    %c0_8 = arith.constant 0 : index
    %c0_9 = arith.constant 0 : index
    %15 = vector.load %arg6[%c0_8, %c0_9] : memref<128x128xbf16, #tpu.memory_space<vmem>>, vector<128x128xbf16>
    %cst_10 = arith.constant dense<0.000000e+00> : vector<32x128xf32>
    %16 = tpu.matmul %14, %15, %cst_10 {dimension_numbers = #tpu.dot_dimension_numbers<[1], [0], [0], [1], [0, 0, 1, 1], [], []>} : vector<32x128xbf16>, vector<128x128xbf16>, vector<32x128xf32> -> vector<32x128xf32>
    %17 = arith.addf %13, %16 : vector<32x128xf32>
    %c0_11 = arith.constant 0 : index
    %c0_12 = arith.constant 0 : index
    %18 = vector.load %arg9[%c0_11, %c0_12] : memref<32x128xf32, #tpu.memory_space<vmem>>, vector<32x128xf32>
    tpu.vector_store %arg9[%c0_11, %c0_12], %17 {strides = array<i32>} : memref<32x128xf32, #tpu.memory_space<vmem>>, vector<32x128xf32>,
    %c0_i32_13 = arith.constant 0 : i32
    %19 = arith.cmpi eq, %arg2, %c0_i32_13 : i32
    %20 = arith.extui %19 : i1 to i32
    %c0_i32_14 = arith.constant 0 : i32
    %21 = arith.cmpi ne, %20, %c0_i32_14 : i32
    scf.if %21 {
      %c0_15 = arith.constant 0 : index
      %c0_16 = arith.constant 0 : index
      %22 = vector.load %arg9[%c0_15, %c0_16] : memref<32x128xf32, #tpu.memory_space<vmem>>, vector<32x128xf32>
      %c0_17 = arith.constant 0 : index
      %c0_18 = arith.constant 0 : index
      %23 = vector.load %arg7[%c0_17, %c0_18] : memref<1x128xf32, #tpu.memory_space<vmem>>, vector<1x128xf32>
      %24 = vector.broadcast %23 : vector<1x128xf32> to vector<32x128xf32>
      %25 = arith.addf %22, %24 : vector<32x128xf32>
      %26 = arith.truncf %25 : vector<32x128xf32> to vector<32x128xbf16>
      %c0_19 = arith.constant 0 : index
      %c0_20 = arith.constant 0 : index
      %27 = vector.load %arg8[%c0_19, %c0_20] : memref<32x128xbf16, #tpu.memory_space<vmem>>, vector<32x128xbf16>
      tpu.vector_store %arg8[%c0_19, %c0_20], %26 {strides = array<i32>} : memref<32x128xbf16, #tpu.memory_space<vmem>>, vector<32x128xbf16>,
    } else {
    }
    return
  }
  func.func @transform_0(%arg0: i32, %arg1: i32, %arg2: i32) -> (i32, i32) {
    %c0_i32 = arith.constant 0 : i32
    return %arg0, %arg2 : i32, i32
  }
  func.func @transform_1(%arg0: i32, %arg1: i32, %arg2: i32) -> (i32, i32) {
    %c0_i32 = arith.constant 0 : i32
    %c0_i32_0 = arith.constant 0 : i32
    return %c0_i32, %arg2 : i32, i32
  }
  func.func @transform_2(%arg0: i32, %arg1: i32, %arg2: i32) -> (i32, i32) {
    %c0_i32 = arith.constant 0 : i32
    %c0_i32_0 = arith.constant 0 : i32
    return %c0_i32, %arg2 : i32, i32
  }
  func.func @transform_3(%arg0: i32, %arg1: i32, %arg2: i32) -> (i32, i32) {
    %c0_i32 = arith.constant 0 : i32
    return %arg2, %arg1 : i32, i32
  }
  func.func @transform_4(%arg0: i32, %arg1: i32, %arg2: i32) -> (i32, i32) {
    %c0_i32 = arith.constant 0 : i32
    %c0_i32_0 = arith.constant 0 : i32
    return %c0_i32, %arg1 : i32, i32
  }
  func.func @transform_5(%arg0: i32, %arg1: i32, %arg2: i32) -> (i32, i32) {
    %c0_i32 = arith.constant 0 : i32
    return %arg0, %arg1 : i32, i32
  }
}

module attributes {stable_mosaic.version = 11 : i64} {
  func.func @_matmul_kernel_plain(%arg0: i32, %arg1: i32, %arg2: i32, %arg3: memref<32x128xbf16, #tpu.memory_space<vmem>>, %arg4: memref<128x128xbf16, #tpu.memory_space<vmem>>, %arg5: memref<1x128xf32, #tpu.memory_space<vmem>>, %arg6: memref<32x128xf32, #tpu.memory_space<vmem>>, %arg7: memref<32x128xf32, #tpu.memory_space<vmem>>) attributes {dimension_semantics = [#tpu.dimension_semantics<parallel>, #tpu.dimension_semantics<parallel>, #tpu.dimension_semantics<arbitrary>], iteration_bounds = array<i64: 1, 1, 1>, scalar_prefetch = 0 : i64, scratch_operands = 1 : i64, tpu.core_type = #tpu.core_type<tc>, window_params = [{transform_indices = @transform_0, window_bounds = array<i64: 32, 128>}, {transform_indices = @transform_1, window_bounds = array<i64: 128, 128>}, {transform_indices = @transform_2, window_bounds = array<i64: 1, 128>}, {transform_indices = @transform_3, window_bounds = array<i64: 32, 128>}]} {
    %c0_i32 = arith.constant 0 : i32
    %0 = arith.cmpi eq, %arg2, %c0_i32 : i32
    %1 = arith.extui %0 : i1 to i32
    %c0_i32_0 = arith.constant 0 : i32
    %2 = arith.cmpi ne, %1, %c0_i32_0 : i32
    scf.if %2 {
      %cst_10 = arith.constant 0.000000e+00 : f32
      %12 = vector.broadcast %cst_10 : f32 to vector<32x128xf32>
      %c0_11 = arith.constant 0 : index
      %c0_12 = arith.constant 0 : index
      %13 = vector.load %arg7[%c0_11, %c0_12] : memref<32x128xf32, #tpu.memory_space<vmem>>, vector<32x128xf32>
      tpu.vector_store %arg7[%c0_11, %c0_12], %12 {strides = array<i32>} : memref<32x128xf32, #tpu.memory_space<vmem>>, vector<32x128xf32>,
    } else {
    }
    %c0 = arith.constant 0 : index
    %c0_1 = arith.constant 0 : index
    %3 = vector.load %arg7[%c0, %c0_1] : memref<32x128xf32, #tpu.memory_space<vmem>>, vector<32x128xf32>
    %c0_2 = arith.constant 0 : index
    %c0_3 = arith.constant 0 : index
    %4 = vector.load %arg3[%c0_2, %c0_3] : memref<32x128xbf16, #tpu.memory_space<vmem>>, vector<32x128xbf16>
    %c0_4 = arith.constant 0 : index
    %c0_5 = arith.constant 0 : index
    %5 = vector.load %arg4[%c0_4, %c0_5] : memref<128x128xbf16, #tpu.memory_space<vmem>>, vector<128x128xbf16>
    %cst = arith.constant dense<0.000000e+00> : vector<32x128xf32>
    %6 = tpu.matmul %4, %5, %cst {dimension_numbers = #tpu.dot_dimension_numbers<[1], [0], [0], [1], [0, 0, 1, 1], [], []>} : vector<32x128xbf16>, vector<128x128xbf16>, vector<32x128xf32> -> vector<32x128xf32>
    %7 = arith.addf %3, %6 : vector<32x128xf32>
    %c0_6 = arith.constant 0 : index
    %c0_7 = arith.constant 0 : index
    %8 = vector.load %arg7[%c0_6, %c0_7] : memref<32x128xf32, #tpu.memory_space<vmem>>, vector<32x128xf32>
    tpu.vector_store %arg7[%c0_6, %c0_7], %7 {strides = array<i32>} : memref<32x128xf32, #tpu.memory_space<vmem>>, vector<32x128xf32>,
    %c0_i32_8 = arith.constant 0 : i32
    %9 = arith.cmpi eq, %arg2, %c0_i32_8 : i32
    %10 = arith.extui %9 : i1 to i32
    %c0_i32_9 = arith.constant 0 : i32
    %11 = arith.cmpi ne, %10, %c0_i32_9 : i32
    scf.if %11 {
      %c0_10 = arith.constant 0 : index
      %c0_11 = arith.constant 0 : index
      %12 = vector.load %arg7[%c0_10, %c0_11] : memref<32x128xf32, #tpu.memory_space<vmem>>, vector<32x128xf32>
      %c0_12 = arith.constant 0 : index
      %c0_13 = arith.constant 0 : index
      %13 = vector.load %arg5[%c0_12, %c0_13] : memref<1x128xf32, #tpu.memory_space<vmem>>, vector<1x128xf32>
      %14 = vector.broadcast %13 : vector<1x128xf32> to vector<32x128xf32>
      %15 = arith.addf %12, %14 : vector<32x128xf32>
      %c0_14 = arith.constant 0 : index
      %c0_15 = arith.constant 0 : index
      %16 = vector.load %arg6[%c0_14, %c0_15] : memref<32x128xf32, #tpu.memory_space<vmem>>, vector<32x128xf32>
      tpu.vector_store %arg6[%c0_14, %c0_15], %15 {strides = array<i32>} : memref<32x128xf32, #tpu.memory_space<vmem>>, vector<32x128xf32>,
    } else {
    }
    return
  }
  func.func @transform_0(%arg0: i32, %arg1: i32, %arg2: i32) -> (i32, i32) {
    %c0_i32 = arith.constant 0 : i32
    return %arg0, %arg2 : i32, i32
  }
  func.func @transform_1(%arg0: i32, %arg1: i32, %arg2: i32) -> (i32, i32) {
    %c0_i32 = arith.constant 0 : i32
    return %arg2, %arg1 : i32, i32
  }
  func.func @transform_2(%arg0: i32, %arg1: i32, %arg2: i32) -> (i32, i32) {
    %c0_i32 = arith.constant 0 : i32
    %c0_i32_0 = arith.constant 0 : i32
    return %c0_i32, %arg1 : i32, i32
  }
  func.func @transform_3(%arg0: i32, %arg1: i32, %arg2: i32) -> (i32, i32) {
    %c0_i32 = arith.constant 0 : i32
    return %arg0, %arg1 : i32, i32
  }
}

module attributes {stable_mosaic.version = 11 : i64} {
  func.func @_bn_relu_kernel(%arg0: i32, %arg1: memref<32x128xbf16, #tpu.memory_space<vmem>>, %arg2: memref<1x128xf32, #tpu.memory_space<vmem>>, %arg3: memref<1x128xf32, #tpu.memory_space<vmem>>, %arg4: memref<32x128xf32, #tpu.memory_space<vmem>>) attributes {dimension_semantics = [#tpu.dimension_semantics<parallel>], iteration_bounds = array<i64: 1>, scalar_prefetch = 0 : i64, scratch_operands = 0 : i64, tpu.core_type = #tpu.core_type<tc>, window_params = [{transform_indices = @transform_0, window_bounds = array<i64: 32, 128>}, {pipeline_mode = #tpu.pipeline_mode<synchronous>, transform_indices = @transform_1, window_bounds = array<i64: 1, 128>}, {pipeline_mode = #tpu.pipeline_mode<synchronous>, transform_indices = @transform_2, window_bounds = array<i64: 1, 128>}, {transform_indices = @transform_3, window_bounds = array<i64: 32, 128>}]} {
    %c0 = arith.constant 0 : index
    %c0_0 = arith.constant 0 : index
    %0 = vector.load %arg1[%c0, %c0_0] : memref<32x128xbf16, #tpu.memory_space<vmem>>, vector<32x128xbf16>
    %1 = arith.extf %0 : vector<32x128xbf16> to vector<32x128xf32>
    %c0_1 = arith.constant 0 : index
    %c0_2 = arith.constant 0 : index
    %2 = vector.load %arg2[%c0_1, %c0_2] : memref<1x128xf32, #tpu.memory_space<vmem>>, vector<1x128xf32>
    %3 = vector.broadcast %2 : vector<1x128xf32> to vector<32x128xf32>
    %4 = arith.mulf %1, %3 : vector<32x128xf32>
    %c0_3 = arith.constant 0 : index
    %c0_4 = arith.constant 0 : index
    %5 = vector.load %arg3[%c0_3, %c0_4] : memref<1x128xf32, #tpu.memory_space<vmem>>, vector<1x128xf32>
    %6 = vector.broadcast %5 : vector<1x128xf32> to vector<32x128xf32>
    %7 = arith.addf %4, %6 : vector<32x128xf32>
    %cst = arith.constant 0.000000e+00 : f32
    %8 = vector.broadcast %cst : f32 to vector<32x128xf32>
    %9 = arith.maximumf %7, %8 : vector<32x128xf32>
    %c0_5 = arith.constant 0 : index
    %c0_6 = arith.constant 0 : index
    %10 = vector.load %arg4[%c0_5, %c0_6] : memref<32x128xf32, #tpu.memory_space<vmem>>, vector<32x128xf32>
    tpu.vector_store %arg4[%c0_5, %c0_6], %9 {strides = array<i32>} : memref<32x128xf32, #tpu.memory_space<vmem>>, vector<32x128xf32>,
    return
  }
  func.func @transform_0(%arg0: i32) -> (i32, i32) {
    %c0_i32 = arith.constant 0 : i32
    %c0_i32_0 = arith.constant 0 : i32
    return %arg0, %c0_i32 : i32, i32
  }
  func.func @transform_1(%arg0: i32) -> (i32, i32) {
    %c0_i32 = arith.constant 0 : i32
    %c0_i32_0 = arith.constant 0 : i32
    %c0_i32_1 = arith.constant 0 : i32
    return %c0_i32, %c0_i32_0 : i32, i32
  }
  func.func @transform_2(%arg0: i32) -> (i32, i32) {
    %c0_i32 = arith.constant 0 : i32
    %c0_i32_0 = arith.constant 0 : i32
    %c0_i32_1 = arith.constant 0 : i32
    return %c0_i32, %c0_i32_0 : i32, i32
  }
  func.func @transform_3(%arg0: i32) -> (i32, i32) {
    %c0_i32 = arith.constant 0 : i32
    %c0_i32_0 = arith.constant 0 : i32
    return %arg0, %c0_i32 : i32, i32
  }
}

</mosaic_0001>

<llo_original>
// kernel: densenet_forward.183
$region0: #{densenet_forward.183}
  #allocation0 [shape = 'u32[]', space=smem, size = 0x4, offset = 0x4, fixed_abs, tag = 'smem constant byte address 0x4 - core index']
  #allocation1 [shape = 'u32[144,128]{1,0:T(1,128)}', space=vmem, size = 0x12000, scoped, tag = 'internal scratch']
  #allocation2 [shape = 'f32[128,128]{1,0:T(8,128)}', space=vmem, size = 0x10000, scoped, tag = 'scratch operand']
  %s0 = inlined_call_operand.vmem [shape: bf16[128,128], index: 0, kind: input, shape index: {}]
  %s1 = inlined_call_operand.vmem [shape: f32[1,128], index: 1, kind: input, shape index: {}]
  %s2 = inlined_call_operand.vmem [shape: f32[1,128], index: 2, kind: input, shape index: {}]
  %s3 = inlined_call_operand.vmem [shape: bf16[128,128], index: 3, kind: input, shape index: {}]
  %s4 = inlined_call_operand.vmem [shape: f32[1,128], index: 4, kind: input, shape index: {}]
  %s5 = inlined_call_operand.vmem [shape: f32[128,128], index: 5, kind: output, shape index: {}]
  %s6 = sld [smem:[#allocation0]]
  $region38: #{densenet_forward.183} parent=0
    _
  %s8 = ssub.s32 1, %s6
  %s9 = scalar_select 0, %s8, %s6
  // Predicated region
  $region2: #{densenet_forward.183} parent=0 // pred_check
    _
  $region3: #{densenet_forward.183} parent=0 // pred_check_branch
    %11 = sbr.rel (0) target = $region5
  $region4: #{densenet_forward.183} parent=0 // pred_region
    _
  $region5: #{densenet_forward.183} parent=0 // pred_fallthru
    _
  // Predicated region
  $region6: #{densenet_forward.183} parent=0 // pred_check
    _
  $region7: #{densenet_forward.183} parent=0 // pred_check_branch
    %13 = sbr.rel (0) target = $region9
  $region8: #{densenet_forward.183} parent=0 // pred_region
    _
  $region9: #{densenet_forward.183} parent=0 // pred_fallthru
    _
  // Predicated region
  $region10: #{densenet_forward.183} parent=0 // pred_check
    _
  $region11: #{densenet_forward.183} parent=0 // pred_check_branch
    %15 = sbr.rel (0) target = $region13
  $region12: #{densenet_forward.183} parent=0 // pred_region
    _
  $region13: #{densenet_forward.183} parent=0 // pred_fallthru
    _
  // Predicated region
  $region14: #{densenet_forward.183} parent=0 // pred_check
    _
  $region15: #{densenet_forward.183} parent=0 // pred_check_branch
    %17 = sbr.rel (0) target = $region17
  $region16: #{densenet_forward.183} parent=0 // pred_region
    _
  $region17: #{densenet_forward.183} parent=0 // pred_fallthru
    _
  // Predicated region
  $region18: #{densenet_forward.183} parent=0 // pred_check
    _
  $region19: #{densenet_forward.183} parent=0 // pred_check_branch
    %19 = sbr.rel (0) target = $region21
  $region20: #{densenet_forward.183} parent=0 // pred_region
    _
  $region21: #{densenet_forward.183} parent=0 // pred_fallthru
    _
  %p21 = scmp.eq.s32.totalorder 0, 0
  // Predicated region
  $region22: #{densenet_forward.183} parent=0 // pred_check
    %p22 = pneg %p21
  $region23: #{densenet_forward.183} parent=0 // pred_check_branch
    %24 = sbr.rel (%p22) target = $region25
  $region24: #{densenet_forward.183} parent=0 // pred_region
    %25 = vst [vmem:[#allocation2] sm:$0xff] 0.0
    %26 = vst [vmem:[#allocation2 + $0x8] sm:$0xff] 0.0
    %27 = vst [vmem:[#allocation2 + $0x10] sm:$0xff] 0.0
    %28 = vst [vmem:[#allocation2 + $0x18] sm:$0xff] 0.0
    %29 = vst [vmem:[#allocation2 + $0x20] sm:$0xff] 0.0
    %30 = vst [vmem:[#allocation2 + $0x28] sm:$0xff] 0.0
    %31 = vst [vmem:[#allocation2 + $0x30] sm:$0xff] 0.0
    %32 = vst [vmem:[#allocation2 + $0x38] sm:$0xff] 0.0
    %33 = vst [vmem:[#allocation2 + $0x40] sm:$0xff] 0.0
    %34 = vst [vmem:[#allocation2 + $0x48] sm:$0xff] 0.0
    %35 = vst [vmem:[#allocation2 + $0x50] sm:$0xff] 0.0
    %36 = vst [vmem:[#allocation2 + $0x58] sm:$0xff] 0.0
    %37 = vst [vmem:[#allocation2 + $0x60] sm:$0xff] 0.0
    %38 = vst [vmem:[#allocation2 + $0x68] sm:$0xff] 0.0
    %39 = vst [vmem:[#allocation2 + $0x70] sm:$0xff] 0.0
    %40 = vst [vmem:[#allocation2 + $0x78] sm:$0xff] 0.0
  $region25: #{densenet_forward.183} parent=0 // pred_fallthru
    _
  %v41 = vld [vmem:[%s0] sm:$0xf]
  %v42 = vld [vmem:[%s0 + $0x4] sm:$0xf]
  %v43 = vld [vmem:[%s0 + $0x8] sm:$0xf]
  %v44 = vld [vmem:[%s0 + $0xc] sm:$0xf]
  %v45 = vld [vmem:[%s0 + $0x10] sm:$0xf]
  %v46 = vld [vmem:[%s0 + $0x14] sm:$0xf]
  %v47 = vld [vmem:[%s0 + $0x18] sm:$0xf]
  %v48 = vld [vmem:[%s0 + $0x1c] sm:$0xf]
  %v49 = vld [vmem:[%s0 + $0x20] sm:$0xf]
  %v50 = vld [vmem:[%s0 + $0x24] sm:$0xf]
  %v51 = vld [vmem:[%s0 + $0x28] sm:$0xf]
  %v52 = vld [vmem:[%s0 + $0x2c] sm:$0xf]
  %v53 = vld [vmem:[%s0 + $0x30] sm:$0xf]
  %v54 = vld [vmem:[%s0 + $0x34] sm:$0xf]
  %v55 = vld [vmem:[%s0 + $0x38] sm:$0xf]
  %v56 = vld [vmem:[%s0 + $0x3c] sm:$0xf]
  %v57 = vunpack.c.l.bf16 %v41
  %v58 = vunpack.c.l.bf16 %v42
  %v59 = vunpack.c.l.bf16 %v43
  %v60 = vunpack.c.l.bf16 %v44
  %v61 = vunpack.c.l.bf16 %v45
  %v62 = vunpack.c.l.bf16 %v46
  %v63 = vunpack.c.l.bf16 %v47
  %v64 = vunpack.c.l.bf16 %v48
  %v65 = vunpack.c.l.bf16 %v49
  %v66 = vunpack.c.l.bf16 %v50
  %v67 = vunpack.c.l.bf16 %v51
  %v68 = vunpack.c.l.bf16 %v52
  %v69 = vunpack.c.l.bf16 %v53
  %v70 = vunpack.c.l.bf16 %v54
  %v71 = vunpack.c.l.bf16 %v55
  %v72 = vunpack.c.l.bf16 %v56
  %v73 = vld [vmem:[%s1] sm:$0x1]
  %v75 = vlaneseq
  %v76 = vshrl.u32 %v75, 7
  %v77 = vsub.s32 0, %v76
  %v78 = vrot.slane %v73, %v77
  %v80 = vmul.f32 %v57, %v78
  %v81 = vmul.f32 %v58, %v78
  %v82 = vmul.f32 %v59, %v78
  %v83 = vmul.f32 %v60, %v78
  %v84 = vmul.f32 %v61, %v78
  %v85 = vmul.f32 %v62, %v78
  %v86 = vmul.f32 %v63, %v78
  %v87 = vmul.f32 %v64, %v78
  %v88 = vmul.f32 %v65, %v78
  %v89 = vmul.f32 %v66, %v78
  %v90 = vmul.f32 %v67, %v78
  %v91 = vmul.f32 %v68, %v78
  %v92 = vmul.f32 %v69, %v78
  %v93 = vmul.f32 %v70, %v78
  %v94 = vmul.f32 %v71, %v78
  %v95 = vmul.f32 %v72, %v78
  %v96 = vld [vmem:[%s2] sm:$0x1]
  %v98 = vlaneseq
  %v99 = vshrl.u32 %v98, 7
  %v100 = vsub.s32 0, %v99
  %v101 = vrot.slane %v96, %v100
  %v103 = vadd.f32 %v80, %v101
  %v104 = vadd.f32 %v81, %v101
  %v105 = vadd.f32 %v82, %v101
  %v106 = vadd.f32 %v83, %v101
  %v107 = vadd.f32 %v84, %v101
  %v108 = vadd.f32 %v85, %v101
  %v109 = vadd.f32 %v86, %v101
  %v110 = vadd.f32 %v87, %v101
  %v111 = vadd.f32 %v88, %v101
  %v112 = vadd.f32 %v89, %v101
  %v113 = vadd.f32 %v90, %v101
  %v114 = vadd.f32 %v91, %v101
  %v115 = vadd.f32 %v92, %v101
  %v116 = vadd.f32 %v93, %v101
  %v117 = vadd.f32 %v94, %v101
  %v118 = vadd.f32 %v95, %v101
  %v119 = vmax.f32 %v103, 0.0
  %v120 = vmax.f32 %v104, 0.0
  %v121 = vmax.f32 %v105, 0.0
  %v122 = vmax.f32 %v106, 0.0
  %v123 = vmax.f32 %v107, 0.0
  %v124 = vmax.f32 %v108, 0.0
  %v125 = vmax.f32 %v109, 0.0
  %v126 = vmax.f32 %v110, 0.0
  %v127 = vmax.f32 %v111, 0.0
  %v128 = vmax.f32 %v112, 0.0
  %v129 = vmax.f32 %v113, 0.0
  %v130 = vmax.f32 %v114, 0.0
  %v131 = vmax.f32 %v115, 0.0
  %v132 = vmax.f32 %v116, 0.0
  %v133 = vmax.f32 %v117, 0.0
  %v134 = vmax.f32 %v118, 0.0
  %v135 = vld [vmem:[#allocation2] sm:$0xff]
  %v136 = vld [vmem:[#allocation2 + $0x8] sm:$0xff]
  %v137 = vld [vmem:[#allocation2 + $0x10] sm:$0xff]
  %v138 = vld [vmem:[#allocation2 + $0x18] sm:$0xff]
  %v139 = vld [vmem:[#allocation2 + $0x20] sm:$0xff]
  %v140 = vld [vmem:[#allocation2 + $0x28] sm:$0xff]
  %v141 = vld [vmem:[#allocation2 + $0x30] sm:$0xff]
  %v142 = vld [vmem:[#allocation2 + $0x38] sm:$0xff]
  %v143 = vld [vmem:[#allocation2 + $0x40] sm:$0xff]
  %v144 = vld [vmem:[#allocation2 + $0x48] sm:$0xff]
  %v145 = vld [vmem:[#allocation2 + $0x50] sm:$0xff]
  %v146 = vld [vmem:[#allocation2 + $0x58] sm:$0xff]
  %v147 = vld [vmem:[#allocation2 + $0x60] sm:$0xff]
  %v148 = vld [vmem:[#allocation2 + $0x68] sm:$0xff]
  %v149 = vld [vmem:[#allocation2 + $0x70] sm:$0xff]
  %v150 = vld [vmem:[#allocation2 + $0x78] sm:$0xff]
  %v151 = vpack.c.bf16 %v120, %v119
  %v152 = vpack.c.bf16 %v122, %v121
  %v153 = vpack.c.bf16 %v124, %v123
  %v154 = vpack.c.bf16 %v126, %v125
  %v155 = vpack.c.bf16 %v128, %v127
  %v156 = vpack.c.bf16 %v130, %v129
  %v157 = vpack.c.bf16 %v132, %v131
  %v158 = vpack.c.bf16 %v134, %v133
  %v159 = vld [vmem:[%s3] sm:$0xf]
  %v160 = vld [vmem:[%s3 + $0x4] sm:$0xf]
  %v161 = vld [vmem:[%s3 + $0x8] sm:$0xf]
  %v162 = vld [vmem:[%s3 + $0xc] sm:$0xf]
  %v163 = vld [vmem:[%s3 + $0x10] sm:$0xf]
  %v164 = vld [vmem:[%s3 + $0x14] sm:$0xf]
  %v165 = vld [vmem:[%s3 + $0x18] sm:$0xf]
  %v166 = vld [vmem:[%s3 + $0x1c] sm:$0xf]
  %v167 = vld [vmem:[%s3 + $0x20] sm:$0xf]
  %v168 = vld [vmem:[%s3 + $0x24] sm:$0xf]
  %v169 = vld [vmem:[%s3 + $0x28] sm:$0xf]
  %v170 = vld [vmem:[%s3 + $0x2c] sm:$0xf]
  %v171 = vld [vmem:[%s3 + $0x30] sm:$0xf]
  %v172 = vld [vmem:[%s3 + $0x34] sm:$0xf]
  %v173 = vld [vmem:[%s3 + $0x38] sm:$0xf]
  %v174 = vld [vmem:[%s3 + $0x3c] sm:$0xf]
  %v191 = vunpack.c.l.b16 %v159
  %v192 = vunpack.c.l.b16 %v160
  %v193 = vunpack.c.l.b16 %v161
  %v194 = vunpack.c.l.b16 %v162
  %v195 = vunpack.c.l.b16 %v163
  %v196 = vunpack.c.l.b16 %v164
  %v197 = vunpack.c.l.b16 %v165
  %v198 = vunpack.c.l.b16 %v166
  %v199 = vunpack.c.l.b16 %v167
  %v200 = vunpack.c.l.b16 %v168
  %v201 = vunpack.c.l.b16 %v169
  %v202 = vunpack.c.l.b16 %v170
  %v203 = vunpack.c.l.b16 %v171
  %v204 = vunpack.c.l.b16 %v172
  %v205 = vunpack.c.l.b16 %v173
  %v206 = vunpack.c.l.b16 %v174
  %v207 = vpack.c.b16 %v192, %v191
  %v208 = vpack.c.b16 %v194, %v193
  %v209 = vpack.c.b16 %v196, %v195
  %v210 = vpack.c.b16 %v198, %v197
  %v211 = vpack.c.b16 %v200, %v199
  %v212 = vpack.c.b16 %v202, %v201
  %v213 = vpack.c.b16 %v204, %v203
  %v214 = vpack.c.b16 %v206, %v205
  %223 = vmatprep.subr.bf16.mxu0 0
  %224 = vmatpush1.bf16.msra.mxu0 %v207
  %225 = vmatprep.subr.bf16.mxu0 0
  %226 = vmatpush1.bf16.msra.mxu0 %v208
  %227 = vmatprep.subr.bf16.mxu0 0
  %228 = vmatpush1.bf16.msra.mxu0 %v209
  %229 = vmatprep.subr.bf16.mxu0 0
  %230 = vmatpush1.bf16.msra.mxu0 %v210
  %231 = vmatprep.subr.bf16.mxu0 0
  %232 = vmatpush1.bf16.msra.mxu0 %v211
  %233 = vmatprep.subr.bf16.mxu0 0
  %234 = vmatpush1.bf16.msra.mxu0 %v212
  %235 = vmatprep.subr.bf16.mxu0 0
  %236 = vmatpush1.bf16.msra.mxu0 %v213
  %237 = vmatprep.subr.bf16.mxu0 0
  %238 = vmatpush1.bf16.msra.mxu0 %v214
  %239 = vmatprep.subr.bf16.mxu0 0
  %240 = vmatpush1.bf16.msra.mxu0 0
  %241 = vmatprep.subr.bf16.mxu0 0
  %242 = vmatpush1.bf16.msra.mxu0 0
  %243 = vmatprep.subr.bf16.mxu0 0
  %244 = vmatpush1.bf16.msra.mxu0 0
  %245 = vmatprep.subr.bf16.mxu0 0
  %246 = vmatpush1.bf16.msra.mxu0 0
  %247 = vmatprep.subr.bf16.mxu0 0
  %248 = vmatpush1.bf16.msra.mxu0 0
  %249 = vmatprep.subr.bf16.mxu0 0
  %250 = vmatpush1.bf16.msra.mxu0 0
  %251 = vmatprep.subr.bf16.mxu0 0
  %252 = vmatpush1.bf16.msra.mxu0 0
  %253 = vmatprep.subr.bf16.mxu0 0
  %254 = vmatpush1.bf16.msra.mxu0 0
  %255 = vmatprep.mubr.bf16.mxu0 0
  %256 = vmatmul.mubr.bf16.gmra.mrb[0].mxu0 %v151
  %v257 = vpop.f32.mrb[0].mxu0
  %v258 = vadd.f32 0.0, %v257
  %v259 = vpop.f32.mrb[0].mxu0
  %v260 = vpop.f32.mrb[0].mxu0
  %v261 = vadd.f32 0.0, %v260
  %v262 = vpop.f32.mrb[0].mxu0
  %263 = vmatprep.mubr.bf16.mxu0 0
  %264 = vmatmul.mubr.bf16.gmra.mrb[0].mxu0 %v152
  %v265 = vpop.f32.mrb[0].mxu0
  %v266 = vadd.f32 0.0, %v265
  %v267 = vpop.f32.mrb[0].mxu0
  %v268 = vpop.f32.mrb[0].mxu0
  %v269 = vadd.f32 0.0, %v268
  %v270 = vpop.f32.mrb[0].mxu0
  %271 = vmatprep.mubr.bf16.mxu0 0
  %272 = vmatmul.mubr.bf16.gmra.mrb[0].mxu0 %v153
  %v273 = vpop.f32.mrb[0].mxu0
  %v274 = vadd.f32 0.0, %v273
  %v275 = vpop.f32.mrb[0].mxu0
  %v276 = vpop.f32.mrb[0].mxu0
  %v277 = vadd.f32 0.0, %v276
  %v278 = vpop.f32.mrb[0].mxu0
  %279 = vmatprep.mubr.bf16.mxu0 0
  %280 = vmatmul.mubr.bf16.gmra.mrb[0].mxu0 %v154
  %v281 = vpop.f32.mrb[0].mxu0
  %v282 = vadd.f32 0.0, %v281
  %v283 = vpop.f32.mrb[0].mxu0
  %v284 = vpop.f32.mrb[0].mxu0
  %v285 = vadd.f32 0.0, %v284
  %v286 = vpop.f32.mrb[0].mxu0
  %287 = vmatprep.mubr.bf16.mxu0 0
  %288 = vmatmul.mubr.bf16.gmra.mrb[0].mxu0 %v155
  %v289 = vpop.f32.mrb[0].mxu0
  %v290 = vadd.f32 0.0, %v289
  %v291 = vpop.f32.mrb[0].mxu0
  %v292 = vpop.f32.mrb[0].mxu0
  %v293 = vadd.f32 0.0, %v292
  %v294 = vpop.f32.mrb[0].mxu0
  %295 = vmatprep.mubr.bf16.mxu0 0
  %296 = vmatmul.mubr.bf16.gmra.mrb[0].mxu0 %v156
  %v297 = vpop.f32.mrb[0].mxu0
  %v298 = vadd.f32 0.0, %v297
  %v299 = vpop.f32.mrb[0].mxu0
  %v300 = vpop.f32.mrb[0].mxu0
  %v301 = vadd.f32 0.0, %v300
  %v302 = vpop.f32.mrb[0].mxu0
  %303 = vmatprep.mubr.bf16.mxu0 0
  %304 = vmatmul.mubr.bf16.gmra.mrb[0].mxu0 %v157
  %v305 = vpop.f32.mrb[0].mxu0
  %v306 = vadd.f32 0.0, %v305
  %v307 = vpop.f32.mrb[0].mxu0
  %v308 = vpop.f32.mrb[0].mxu0
  %v309 = vadd.f32 0.0, %v308
  %v310 = vpop.f32.mrb[0].mxu0
  %311 = vmatprep.mubr.bf16.mxu0 0
  %312 = vmatmul.mubr.bf16.gmra.mrb[0].mxu0 %v158
  %v313 = vpop.f32.mrb[0].mxu0
  %v314 = vadd.f32 0.0, %v313
  %v315 = vpop.f32.mrb[0].mxu0
  %v316 = vpop.f32.mrb[0].mxu0
  %v317 = vadd.f32 0.0, %v316
  %v318 = vpop.f32.mrb[0].mxu0
  %319 = vdwg.mxu0
  %v320 = vadd.f32 %v135, %v258
  %v321 = vadd.f32 %v136, %v261
  %v322 = vadd.f32 %v137, %v266
  %v323 = vadd.f32 %v138, %v269
  %v324 = vadd.f32 %v139, %v274
  %v325 = vadd.f32 %v140, %v277
  %v326 = vadd.f32 %v141, %v282
  %v327 = vadd.f32 %v142, %v285
  %v328 = vadd.f32 %v143, %v290
  %v329 = vadd.f32 %v144, %v293
  %v330 = vadd.f32 %v145, %v298
  %v331 = vadd.f32 %v146, %v301
  %v332 = vadd.f32 %v147, %v306
  %v333 = vadd.f32 %v148, %v309
  %v334 = vadd.f32 %v149, %v314
  %v335 = vadd.f32 %v150, %v317
  %336 = vst [vmem:[#allocation2] sm:$0xff] %v320
  %337 = vst [vmem:[#allocation2 + $0x8] sm:$0xff] %v321
  %338 = vst [vmem:[#allocation2 + $0x10] sm:$0xff] %v322
  %339 = vst [vmem:[#allocation2 + $0x18] sm:$0xff] %v323
  %340 = vst [vmem:[#allocation2 + $0x20] sm:$0xff] %v324
  %341 = vst [vmem:[#allocation2 + $0x28] sm:$0xff] %v325
  %342 = vst [vmem:[#allocation2 + $0x30] sm:$0xff] %v326
  %343 = vst [vmem:[#allocation2 + $0x38] sm:$0xff] %v327
  %344 = vst [vmem:[#allocation2 + $0x40] sm:$0xff] %v328
  %345 = vst [vmem:[#allocation2 + $0x48] sm:$0xff] %v329
  %346 = vst [vmem:[#allocation2 + $0x50] sm:$0xff] %v330
  %347 = vst [vmem:[#allocation2 + $0x58] sm:$0xff] %v331
  %348 = vst [vmem:[#allocation2 + $0x60] sm:$0xff] %v332
  %349 = vst [vmem:[#allocation2 + $0x68] sm:$0xff] %v333
  %350 = vst [vmem:[#allocation2 + $0x70] sm:$0xff] %v334
  %351 = vst [vmem:[#allocation2 + $0x78] sm:$0xff] %v335
  // Predicated region
  $region26: #{densenet_forward.183} parent=0 // pred_check
    %p352 = pneg %p21
  $region27: #{densenet_forward.183} parent=0 // pred_check_branch
    %354 = sbr.rel (%p352) target = $region29
  $region28: #{densenet_forward.183} parent=0 // pred_region
    %v355 = vld [vmem:[#allocation2] sm:$0xff]
    %v356 = vld [vmem:[#allocation2 + $0x8] sm:$0xff]
    %v357 = vld [vmem:[#allocation2 + $0x10] sm:$0xff]
    %v358 = vld [vmem:[#allocation2 + $0x18] sm:$0xff]
    %v359 = vld [vmem:[#allocation2 + $0x20] sm:$0xff]
    %v360 = vld [vmem:[#allocation2 + $0x28] sm:$0xff]
    %v361 = vld [vmem:[#allocation2 + $0x30] sm:$0xff]
    %v362 = vld [vmem:[#allocation2 + $0x38] sm:$0xff]
    %v363 = vld [vmem:[#allocation2 + $0x40] sm:$0xff]
    %v364 = vld [vmem:[#allocation2 + $0x48] sm:$0xff]
    %v365 = vld [vmem:[#allocation2 + $0x50] sm:$0xff]
    %v366 = vld [vmem:[#allocation2 + $0x58] sm:$0xff]
    %v367 = vld [vmem:[#allocation2 + $0x60] sm:$0xff]
    %v368 = vld [vmem:[#allocation2 + $0x68] sm:$0xff]
    %v369 = vld [vmem:[#allocation2 + $0x70] sm:$0xff]
    %v370 = vld [vmem:[#allocation2 + $0x78] sm:$0xff]
    %v371 = vld [vmem:[%s4] sm:$0x1]
    %v373 = vlaneseq
    %v374 = vshrl.u32 %v373, 7
    %v375 = vsub.s32 0, %v374
    %v376 = vrot.slane %v371, %v375
    %v378 = vadd.f32 %v355, %v376
    %v379 = vadd.f32 %v356, %v376
    %v380 = vadd.f32 %v357, %v376
    %v381 = vadd.f32 %v358, %v376
    %v382 = vadd.f32 %v359, %v376
    %v383 = vadd.f32 %v360, %v376
    %v384 = vadd.f32 %v361, %v376
    %v385 = vadd.f32 %v362, %v376
    %v386 = vadd.f32 %v363, %v376
    %v387 = vadd.f32 %v364, %v376
    %v388 = vadd.f32 %v365, %v376
    %v389 = vadd.f32 %v366, %v376
    %v390 = vadd.f32 %v367, %v376
    %v391 = vadd.f32 %v368, %v376
    %v392 = vadd.f32 %v369, %v376
    %v393 = vadd.f32 %v370, %v376
    %394 = vst [vmem:[%s5] sm:$0xff] %v378
    %395 = vst [vmem:[%s5 + $0x8] sm:$0xff] %v379
    %396 = vst [vmem:[%s5 + $0x10] sm:$0xff] %v380
    %397 = vst [vmem:[%s5 + $0x18] sm:$0xff] %v381
    %398 = vst [vmem:[%s5 + $0x20] sm:$0xff] %v382
    %399 = vst [vmem:[%s5 + $0x28] sm:$0xff] %v383
    %400 = vst [vmem:[%s5 + $0x30] sm:$0xff] %v384
    %401 = vst [vmem:[%s5 + $0x38] sm:$0xff] %v385
    %402 = vst [vmem:[%s5 + $0x40] sm:$0xff] %v386
    %403 = vst [vmem:[%s5 + $0x48] sm:$0xff] %v387
    %404 = vst [vmem:[%s5 + $0x50] sm:$0xff] %v388
    %405 = vst [vmem:[%s5 + $0x58] sm:$0xff] %v389
    %406 = vst [vmem:[%s5 + $0x60] sm:$0xff] %v390
    %407 = vst [vmem:[%s5 + $0x68] sm:$0xff] %v391
    %408 = vst [vmem:[%s5 + $0x70] sm:$0xff] %v392
    %409 = vst [vmem:[%s5 + $0x78] sm:$0xff] %v393
  $region29: #{densenet_forward.183} parent=0 // pred_fallthru
    _
  // Predicated region
  $region30: #{densenet_forward.183} parent=0 // pred_check
    _
  $region31: #{densenet_forward.183} parent=0 // pred_check_branch
    %411 = sbr.rel (0) target = $region33
  $region32: #{densenet_forward.183} parent=0 // pred_region
    _
  $region33: #{densenet_forward.183} parent=0 // pred_fallthru
    _
  // Predicated region
  $region34: #{densenet_forward.183} parent=0 // pred_check
    _
  $region35: #{densenet_forward.183} parent=0 // pred_check_branch
    %413 = sbr.rel (0) target = $region37
  $region36: #{densenet_forward.183} parent=0 // pred_region
    _
  $region37: #{densenet_forward.183} parent=0 // pred_fallthru
    _

// kernel: densenet_forward.182
$region0: #{densenet_forward.182}
  #allocation0 [shape = 'u32[]', space=smem, size = 0x4, offset = 0x4, fixed_abs, tag = 'smem constant byte address 0x4 - core index']
  #allocation1 [shape = 'u32[144,128]{1,0:T(1,128)}', space=vmem, size = 0x12000, scoped, tag = 'internal scratch']
  %s0 = inlined_call_operand.vmem [shape: f32[512,128], index: 0, kind: input, shape index: {}]
  %s1 = inlined_call_operand.vmem [shape: f32[1,128], index: 1, kind: input, shape index: {}]
  %s2 = inlined_call_operand.vmem [shape: f32[1,128], index: 2, kind: input, shape index: {}]
  %s3 = inlined_call_operand.vmem [shape: f32[512,128], index: 3, kind: output, shape index: {}]
  %s4 = sld [smem:[#allocation0]]
  $region45: #{densenet_forward.182} parent=0
    _
  %s6 = ssub.s32 1, %s4
  %s7 = scalar_select 0, %s6, %s4
  loop: start=0, step=1, limit=4
  $region2: #{densenet_forward.182} parent=0 // loop_pre_header
    _
  $region3: #{densenet_forward.182} parent=0 // loop_header
    %s9 = sphi 0, %s13
    %p10 = scmp.ge.s32.totalorder %s9, 4
    %s19 = sphi 0, %s21
    %s22 = sphi 0, %s19
    %s23 = sphi 0, %s22
    %s39 = sphi 0, %s23
    %s43 = sphi 0, %s43
    %s45 = sphi 0, %s43
    %s46 = sphi 0, %s45
    %s60 = sphi 0, %s46
    %s64 = sphi 0, %s64
    %s66 = sphi 0, %s64
    %s67 = sphi 0, %s66
    %s81 = sphi 0, %s67
    %s87 = sphi 0, %s89
    %s90 = sphi 0, %s87
    %s91 = sphi 0, %s90
    %s107 = sphi 0, %s91
  $region4: #{densenet_forward.182} parent=0 // loop_header_branch
    %12 = sbr.rel (%p10) target = $region8
  $region5: #{densenet_forward.182} parent=0 // loop_body
    %s14 = ssub.s32 %s9, 1
    %s15 = ssub.s32 %s9, 2
    %s16 = sadd.s32 %s9, 1
    %s17 = ssub.s32 %s9, %s16
    %p18 = scmp.eq.s32.totalorder %s17, 0
    %s20 = sadd.s32 %s19, 1
    %s21 = scalar_select %p18, %s19, %s20
    %p24 = pneg %p18
    %p25 = scmp.eq.s32.totalorder %s9, 1
    %p26 = por %p24, %p25
    %p27 = scmp.ne.s32.totalorder %s19, %s22
    %p28 = scmp.eq.s32.totalorder %s9, 0
    %p29 = por %p27, %p28
    %p30 = scmp.ne.s32.totalorder %s19, %s22
    %p31 = scmp.eq.s32.totalorder %s14, 1
    %p32 = por %p30, %p31
    %p33 = scmp.ne.s32.totalorder %s22, %s23
    %p34 = scmp.eq.s32.totalorder %s14, 0
    %p35 = por %p33, %p34
    %p36 = scmp.ne.s32.totalorder %s22, %s23
    %p37 = scmp.eq.s32.totalorder %s15, 1
    %p38 = por %p36, %p37
    %p40 = scmp.ne.s32.totalorder %s23, %s39
    %p41 = scmp.eq.s32.totalorder %s15, 0
    %p42 = por %p40, %p41
    %s44 = sadd.s32 %s43, 1
    %p47 = scmp.eq.s32.totalorder %s9, 1
    %p48 = scmp.ne.s32.totalorder %s43, %s45
    %p49 = scmp.eq.s32.totalorder %s9, 0
    %p50 = por %p48, %p49
    %p51 = scmp.ne.s32.totalorder %s43, %s45
    %p52 = scmp.eq.s32.totalorder %s14, 1
    %p53 = por %p51, %p52
    %p54 = scmp.ne.s32.totalorder %s45, %s46
    %p55 = scmp.eq.s32.totalorder %s14, 0
    %p56 = por %p54, %p55
    %p57 = scmp.ne.s32.totalorder %s45, %s46
    %p58 = scmp.eq.s32.totalorder %s15, 1
    %p59 = por %p57, %p58
    %p61 = scmp.ne.s32.totalorder %s46, %s60
    %p62 = scmp.eq.s32.totalorder %s15, 0
    %p63 = por %p61, %p62
    %s65 = sadd.s32 %s64, 1
    %p68 = scmp.eq.s32.totalorder %s9, 1
    %p69 = scmp.ne.s32.totalorder %s64, %s66
    %p70 = scmp.eq.s32.totalorder %s9, 0
    %p71 = por %p69, %p70
    %p72 = scmp.ne.s32.totalorder %s64, %s66
    %p73 = scmp.eq.s32.totalorder %s14, 1
    %p74 = por %p72, %p73
    %p75 = scmp.ne.s32.totalorder %s66, %s67
    %p76 = scmp.eq.s32.totalorder %s14, 0
    %p77 = por %p75, %p76
    %p78 = scmp.ne.s32.totalorder %s66, %s67
    %p79 = scmp.eq.s32.totalorder %s15, 1
    %p80 = por %p78, %p79
    %p82 = scmp.ne.s32.totalorder %s67, %s81
    %p83 = scmp.eq.s32.totalorder %s15, 0
    %p84 = por %p82, %p83
    %s85 = ssub.s32 %s9, %s16
    %p86 = scmp.eq.s32.totalorder %s85, 0
    %s88 = sadd.s32 %s87, 1
    %s89 = scalar_select %p86, %s87, %s88
    %p92 = pneg %p86
    %p93 = scmp.eq.s32.totalorder %s9, 1
    %p94 = por %p92, %p93
    %p95 = scmp.ne.s32.totalorder %s87, %s90
    %p96 = scmp.eq.s32.totalorder %s9, 0
    %p97 = por %p95, %p96
    %p98 = scmp.ne.s32.totalorder %s87, %s90
    %p99 = scmp.eq.s32.totalorder %s14, 1
    %p100 = por %p98, %p99
    %p101 = scmp.ne.s32.totalorder %s90, %s91
    %p102 = scmp.eq.s32.totalorder %s14, 0
    %p103 = por %p101, %p102
    %p104 = scmp.ne.s32.totalorder %s90, %s91
    %p105 = scmp.eq.s32.totalorder %s15, 1
    %p106 = por %p104, %p105
    %p108 = scmp.ne.s32.totalorder %s91, %s107
    %p109 = scmp.eq.s32.totalorder %s15, 0
    %p110 = por %p108, %p109
    %p111 = scmp.le.s32.totalorder 1, %s9
    %p112 = scmp.lt.s32.totalorder %s9, 3
    %p113 = pnand %p111, %p112
    %p114 = pneg %p113
    // Predicated region
    $region9: #{densenet_forward.182} parent=5 // pred_check
      _
    $region10: #{densenet_forward.182} parent=5 // pred_check_branch
      %116 = sbr.rel (%p113) target = $region12
    $region11: #{densenet_forward.182} parent=5 // pred_region
      %s117 = ssub.s32 %s9, 1
      // Predicated region
      $region13: #{densenet_forward.182} parent=11 // pred_check
        %p118 = pneg %p56
      $region14: #{densenet_forward.182} parent=11 // pred_check_branch
        %120 = sbr.rel (%p118) target = $region16
      $region15: #{densenet_forward.182} parent=11 // pred_region
        _
      $region16: #{densenet_forward.182} parent=11 // pred_fallthru
        _
      // Predicated region
      $region17: #{densenet_forward.182} parent=11 // pred_check
        %p121 = pneg %p77
      $region18: #{densenet_forward.182} parent=11 // pred_check_branch
        %123 = sbr.rel (%p121) target = $region20
      $region19: #{densenet_forward.182} parent=11 // pred_region
        _
      $region20: #{densenet_forward.182} parent=11 // pred_fallthru
        _
    $region12: #{densenet_forward.182} parent=5 // pred_fallthru
      _
    %p124 = scmp.lt.s32.totalorder %s9, 2
    // Predicated region
    $region21: #{densenet_forward.182} parent=5 // pred_check
      %p125 = pneg %p124
    $region22: #{densenet_forward.182} parent=5 // pred_check_branch
      %127 = sbr.rel (%p125) target = $region24
    $region23: #{densenet_forward.182} parent=5 // pred_region
      // Predicated region
      $region25: #{densenet_forward.182} parent=23 // pred_check
        %p128 = pneg %p29
      $region26: #{densenet_forward.182} parent=23 // pred_check_branch
        %130 = sbr.rel (%p128) target = $region28
      $region27: #{densenet_forward.182} parent=23 // pred_region
        %s131 = smul.u32 32, %s9
        %p132 = scmp.lt.s32.totalorder %s131, 63
        %s133 = scalar_select %p132, %s131, 63
        %s134 = smul.addr %s133, 8
        %s135 = scalar_lea.vmem %s0, %s134
        %s136 = smul.u32 32, %s9
      $region28: #{densenet_forward.182} parent=23 // pred_fallthru
        _
    $region24: #{densenet_forward.182} parent=5 // pred_fallthru
      _
    %p137 = scmp.le.s32.totalorder 1, %s9
    %p138 = scmp.lt.s32.totalorder %s9, 3
    %p139 = pnand %p137, %p138
    %p140 = pneg %p139
    // Predicated region
    $region29: #{densenet_forward.182} parent=5 // pred_check
      _
    $region30: #{densenet_forward.182} parent=5 // pred_check_branch
      %142 = sbr.rel (%p139) target = $region32
    $region31: #{densenet_forward.182} parent=5 // pred_region
      %s143 = ssub.s32 %s9, 1
      %s144 = smul.u32 32, %s14
      %p145 = scmp.lt.s32.totalorder %s144, 63
      %s146 = scalar_select %p145, %s144, 63
      %s147 = smul.addr %s146, 8
      %s148 = scalar_lea.vmem %s0, %s147
      %p149 = pneg %p35
      %p150 = pneg %p32
      %p151 = pneg %p56
      %p152 = pneg %p53
      %p153 = pneg %p77
      %p154 = pneg %p74
      %p155 = pneg %p103
      %p156 = pneg %p100
      %s157 = smul.u32 32, %s14
      %p158 = scmp.lt.s32.totalorder %s157, 63
      %s159 = scalar_select %p158, %s157, 63
      %s160 = smul.addr %s159, 8
      %s161 = scalar_lea.vmem %s3, %s160
      %s162 = smul.u32 32, %s14
      %p163 = scmp.lt.s32.totalorder %s162, 63
      %s164 = scalar_select %p163, %s162, 63
      %s165 = smul.addr %s164, 8
      %s166 = scalar_lea.vmem %s0, %s165
      %s167 = smul.u32 32, %s14
      %s168 = smul.u32 32, %s14
      %p169 = scmp.lt.s32.totalorder %s168, 63
      %s170 = scalar_select %p169, %s168, 63
      %s171 = smul.addr %s170, 8
      %s172 = scalar_lea.vmem %s3, %s171
      %s173 = smul.u32 32, %s14
      %v174 = vld [vmem:[%s166] sm:$0xff]
      %v175 = vld [vmem:[%s166 + $0x8] sm:$0xff]
      %v176 = vld [vmem:[%s166 + $0x10] sm:$0xff]
      %v177 = vld [vmem:[%s166 + $0x18] sm:$0xff]
      %v178 = vld [vmem:[%s166 + $0x20] sm:$0xff]
      %v179 = vld [vmem:[%s166 + $0x28] sm:$0xff]
      %v180 = vld [vmem:[%s166 + $0x30] sm:$0xff]
      %v181 = vld [vmem:[%s166 + $0x38] sm:$0xff]
      %v182 = vld [vmem:[%s166 + $0x40] sm:$0xff]
      %v183 = vld [vmem:[%s166 + $0x48] sm:$0xff]
      %v184 = vld [vmem:[%s166 + $0x50] sm:$0xff]
      %v185 = vld [vmem:[%s166 + $0x58] sm:$0xff]
      %v186 = vld [vmem:[%s166 + $0x60] sm:$0xff]
      %v187 = vld [vmem:[%s166 + $0x68] sm:$0xff]
      %v188 = vld [vmem:[%s166 + $0x70] sm:$0xff]
      %v189 = vld [vmem:[%s166 + $0x78] sm:$0xff]
      %v190 = vld [vmem:[%s166 + $0x80] sm:$0xff]
      %v191 = vld [vmem:[%s166 + $0x88] sm:$0xff]
      %v192 = vld [vmem:[%s166 + $0x90] sm:$0xff]
      %v193 = vld [vmem:[%s166 + $0x98] sm:$0xff]
      %v194 = vld [vmem:[%s166 + $0xa0] sm:$0xff]
      %v195 = vld [vmem:[%s166 + $0xa8] sm:$0xff]
      %v196 = vld [vmem:[%s166 + $0xb0] sm:$0xff]
      %v197 = vld [vmem:[%s166 + $0xb8] sm:$0xff]
      %v198 = vld [vmem:[%s166 + $0xc0] sm:$0xff]
      %v199 = vld [vmem:[%s166 + $0xc8] sm:$0xff]
      %v200 = vld [vmem:[%s166 + $0xd0] sm:$0xff]
      %v201 = vld [vmem:[%s166 + $0xd8] sm:$0xff]
      %v202 = vld [vmem:[%s166 + $0xe0] sm:$0xff]
      %v203 = vld [vmem:[%s166 + $0xe8] sm:$0xff]
      %v204 = vld [vmem:[%s166 + $0xf0] sm:$0xff]
      %v205 = vld [vmem:[%s166 + $0xf8] sm:$0xff]
      %v206 = vld [vmem:[%s1] sm:$0x1]
      %v208 = vlaneseq
      %v209 = vshrl.u32 %v208, 7
      %v210 = vsub.s32 0, %v209
      %v211 = vrot.slane %v206, %v210
      %v213 = vmul.f32 %v174, %v211
      %v214 = vmul.f32 %v175, %v211
      %v215 = vmul.f32 %v176, %v211
      %v216 = vmul.f32 %v177, %v211
      %v217 = vmul.f32 %v178, %v211
      %v218 = vmul.f32 %v179, %v211
      %v219 = vmul.f32 %v180, %v211
      %v220 = vmul.f32 %v181, %v211
      %v221 = vmul.f32 %v182, %v211
      %v222 = vmul.f32 %v183, %v211
      %v223 = vmul.f32 %v184, %v211
      %v224 = vmul.f32 %v185, %v211
      %v225 = vmul.f32 %v186, %v211
      %v226 = vmul.f32 %v187, %v211
      %v227 = vmul.f32 %v188, %v211
      %v228 = vmul.f32 %v189, %v211
      %v229 = vmul.f32 %v190, %v211
      %v230 = vmul.f32 %v191, %v211
      %v231 = vmul.f32 %v192, %v211
      %v232 = vmul.f32 %v193, %v211
      %v233 = vmul.f32 %v194, %v211
      %v234 = vmul.f32 %v195, %v211
      %v235 = vmul.f32 %v196, %v211
      %v236 = vmul.f32 %v197, %v211
      %v237 = vmul.f32 %v198, %v211
      %v238 = vmul.f32 %v199, %v211
      %v239 = vmul.f32 %v200, %v211
      %v240 = vmul.f32 %v201, %v211
      %v241 = vmul.f32 %v202, %v211
      %v242 = vmul.f32 %v203, %v211
      %v243 = vmul.f32 %v204, %v211
      %v244 = vmul.f32 %v205, %v211
      %v245 = vld [vmem:[%s2] sm:$0x1]
      %v247 = vlaneseq
      %v248 = vshrl.u32 %v247, 7
      %v249 = vsub.s32 0, %v248
      %v250 = vrot.slane %v245, %v249
      %v252 = vadd.f32 %v213, %v250
      %v253 = vadd.f32 %v214, %v250
      %v254 = vadd.f32 %v215, %v250
      %v255 = vadd.f32 %v216, %v250
      %v256 = vadd.f32 %v217, %v250
      %v257 = vadd.f32 %v218, %v250
      %v258 = vadd.f32 %v219, %v250
      %v259 = vadd.f32 %v220, %v250
      %v260 = vadd.f32 %v221, %v250
      %v261 = vadd.f32 %v222, %v250
      %v262 = vadd.f32 %v223, %v250
      %v263 = vadd.f32 %v224, %v250
      %v264 = vadd.f32 %v225, %v250
      %v265 = vadd.f32 %v226, %v250
      %v266 = vadd.f32 %v227, %v250
      %v267 = vadd.f32 %v228, %v250
      %v268 = vadd.f32 %v229, %v250
      %v269 = vadd.f32 %v230, %v250
      %v270 = vadd.f32 %v231, %v250
      %v271 = vadd.f32 %v232, %v250
      %v272 = vadd.f32 %v233, %v250
      %v273 = vadd.f32 %v234, %v250
      %v274 = vadd.f32 %v235, %v250
      %v275 = vadd.f32 %v236, %v250
      %v276 = vadd.f32 %v237, %v250
      %v277 = vadd.f32 %v238, %v250
      %v278 = vadd.f32 %v239, %v250
      %v279 = vadd.f32 %v240, %v250
      %v280 = vadd.f32 %v241, %v250
      %v281 = vadd.f32 %v242, %v250
      %v282 = vadd.f32 %v243, %v250
      %v283 = vadd.f32 %v244, %v250
      %v284 = vmax.f32 %v252, 0.0
      %v285 = vmax.f32 %v253, 0.0
      %v286 = vmax.f32 %v254, 0.0
      %v287 = vmax.f32 %v255, 0.0
      %v288 = vmax.f32 %v256, 0.0
      %v289 = vmax.f32 %v257, 0.0
      %v290 = vmax.f32 %v258, 0.0
      %v291 = vmax.f32 %v259, 0.0
      %v292 = vmax.f32 %v260, 0.0
      %v293 = vmax.f32 %v261, 0.0
      %v294 = vmax.f32 %v262, 0.0
      %v295 = vmax.f32 %v263, 0.0
      %v296 = vmax.f32 %v264, 0.0
      %v297 = vmax.f32 %v265, 0.0
      %v298 = vmax.f32 %v266, 0.0
      %v299 = vmax.f32 %v267, 0.0
      %v300 = vmax.f32 %v268, 0.0
      %v301 = vmax.f32 %v269, 0.0
      %v302 = vmax.f32 %v270, 0.0
      %v303 = vmax.f32 %v271, 0.0
      %v304 = vmax.f32 %v272, 0.0
      %v305 = vmax.f32 %v273, 0.0
      %v306 = vmax.f32 %v274, 0.0
      %v307 = vmax.f32 %v275, 0.0
      %v308 = vmax.f32 %v276, 0.0
      %v309 = vmax.f32 %v277, 0.0
      %v310 = vmax.f32 %v278, 0.0
      %v311 = vmax.f32 %v279, 0.0
      %v312 = vmax.f32 %v280, 0.0
      %v313 = vmax.f32 %v281, 0.0
      %v314 = vmax.f32 %v282, 0.0
      %v315 = vmax.f32 %v283, 0.0
      %316 = vst [vmem:[%s172] sm:$0xff] %v284
      %317 = vst [vmem:[%s172 + $0x8] sm:$0xff] %v285
      %318 = vst [vmem:[%s172 + $0x10] sm:$0xff] %v286
      %319 = vst [vmem:[%s172 + $0x18] sm:$0xff] %v287
      %320 = vst [vmem:[%s172 + $0x20] sm:$0xff] %v288
      %321 = vst [vmem:[%s172 + $0x28] sm:$0xff] %v289
      %322 = vst [vmem:[%s172 + $0x30] sm:$0xff] %v290
      %323 = vst [vmem:[%s172 + $0x38] sm:$0xff] %v291
      %324 = vst [vmem:[%s172 + $0x40] sm:$0xff] %v292
      %325 = vst [vmem:[%s172 + $0x48] sm:$0xff] %v293
      %326 = vst [vmem:[%s172 + $0x50] sm:$0xff] %v294
      %327 = vst [vmem:[%s172 + $0x58] sm:$0xff] %v295
      %328 = vst [vmem:[%s172 + $0x60] sm:$0xff] %v296
      %329 = vst [vmem:[%s172 + $0x68] sm:$0xff] %v297
      %330 = vst [vmem:[%s172 + $0x70] sm:$0xff] %v298
      %331 = vst [vmem:[%s172 + $0x78] sm:$0xff] %v299
      %332 = vst [vmem:[%s172 + $0x80] sm:$0xff] %v300
      %333 = vst [vmem:[%s172 + $0x88] sm:$0xff] %v301
      %334 = vst [vmem:[%s172 + $0x90] sm:$0xff] %v302
      %335 = vst [vmem:[%s172 + $0x98] sm:$0xff] %v303
      %336 = vst [vmem:[%s172 + $0xa0] sm:$0xff] %v304
      %337 = vst [vmem:[%s172 + $0xa8] sm:$0xff] %v305
      %338 = vst [vmem:[%s172 + $0xb0] sm:$0xff] %v306
      %339 = vst [vmem:[%s172 + $0xb8] sm:$0xff] %v307
      %340 = vst [vmem:[%s172 + $0xc0] sm:$0xff] %v308
      %341 = vst [vmem:[%s172 + $0xc8] sm:$0xff] %v309
      %342 = vst [vmem:[%s172 + $0xd0] sm:$0xff] %v310
      %343 = vst [vmem:[%s172 + $0xd8] sm:$0xff] %v311
      %344 = vst [vmem:[%s172 + $0xe0] sm:$0xff] %v312
      %345 = vst [vmem:[%s172 + $0xe8] sm:$0xff] %v313
      %346 = vst [vmem:[%s172 + $0xf0] sm:$0xff] %v314
      %347 = vst [vmem:[%s172 + $0xf8] sm:$0xff] %v315
      %s348 = smul.u32 32, %s14
      %p349 = scmp.lt.s32.totalorder %s348, 63
      %s350 = scalar_select %p349, %s348, 63
      %s351 = smul.addr %s350, 8
      %s352 = scalar_lea.vmem %s3, %s351
      // Predicated region
      $region33: #{densenet_forward.182} parent=31 // pred_check
        %p353 = pneg %p100
      $region34: #{densenet_forward.182} parent=31 // pred_check_branch
        %355 = sbr.rel (%p353) target = $region36
      $region35: #{densenet_forward.182} parent=31 // pred_region
        %s356 = smul.u32 32, %s14
      $region36: #{densenet_forward.182} parent=31 // pred_fallthru
        _
    $region32: #{densenet_forward.182} parent=5 // pred_fallthru
      _
    %p357 = scmp.le.s32.totalorder 2, %s9
    // Predicated region
    $region37: #{densenet_forward.182} parent=5 // pred_check
      %p358 = pneg %p357
    $region38: #{densenet_forward.182} parent=5 // pred_check_branch
      %360 = sbr.rel (%p358) target = $region40
    $region39: #{densenet_forward.182} parent=5 // pred_region
      %s361 = ssub.s32 %s9, 2
      // Predicated region
      $region41: #{densenet_forward.182} parent=39 // pred_check
        %p362 = pneg %p106
      $region42: #{densenet_forward.182} parent=39 // pred_check_branch
        %364 = sbr.rel (%p362) target = $region44
      $region43: #{densenet_forward.182} parent=39 // pred_region
        %s365 = smul.u32 32, %s15
        %p366 = scmp.lt.s32.totalorder %s365, 63
        %s367 = scalar_select %p366, %s365, 63
        %s368 = smul.addr %s367, 8
        %s369 = scalar_lea.vmem %s3, %s368
      $region44: #{densenet_forward.182} parent=39 // pred_fallthru
        _
    $region40: #{densenet_forward.182} parent=5 // pred_fallthru
      _
  $region6: #{densenet_forward.182} parent=0 // loop_footer
    %s13 = sadd.s32 1, %s9
  $region7: #{densenet_forward.182} parent=0 // loop_footer_branch
    %8 = sbr.rel target = $region3
  $region8: #{densenet_forward.182} parent=0 // loop_exit
    _

// kernel: densenet_forward.181
$region0: #{densenet_forward.181}
  #allocation0 [shape = 'u32[]', space=smem, size = 0x4, offset = 0x4, fixed_abs, tag = 'smem constant byte address 0x4 - core index']
  #allocation1 [shape = 'u32[144,128]{1,0:T(1,128)}', space=vmem, size = 0x12000, scoped, tag = 'internal scratch']
  #allocation2 [shape = 'f32[256,128]{1,0:T(8,128)}', space=vmem, size = 0x20000, scoped, tag = 'scratch operand']
  %s0 = inlined_call_operand.vmem [shape: bf16[512,256], index: 0, kind: input, shape index: {}]
  %s1 = inlined_call_operand.vmem [shape: bf16[256,128], index: 1, kind: input, shape index: {}]
  %s2 = inlined_call_operand.vmem [shape: f32[1,128], index: 2, kind: input, shape index: {}]
  %s3 = inlined_call_operand.vmem [shape: f32[512,128], index: 3, kind: output, shape index: {}]
  %s4 = sld [smem:[#allocation0]]
  $region53: #{densenet_forward.181} parent=0
    _
  %s6 = ssub.s32 1, %s4
  %s7 = scalar_select 0, %s6, %s4
  loop: start=0, step=1, limit=4
  $region2: #{densenet_forward.181} parent=0 // loop_pre_header
    _
  $region3: #{densenet_forward.181} parent=0 // loop_header
    %s9 = sphi 0, %s13
    %p10 = scmp.ge.s32.totalorder %s9, 4
    %s16 = sphi 0, %s35
    %s17 = sphi 0, %s31
    %s18 = sphi 0, %s27
    %s19 = sphi 0, %s16
    %s20 = sphi 0, %s17
    %s21 = sphi 0, %s18
    %s22 = sphi 0, %s19
    %s23 = sphi 0, %s20
    %s24 = sphi 0, %s21
    %s40 = sphi 0, %s42
    %s43 = sphi 0, %s40
    %s44 = sphi 0, %s43
    %s60 = sphi 0, %s44
    %s68 = sphi 0, %s70
    %s71 = sphi 0, %s68
    %s72 = sphi 0, %s71
    %s88 = sphi 0, %s72
    %s94 = sphi 0, %s96
    %s97 = sphi 0, %s94
    %s98 = sphi 0, %s97
    %s114 = sphi 0, %s98
    %s122 = sphi 0, %s124
    %s125 = sphi 0, %s122
    %s126 = sphi 0, %s125
    %s142 = sphi 0, %s126
  $region4: #{densenet_forward.181} parent=0 // loop_header_branch
    %12 = sbr.rel (%p10) target = $region8
  $region5: #{densenet_forward.181} parent=0 // loop_body
    %s14 = ssub.s32 %s9, 1
    %s15 = ssub.s32 %s9, 2
    %s25 = sadd.s32 1, %s18
    %p26 = scmp.ge.s32.totalorder %s25, 1
    %s27 = scalar_select %p26, 0, %s25
    %s28 = sadd.s32 1, %s17
    %s29 = scalar_select %p26, %s28, %s17
    %p30 = scmp.ge.s32.totalorder %s29, 1
    %s31 = scalar_select %p30, 0, %s29
    %s32 = sadd.s32 1, %s16
    %s33 = scalar_select %p30, %s32, %s16
    %p34 = scmp.ge.s32.totalorder %s33, 2
    %s35 = scalar_select %p34, 0, %s33
    %s36 = ssub.s32 %s16, %s35
    %s37 = ssub.s32 %s18, %s27
    %s38 = sor.u32 %s36, %s37
    %p39 = scmp.eq.s32.totalorder %s38, 0
    %s41 = sadd.s32 %s40, 1
    %s42 = scalar_select %p39, %s40, %s41
    %p45 = pneg %p39
    %p46 = scmp.eq.s32.totalorder %s9, 1
    %p47 = por %p45, %p46
    %p48 = scmp.ne.s32.totalorder %s40, %s43
    %p49 = scmp.eq.s32.totalorder %s9, 0
    %p50 = por %p48, %p49
    %p51 = scmp.ne.s32.totalorder %s40, %s43
    %p52 = scmp.eq.s32.totalorder %s14, 1
    %p53 = por %p51, %p52
    %p54 = scmp.ne.s32.totalorder %s43, %s44
    %p55 = scmp.eq.s32.totalorder %s14, 0
    %p56 = por %p54, %p55
    %p57 = scmp.ne.s32.totalorder %s43, %s44
    %p58 = scmp.eq.s32.totalorder %s15, 1
    %p59 = por %p57, %p58
    %p61 = scmp.ne.s32.totalorder %s44, %s60
    %p62 = scmp.eq.s32.totalorder %s15, 0
    %p63 = por %p61, %p62
    %s64 = ssub.s32 %s18, %s27
    %s65 = ssub.s32 %s17, %s31
    %s66 = sor.u32 %s64, %s65
    %p67 = scmp.eq.s32.totalorder %s66, 0
    %s69 = sadd.s32 %s68, 1
    %s70 = scalar_select %p67, %s68, %s69
    %p73 = pneg %p67
    %p74 = scmp.eq.s32.totalorder %s9, 1
    %p75 = por %p73, %p74
    %p76 = scmp.ne.s32.totalorder %s68, %s71
    %p77 = scmp.eq.s32.totalorder %s9, 0
    %p78 = por %p76, %p77
    %p79 = scmp.ne.s32.totalorder %s68, %s71
    %p80 = scmp.eq.s32.totalorder %s14, 1
    %p81 = por %p79, %p80
    %p82 = scmp.ne.s32.totalorder %s71, %s72
    %p83 = scmp.eq.s32.totalorder %s14, 0
    %p84 = por %p82, %p83
    %p85 = scmp.ne.s32.totalorder %s71, %s72
    %p86 = scmp.eq.s32.totalorder %s15, 1
    %p87 = por %p85, %p86
    %p89 = scmp.ne.s32.totalorder %s72, %s88
    %p90 = scmp.eq.s32.totalorder %s15, 0
    %p91 = por %p89, %p90
    %s92 = ssub.s32 %s17, %s31
    %p93 = scmp.eq.s32.totalorder %s92, 0
    %s95 = sadd.s32 %s94, 1
    %s96 = scalar_select %p93, %s94, %s95
    %p99 = pneg %p93
    %p100 = scmp.eq.s32.totalorder %s9, 1
    %p101 = por %p99, %p100
    %p102 = scmp.ne.s32.totalorder %s94, %s97
    %p103 = scmp.eq.s32.totalorder %s9, 0
    %p104 = por %p102, %p103
    %p105 = scmp.ne.s32.totalorder %s94, %s97
    %p106 = scmp.eq.s32.totalorder %s14, 1
    %p107 = por %p105, %p106
    %p108 = scmp.ne.s32.totalorder %s97, %s98
    %p109 = scmp.eq.s32.totalorder %s14, 0
    %p110 = por %p108, %p109
    %p111 = scmp.ne.s32.totalorder %s97, %s98
    %p112 = scmp.eq.s32.totalorder %s15, 1
    %p113 = por %p111, %p112
    %p115 = scmp.ne.s32.totalorder %s98, %s114
    %p116 = scmp.eq.s32.totalorder %s15, 0
    %p117 = por %p115, %p116
    %s118 = ssub.s32 %s16, %s35
    %s119 = ssub.s32 %s17, %s31
    %s120 = sor.u32 %s118, %s119
    %p121 = scmp.eq.s32.totalorder %s120, 0
    %s123 = sadd.s32 %s122, 1
    %s124 = scalar_select %p121, %s122, %s123
    %p127 = pneg %p121
    %p128 = scmp.eq.s32.totalorder %s9, 1
    %p129 = por %p127, %p128
    %p130 = scmp.ne.s32.totalorder %s122, %s125
    %p131 = scmp.eq.s32.totalorder %s9, 0
    %p132 = por %p130, %p131
    %p133 = scmp.ne.s32.totalorder %s122, %s125
    %p134 = scmp.eq.s32.totalorder %s14, 1
    %p135 = por %p133, %p134
    %p136 = scmp.ne.s32.totalorder %s125, %s126
    %p137 = scmp.eq.s32.totalorder %s14, 0
    %p138 = por %p136, %p137
    %p139 = scmp.ne.s32.totalorder %s125, %s126
    %p140 = scmp.eq.s32.totalorder %s15, 1
    %p141 = por %p139, %p140
    %p143 = scmp.ne.s32.totalorder %s126, %s142
    %p144 = scmp.eq.s32.totalorder %s15, 0
    %p145 = por %p143, %p144
    %p146 = scmp.le.s32.totalorder 1, %s9
    %p147 = scmp.lt.s32.totalorder %s9, 3
    %p148 = pnand %p146, %p147
    %p149 = pneg %p148
    // Predicated region
    $region9: #{densenet_forward.181} parent=5 // pred_check
      _
    $region10: #{densenet_forward.181} parent=5 // pred_check_branch
      %151 = sbr.rel (%p148) target = $region12
    $region11: #{densenet_forward.181} parent=5 // pred_region
      %s152 = ssub.s32 %s9, 1
      // Predicated region
      $region13: #{densenet_forward.181} parent=11 // pred_check
        %p153 = pneg %p84
      $region14: #{densenet_forward.181} parent=11 // pred_check_branch
        %155 = sbr.rel (%p153) target = $region16
      $region15: #{densenet_forward.181} parent=11 // pred_region
        %s156 = smul.u32 32, %s21
        %p157 = scmp.lt.s32.totalorder %s156, 31
        %s158 = scalar_select %p157, %s156, 31
        %p159 = scmp.lt.s32.totalorder %s20, 0
        %s160 = scalar_select %p159, %s20, 0
        %s161 = sadd.s32 %s160, %s158
        %s162 = smul.addr %s161, 4
        %s163 = scalar_lea.vmem %s1, %s162
        %s164 = smul.u32 32, %s21
      $region16: #{densenet_forward.181} parent=11 // pred_fallthru
        _
      // Predicated region
      $region17: #{densenet_forward.181} parent=11 // pred_check
        %p165 = pneg %p110
      $region18: #{densenet_forward.181} parent=11 // pred_check_branch
        %167 = sbr.rel (%p165) target = $region20
      $region19: #{densenet_forward.181} parent=11 // pred_region
        %p168 = scmp.lt.s32.totalorder %s20, 0
        %s169 = scalar_select %p168, %s20, 0
        %s170 = scalar_lea.vmem %s2, %s169
      $region20: #{densenet_forward.181} parent=11 // pred_fallthru
        _
    $region12: #{densenet_forward.181} parent=5 // pred_fallthru
      _
    %p171 = scmp.lt.s32.totalorder %s9, 2
    // Predicated region
    $region21: #{densenet_forward.181} parent=5 // pred_check
      %p172 = pneg %p171
    $region22: #{densenet_forward.181} parent=5 // pred_check_branch
      %174 = sbr.rel (%p172) target = $region24
    $region23: #{densenet_forward.181} parent=5 // pred_region
      // Predicated region
      $region25: #{densenet_forward.181} parent=23 // pred_check
        %p175 = pneg %p50
      $region26: #{densenet_forward.181} parent=23 // pred_check_branch
        %177 = sbr.rel (%p175) target = $region28
      $region27: #{densenet_forward.181} parent=23 // pred_region
        %s178 = smul.u32 32, %s16
        %s179 = smul.u32 2, %s18
        %p180 = scmp.lt.s32.totalorder %s178, 63
        %s181 = scalar_select %p180, %s178, 63
        %p182 = scmp.lt.s32.totalorder %s179, 1
        %s183 = scalar_select %p182, %s179, 1
        %s184 = smul.addr %s181, 2
        %s185 = sadd.s32 %s183, %s184
        %s186 = smul.addr %s185, 4
        %s187 = scalar_lea.vmem %s0, %s186
        %s188 = smul.u32 32, %s16
        %s189 = smul.u32 2, %s18
      $region28: #{densenet_forward.181} parent=23 // pred_fallthru
        _
    $region24: #{densenet_forward.181} parent=5 // pred_fallthru
      _
    %p190 = scmp.le.s32.totalorder 1, %s9
    %p191 = scmp.lt.s32.totalorder %s9, 3
    %p192 = pnand %p190, %p191
    %p193 = pneg %p192
    // Predicated region
    $region29: #{densenet_forward.181} parent=5 // pred_check
      _
    $region30: #{densenet_forward.181} parent=5 // pred_check_branch
      %195 = sbr.rel (%p192) target = $region32
    $region31: #{densenet_forward.181} parent=5 // pred_region
      %s196 = ssub.s32 %s9, 1
      %s197 = smul.u32 32, %s19
      %s198 = smul.u32 2, %s21
      %p199 = scmp.lt.s32.totalorder %s197, 63
      %s200 = scalar_select %p199, %s197, 63
      %p201 = scmp.lt.s32.totalorder %s198, 1
      %s202 = scalar_select %p201, %s198, 1
      %s203 = smul.addr %s200, 2
      %s204 = sadd.s32 %s202, %s203
      %s205 = smul.addr %s204, 4
      %s206 = scalar_lea.vmem %s0, %s205
      %p207 = pneg %p56
      %p208 = pneg %p53
      %s209 = smul.u32 32, %s21
      %p210 = scmp.lt.s32.totalorder %s209, 31
      %s211 = scalar_select %p210, %s209, 31
      %p212 = scmp.lt.s32.totalorder %s20, 0
      %s213 = scalar_select %p212, %s20, 0
      %s214 = sadd.s32 %s213, %s211
      %s215 = smul.addr %s214, 4
      %s216 = scalar_lea.vmem %s1, %s215
      %p217 = pneg %p84
      %p218 = pneg %p81
      %p219 = scmp.lt.s32.totalorder %s20, 0
      %s220 = scalar_select %p219, %s20, 0
      %s221 = scalar_lea.vmem %s2, %s220
      %p222 = pneg %p110
      %p223 = pneg %p107
      %p224 = pneg %p138
      %p225 = pneg %p135
      %s226 = smul.u32 32, %s19
      %p227 = scmp.lt.s32.totalorder %s226, 63
      %s228 = scalar_select %p227, %s226, 63
      %p229 = scmp.lt.s32.totalorder %s20, 0
      %s230 = scalar_select %p229, %s20, 0
      %s231 = sadd.s32 %s230, %s228
      %s232 = smul.addr %s231, 8
      %s233 = scalar_lea.vmem %s3, %s232
      %s234 = smul.u32 32, %s19
      %s235 = smul.u32 2, %s21
      %p236 = scmp.lt.s32.totalorder %s234, 63
      %s237 = scalar_select %p236, %s234, 63
      %p238 = scmp.lt.s32.totalorder %s235, 1
      %s239 = scalar_select %p238, %s235, 1
      %s240 = smul.addr %s237, 2
      %s241 = sadd.s32 %s239, %s240
      %s242 = smul.addr %s241, 4
      %s243 = scalar_lea.vmem %s0, %s242
      %s244 = smul.u32 32, %s19
      %s245 = smul.u32 2, %s21
      %s246 = smul.u32 32, %s21
      %p247 = scmp.lt.s32.totalorder %s246, 31
      %s248 = scalar_select %p247, %s246, 31
      %p249 = scmp.lt.s32.totalorder %s20, 0
      %s250 = scalar_select %p249, %s20, 0
      %s251 = sadd.s32 %s250, %s248
      %s252 = smul.addr %s251, 4
      %s253 = scalar_lea.vmem %s1, %s252
      %s254 = smul.u32 32, %s21
      %p255 = scmp.lt.s32.totalorder %s20, 0
      %s256 = scalar_select %p255, %s20, 0
      %s257 = scalar_lea.vmem %s2, %s256
      %s258 = smul.u32 32, %s19
      %p259 = scmp.lt.s32.totalorder %s258, 63
      %s260 = scalar_select %p259, %s258, 63
      %p261 = scmp.lt.s32.totalorder %s20, 0
      %s262 = scalar_select %p261, %s20, 0
      %s263 = sadd.s32 %s262, %s260
      %s264 = smul.addr %s263, 8
      %s265 = scalar_lea.vmem %s3, %s264
      %s266 = smul.u32 32, %s19
      %p268 = scmp.eq.s32.totalorder %s21, 0
      // Predicated region
      $region33: #{densenet_forward.181} parent=31 // pred_check
        %p269 = pneg %p268
      $region34: #{densenet_forward.181} parent=31 // pred_check_branch
        %271 = sbr.rel (%p269) target = $region36
      $region35: #{densenet_forward.181} parent=31 // pred_region
        %272 = vst [vmem:[#allocation2] sm:$0xff] 0.0
        %273 = vst [vmem:[#allocation2 + $0x8] sm:$0xff] 0.0
        %274 = vst [vmem:[#allocation2 + $0x10] sm:$0xff] 0.0
        %275 = vst [vmem:[#allocation2 + $0x18] sm:$0xff] 0.0
        %276 = vst [vmem:[#allocation2 + $0x20] sm:$0xff] 0.0
        %277 = vst [vmem:[#allocation2 + $0x28] sm:$0xff] 0.0
        %278 = vst [vmem:[#allocation2 + $0x30] sm:$0xff] 0.0
        %279 = vst [vmem:[#allocation2 + $0x38] sm:$0xff] 0.0
        %280 = vst [vmem:[#allocation2 + $0x40] sm:$0xff] 0.0
        %281 = vst [vmem:[#allocation2 + $0x48] sm:$0xff] 0.0
        %282 = vst [vmem:[#allocation2 + $0x50] sm:$0xff] 0.0
        %283 = vst [vmem:[#allocation2 + $0x58] sm:$0xff] 0.0
        %284 = vst [vmem:[#allocation2 + $0x60] sm:$0xff] 0.0
        %285 = vst [vmem:[#allocation2 + $0x68] sm:$0xff] 0.0
        %286 = vst [vmem:[#allocation2 + $0x70] sm:$0xff] 0.0
        %287 = vst [vmem:[#allocation2 + $0x78] sm:$0xff] 0.0
        %288 = vst [vmem:[#allocation2 + $0x80] sm:$0xff] 0.0
        %289 = vst [vmem:[#allocation2 + $0x88] sm:$0xff] 0.0
        %290 = vst [vmem:[#allocation2 + $0x90] sm:$0xff] 0.0
        %291 = vst [vmem:[#allocation2 + $0x98] sm:$0xff] 0.0
        %292 = vst [vmem:[#allocation2 + $0xa0] sm:$0xff] 0.0
        %293 = vst [vmem:[#allocation2 + $0xa8] sm:$0xff] 0.0
        %294 = vst [vmem:[#allocation2 + $0xb0] sm:$0xff] 0.0
        %295 = vst [vmem:[#allocation2 + $0xb8] sm:$0xff] 0.0
        %296 = vst [vmem:[#allocation2 + $0xc0] sm:$0xff] 0.0
        %297 = vst [vmem:[#allocation2 + $0xc8] sm:$0xff] 0.0
        %298 = vst [vmem:[#allocation2 + $0xd0] sm:$0xff] 0.0
        %299 = vst [vmem:[#allocation2 + $0xd8] sm:$0xff] 0.0
        %300 = vst [vmem:[#allocation2 + $0xe0] sm:$0xff] 0.0
        %301 = vst [vmem:[#allocation2 + $0xe8] sm:$0xff] 0.0
        %302 = vst [vmem:[#allocation2 + $0xf0] sm:$0xff] 0.0
        %303 = vst [vmem:[#allocation2 + $0xf8] sm:$0xff] 0.0
      $region36: #{densenet_forward.181} parent=31 // pred_fallthru
        _
      %v304 = vld [vmem:[#allocation2] sm:$0xff]
      %v305 = vld [vmem:[#allocation2 + $0x8] sm:$0xff]
      %v306 = vld [vmem:[#allocation2 + $0x10] sm:$0xff]
      %v307 = vld [vmem:[#allocation2 + $0x18] sm:$0xff]
      %v308 = vld [vmem:[#allocation2 + $0x20] sm:$0xff]
      %v309 = vld [vmem:[#allocation2 + $0x28] sm:$0xff]
      %v310 = vld [vmem:[#allocation2 + $0x30] sm:$0xff]
      %v311 = vld [vmem:[#allocation2 + $0x38] sm:$0xff]
      %v312 = vld [vmem:[#allocation2 + $0x40] sm:$0xff]
      %v313 = vld [vmem:[#allocation2 + $0x48] sm:$0xff]
      %v314 = vld [vmem:[#allocation2 + $0x50] sm:$0xff]
      %v315 = vld [vmem:[#allocation2 + $0x58] sm:$0xff]
      %v316 = vld [vmem:[#allocation2 + $0x60] sm:$0xff]
      %v317 = vld [vmem:[#allocation2 + $0x68] sm:$0xff]
      %v318 = vld [vmem:[#allocation2 + $0x70] sm:$0xff]
      %v319 = vld [vmem:[#allocation2 + $0x78] sm:$0xff]
      %v320 = vld [vmem:[#allocation2 + $0x80] sm:$0xff]
      %v321 = vld [vmem:[#allocation2 + $0x88] sm:$0xff]
      %v322 = vld [vmem:[#allocation2 + $0x90] sm:$0xff]
      %v323 = vld [vmem:[#allocation2 + $0x98] sm:$0xff]
      %v324 = vld [vmem:[#allocation2 + $0xa0] sm:$0xff]
      %v325 = vld [vmem:[#allocation2 + $0xa8] sm:$0xff]
      %v326 = vld [vmem:[#allocation2 + $0xb0] sm:$0xff]
      %v327 = vld [vmem:[#allocation2 + $0xb8] sm:$0xff]
      %v328 = vld [vmem:[#allocation2 + $0xc0] sm:$0xff]
      %v329 = vld [vmem:[#allocation2 + $0xc8] sm:$0xff]
      %v330 = vld [vmem:[#allocation2 + $0xd0] sm:$0xff]
      %v331 = vld [vmem:[#allocation2 + $0xd8] sm:$0xff]
      %v332 = vld [vmem:[#allocation2 + $0xe0] sm:$0xff]
      %v333 = vld [vmem:[#allocation2 + $0xe8] sm:$0xff]
      %v334 = vld [vmem:[#allocation2 + $0xf0] sm:$0xff]
      %v335 = vld [vmem:[#allocation2 + $0xf8] sm:$0xff]
      %v336 = vld [vmem:[%s243] sm:$0xff]
      %v337 = vld [vmem:[%s243 + $0x8] sm:$0xff]
      %v338 = vld [vmem:[%s243 + $0x10] sm:$0xff]
      %v339 = vld [vmem:[%s243 + $0x18] sm:$0xff]
      %v340 = vld [vmem:[%s243 + $0x20] sm:$0xff]
      %v341 = vld [vmem:[%s243 + $0x28] sm:$0xff]
      %v342 = vld [vmem:[%s243 + $0x30] sm:$0xff]
      %v343 = vld [vmem:[%s243 + $0x38] sm:$0xff]
      %v344 = vld [vmem:[%s243 + $0x40] sm:$0xff]
      %v345 = vld [vmem:[%s243 + $0x48] sm:$0xff]
      %v346 = vld [vmem:[%s243 + $0x50] sm:$0xff]
      %v347 = vld [vmem:[%s243 + $0x58] sm:$0xff]
      %v348 = vld [vmem:[%s243 + $0x60] sm:$0xff]
      %v349 = vld [vmem:[%s243 + $0x68] sm:$0xff]
      %v350 = vld [vmem:[%s243 + $0x70] sm:$0xff]
      %v351 = vld [vmem:[%s243 + $0x78] sm:$0xff]
      %v352 = vld [vmem:[%s243 + $0x80] sm:$0xff]
      %v353 = vld [vmem:[%s243 + $0x88] sm:$0xff]
      %v354 = vld [vmem:[%s243 + $0x90] sm:$0xff]
      %v355 = vld [vmem:[%s243 + $0x98] sm:$0xff]
      %v356 = vld [vmem:[%s243 + $0xa0] sm:$0xff]
      %v357 = vld [vmem:[%s243 + $0xa8] sm:$0xff]
      %v358 = vld [vmem:[%s243 + $0xb0] sm:$0xff]
      %v359 = vld [vmem:[%s243 + $0xb8] sm:$0xff]
      %v360 = vld [vmem:[%s243 + $0xc0] sm:$0xff]
      %v361 = vld [vmem:[%s243 + $0xc8] sm:$0xff]
      %v362 = vld [vmem:[%s243 + $0xd0] sm:$0xff]
      %v363 = vld [vmem:[%s243 + $0xd8] sm:$0xff]
      %v364 = vld [vmem:[%s243 + $0xe0] sm:$0xff]
      %v365 = vld [vmem:[%s243 + $0xe8] sm:$0xff]
      %v366 = vld [vmem:[%s243 + $0xf0] sm:$0xff]
      %v367 = vld [vmem:[%s243 + $0xf8] sm:$0xff]
      %v368 = vld [vmem:[%s253] sm:$0xf]
      %v369 = vld [vmem:[%s253 + $0x4] sm:$0xf]
      %v370 = vld [vmem:[%s253 + $0x8] sm:$0xf]
      %v371 = vld [vmem:[%s253 + $0xc] sm:$0xf]
      %v372 = vld [vmem:[%s253 + $0x10] sm:$0xf]
      %v373 = vld [vmem:[%s253 + $0x14] sm:$0xf]
      %v374 = vld [vmem:[%s253 + $0x18] sm:$0xf]
      %v375 = vld [vmem:[%s253 + $0x1c] sm:$0xf]
      %v376 = vld [vmem:[%s253 + $0x20] sm:$0xf]
      %v377 = vld [vmem:[%s253 + $0x24] sm:$0xf]
      %v378 = vld [vmem:[%s253 + $0x28] sm:$0xf]
      %v379 = vld [vmem:[%s253 + $0x2c] sm:$0xf]
      %v380 = vld [vmem:[%s253 + $0x30] sm:$0xf]
      %v381 = vld [vmem:[%s253 + $0x34] sm:$0xf]
      %v382 = vld [vmem:[%s253 + $0x38] sm:$0xf]
      %v383 = vld [vmem:[%s253 + $0x3c] sm:$0xf]
      %v384 = vld [vmem:[%s253 + $0x40] sm:$0xf]
      %v385 = vld [vmem:[%s253 + $0x44] sm:$0xf]
      %v386 = vld [vmem:[%s253 + $0x48] sm:$0xf]
      %v387 = vld [vmem:[%s253 + $0x4c] sm:$0xf]
      %v388 = vld [vmem:[%s253 + $0x50] sm:$0xf]
      %v389 = vld [vmem:[%s253 + $0x54] sm:$0xf]
      %v390 = vld [vmem:[%s253 + $0x58] sm:$0xf]
      %v391 = vld [vmem:[%s253 + $0x5c] sm:$0xf]
      %v392 = vld [vmem:[%s253 + $0x60] sm:$0xf]
      %v393 = vld [vmem:[%s253 + $0x64] sm:$0xf]
      %v394 = vld [vmem:[%s253 + $0x68] sm:$0xf]
      %v395 = vld [vmem:[%s253 + $0x6c] sm:$0xf]
      %v396 = vld [vmem:[%s253 + $0x70] sm:$0xf]
      %v397 = vld [vmem:[%s253 + $0x74] sm:$0xf]
      %v398 = vld [vmem:[%s253 + $0x78] sm:$0xf]
      %v399 = vld [vmem:[%s253 + $0x7c] sm:$0xf]
      %v432 = vunpack.c.l.b16 %v336
      %v433 = vunpack.c.h.b16 %v336
      %v434 = vunpack.c.l.b16 %v337
      %v435 = vunpack.c.h.b16 %v337
      %v436 = vunpack.c.l.b16 %v338
      %v437 = vunpack.c.h.b16 %v338
      %v438 = vunpack.c.l.b16 %v339
      %v439 = vunpack.c.h.b16 %v339
      %v440 = vunpack.c.l.b16 %v340
      %v441 = vunpack.c.h.b16 %v340
      %v442 = vunpack.c.l.b16 %v341
      %v443 = vunpack.c.h.b16 %v341
      %v444 = vunpack.c.l.b16 %v342
      %v445 = vunpack.c.h.b16 %v342
      %v446 = vunpack.c.l.b16 %v343
      %v447 = vunpack.c.h.b16 %v343
      %v448 = vunpack.c.l.b16 %v344
      %v449 = vunpack.c.h.b16 %v344
      %v450 = vunpack.c.l.b16 %v345
      %v451 = vunpack.c.h.b16 %v345
      %v452 = vunpack.c.l.b16 %v346
      %v453 = vunpack.c.h.b16 %v346
      %v454 = vunpack.c.l.b16 %v347
      %v455 = vunpack.c.h.b16 %v347
      %v456 = vunpack.c.l.b16 %v348
      %v457 = vunpack.c.h.b16 %v348
      %v458 = vunpack.c.l.b16 %v349
      %v459 = vunpack.c.h.b16 %v349
      %v460 = vunpack.c.l.b16 %v350
      %v461 = vunpack.c.h.b16 %v350
      %v462 = vunpack.c.l.b16 %v351
      %v463 = vunpack.c.h.b16 %v351
      %v464 = vunpack.c.l.b16 %v352
      %v465 = vunpack.c.h.b16 %v352
      %v466 = vunpack.c.l.b16 %v353
      %v467 = vunpack.c.h.b16 %v353
      %v468 = vunpack.c.l.b16 %v354
      %v469 = vunpack.c.h.b16 %v354
      %v470 = vunpack.c.l.b16 %v355
      %v471 = vunpack.c.h.b16 %v355
      %v472 = vunpack.c.l.b16 %v356
      %v473 = vunpack.c.h.b16 %v356
      %v474 = vunpack.c.l.b16 %v357
      %v475 = vunpack.c.h.b16 %v357
      %v476 = vunpack.c.l.b16 %v358
      %v477 = vunpack.c.h.b16 %v358
      %v478 = vunpack.c.l.b16 %v359
      %v479 = vunpack.c.h.b16 %v359
      %v480 = vunpack.c.l.b16 %v360
      %v481 = vunpack.c.h.b16 %v360
      %v482 = vunpack.c.l.b16 %v361
      %v483 = vunpack.c.h.b16 %v361
      %v484 = vunpack.c.l.b16 %v362
      %v485 = vunpack.c.h.b16 %v362
      %v486 = vunpack.c.l.b16 %v363
      %v487 = vunpack.c.h.b16 %v363
      %v488 = vunpack.c.l.b16 %v364
      %v489 = vunpack.c.h.b16 %v364
      %v490 = vunpack.c.l.b16 %v365
      %v491 = vunpack.c.h.b16 %v365
      %v492 = vunpack.c.l.b16 %v366
      %v493 = vunpack.c.h.b16 %v366
      %v494 = vunpack.c.l.b16 %v367
      %v495 = vunpack.c.h.b16 %v367
      %v496 = vpack.c.b16 %v434, %v432
      %v497 = vpack.c.b16 %v435, %v433
      %v498 = vpack.c.b16 %v438, %v436
      %v499 = vpack.c.b16 %v439, %v437
      %v500 = vpack.c.b16 %v442, %v440
      %v501 = vpack.c.b16 %v443, %v441
      %v502 = vpack.c.b16 %v446, %v444
      %v503 = vpack.c.b16 %v447, %v445
      %v504 = vpack.c.b16 %v450, %v448
      %v505 = vpack.c.b16 %v451, %v449
      %v506 = vpack.c.b16 %v454, %v452
      %v507 = vpack.c.b16 %v455, %v453
      %v508 = vpack.c.b16 %v458, %v456
      %v509 = vpack.c.b16 %v459, %v457
      %v510 = vpack.c.b16 %v462, %v460
      %v511 = vpack.c.b16 %v463, %v461
      %v512 = vpack.c.b16 %v466, %v464
      %v513 = vpack.c.b16 %v467, %v465
      %v514 = vpack.c.b16 %v470, %v468
      %v515 = vpack.c.b16 %v471, %v469
      %v516 = vpack.c.b16 %v474, %v472
      %v517 = vpack.c.b16 %v475, %v473
      %v518 = vpack.c.b16 %v478, %v476
      %v519 = vpack.c.b16 %v479, %v477
      %v520 = vpack.c.b16 %v482, %v480
      %v521 = vpack.c.b16 %v483, %v481
      %v522 = vpack.c.b16 %v486, %v484
      %v523 = vpack.c.b16 %v487, %v485
      %v524 = vpack.c.b16 %v490, %v488
      %v525 = vpack.c.b16 %v491, %v489
      %v526 = vpack.c.b16 %v494, %v492
      %v527 = vpack.c.b16 %v495, %v493
      %v592 = vunpack.c.l.b16 %v368
      %v593 = vunpack.c.l.b16 %v369
      %v594 = vunpack.c.l.b16 %v370
      %v595 = vunpack.c.l.b16 %v371
      %v596 = vunpack.c.l.b16 %v372
      %v597 = vunpack.c.l.b16 %v373
      %v598 = vunpack.c.l.b16 %v374
      %v599 = vunpack.c.l.b16 %v375
      %v600 = vunpack.c.l.b16 %v376
      %v601 = vunpack.c.l.b16 %v377
      %v602 = vunpack.c.l.b16 %v378
      %v603 = vunpack.c.l.b16 %v379
      %v604 = vunpack.c.l.b16 %v380
      %v605 = vunpack.c.l.b16 %v381
      %v606 = vunpack.c.l.b16 %v382
      %v607 = vunpack.c.l.b16 %v383
      %v608 = vunpack.c.l.b16 %v384
      %v609 = vunpack.c.l.b16 %v385
      %v610 = vunpack.c.l.b16 %v386
      %v611 = vunpack.c.l.b16 %v387
      %v612 = vunpack.c.l.b16 %v388
      %v613 = vunpack.c.l.b16 %v389
      %v614 = vunpack.c.l.b16 %v390
      %v615 = vunpack.c.l.b16 %v391
      %v616 = vunpack.c.l.b16 %v392
      %v617 = vunpack.c.l.b16 %v393
      %v618 = vunpack.c.l.b16 %v394
      %v619 = vunpack.c.l.b16 %v395
      %v620 = vunpack.c.l.b16 %v396
      %v621 = vunpack.c.l.b16 %v397
      %v622 = vunpack.c.l.b16 %v398
      %v623 = vunpack.c.l.b16 %v399
      %v624 = vpack.c.b16 %v593, %v592
      %v625 = vpack.c.b16 %v595, %v594
      %v626 = vpack.c.b16 %v597, %v596
      %v627 = vpack.c.b16 %v599, %v598
      %v628 = vpack.c.b16 %v601, %v600
      %v629 = vpack.c.b16 %v603, %v602
      %v630 = vpack.c.b16 %v605, %v604
      %v631 = vpack.c.b16 %v607, %v606
      %v632 = vpack.c.b16 %v609, %v608
      %v633 = vpack.c.b16 %v611, %v610
      %v634 = vpack.c.b16 %v613, %v612
      %v635 = vpack.c.b16 %v615, %v614
      %v636 = vpack.c.b16 %v617, %v616
      %v637 = vpack.c.b16 %v619, %v618
      %v638 = vpack.c.b16 %v621, %v620
      %v639 = vpack.c.b16 %v623, %v622
      %656 = vmatprep.subr.bf16.mxu0 0
      %657 = vmatpush1.bf16.msra.mxu0 %v624
      %658 = vmatprep.subr.bf16.mxu0 0
      %659 = vmatpush1.bf16.msra.mxu0 %v625
      %660 = vmatprep.subr.bf16.mxu0 0
      %661 = vmatpush1.bf16.msra.mxu0 %v626
      %662 = vmatprep.subr.bf16.mxu0 0
      %663 = vmatpush1.bf16.msra.mxu0 %v627
      %664 = vmatprep.subr.bf16.mxu0 0
      %665 = vmatpush1.bf16.msra.mxu0 %v628
      %666 = vmatprep.subr.bf16.mxu0 0
      %667 = vmatpush1.bf16.msra.mxu0 %v629
      %668 = vmatprep.subr.bf16.mxu0 0
      %669 = vmatpush1.bf16.msra.mxu0 %v630
      %670 = vmatprep.subr.bf16.mxu0 0
      %671 = vmatpush1.bf16.msra.mxu0 %v631
      %672 = vmatprep.subr.bf16.mxu0 0
      %673 = vmatpush1.bf16.msra.mxu0 %v632
      %674 = vmatprep.subr.bf16.mxu0 0
      %675 = vmatpush1.bf16.msra.mxu0 %v633
      %676 = vmatprep.subr.bf16.mxu0 0
      %677 = vmatpush1.bf16.msra.mxu0 %v634
      %678 = vmatprep.subr.bf16.mxu0 0
      %679 = vmatpush1.bf16.msra.mxu0 %v635
      %680 = vmatprep.subr.bf16.mxu0 0
      %681 = vmatpush1.bf16.msra.mxu0 %v636
      %682 = vmatprep.subr.bf16.mxu0 0
      %683 = vmatpush1.bf16.msra.mxu0 %v637
      %684 = vmatprep.subr.bf16.mxu0 0
      %685 = vmatpush1.bf16.msra.mxu0 %v638
      %686 = vmatprep.subr.bf16.mxu0 0
      %687 = vmatpush1.bf16.msra.mxu0 %v639
      %688 = vmatprep.mubr.bf16.mxu0 %v497
      %689 = vmatmul.mubr.bf16.gmra.mrb[0].mxu0 %v496
      %v690 = vpop.f32.mrb[0].mxu0
      %v691 = vadd.f32 0.0, %v690
      %v692 = vpop.f32.mrb[0].mxu0
      %v693 = vpop.f32.mrb[0].mxu0
      %v694 = vadd.f32 0.0, %v693
      %v695 = vpop.f32.mrb[0].mxu0
      %696 = vmatprep.mubr.bf16.mxu0 %v499
      %697 = vmatmul.mubr.bf16.gmra.mrb[0].mxu0 %v498
      %v698 = vpop.f32.mrb[0].mxu0
      %v699 = vadd.f32 0.0, %v698
      %v700 = vpop.f32.mrb[0].mxu0
      %v701 = vpop.f32.mrb[0].mxu0
      %v702 = vadd.f32 0.0, %v701
      %v703 = vpop.f32.mrb[0].mxu0
      %704 = vmatprep.mubr.bf16.mxu0 %v501
      %705 = vmatmul.mubr.bf16.gmra.mrb[0].mxu0 %v500
      %v706 = vpop.f32.mrb[0].mxu0
      %v707 = vadd.f32 0.0, %v706
      %v708 = vpop.f32.mrb[0].mxu0
      %v709 = vpop.f32.mrb[0].mxu0
      %v710 = vadd.f32 0.0, %v709
      %v711 = vpop.f32.mrb[0].mxu0
      %712 = vmatprep.mubr.bf16.mxu0 %v503
      %713 = vmatmul.mubr.bf16.gmra.mrb[0].mxu0 %v502
      %v714 = vpop.f32.mrb[0].mxu0
      %v715 = vadd.f32 0.0, %v714
      %v716 = vpop.f32.mrb[0].mxu0
      %v717 = vpop.f32.mrb[0].mxu0
      %v718 = vadd.f32 0.0, %v717
      %v719 = vpop.f32.mrb[0].mxu0
      %720 = vmatprep.mubr.bf16.mxu0 %v505
      %721 = vmatmul.mubr.bf16.gmra.mrb[0].mxu0 %v504
      %v722 = vpop.f32.mrb[0].mxu0
      %v723 = vadd.f32 0.0, %v722
      %v724 = vpop.f32.mrb[0].mxu0
      %v725 = vpop.f32.mrb[0].mxu0
      %v726 = vadd.f32 0.0, %v725
      %v727 = vpop.f32.mrb[0].mxu0
      %728 = vmatprep.mubr.bf16.mxu0 %v507
      %729 = vmatmul.mubr.bf16.gmra.mrb[0].mxu0 %v506
      %v730 = vpop.f32.mrb[0].mxu0
      %v731 = vadd.f32 0.0, %v730
      %v732 = vpop.f32.mrb[0].mxu0
      %v733 = vpop.f32.mrb[0].mxu0
      %v734 = vadd.f32 0.0, %v733
      %v735 = vpop.f32.mrb[0].mxu0
      %736 = vmatprep.mubr.bf16.mxu0 %v509
      %737 = vmatmul.mubr.bf16.gmra.mrb[0].mxu0 %v508
      %v738 = vpop.f32.mrb[0].mxu0
      %v739 = vadd.f32 0.0, %v738
      %v740 = vpop.f32.mrb[0].mxu0
      %v741 = vpop.f32.mrb[0].mxu0
      %v742 = vadd.f32 0.0, %v741
      %v743 = vpop.f32.mrb[0].mxu0
      %744 = vmatprep.mubr.bf16.mxu0 %v511
      %745 = vmatmul.mubr.bf16.gmra.mrb[0].mxu0 %v510
      %v746 = vpop.f32.mrb[0].mxu0
      %v747 = vadd.f32 0.0, %v746
      %v748 = vpop.f32.mrb[0].mxu0
      %v749 = vpop.f32.mrb[0].mxu0
      %v750 = vadd.f32 0.0, %v749
      %v751 = vpop.f32.mrb[0].mxu0
      %752 = vmatprep.mubr.bf16.mxu0 %v513
      %753 = vmatmul.mubr.bf16.gmra.mrb[0].mxu0 %v512
      %v754 = vpop.f32.mrb[0].mxu0
      %v755 = vadd.f32 0.0, %v754
      %v756 = vpop.f32.mrb[0].mxu0
      %v757 = vpop.f32.mrb[0].mxu0
      %v758 = vadd.f32 0.0, %v757
      %v759 = vpop.f32.mrb[0].mxu0
      %760 = vmatprep.mubr.bf16.mxu0 %v515
      %761 = vmatmul.mubr.bf16.gmra.mrb[0].mxu0 %v514
      %v762 = vpop.f32.mrb[0].mxu0
      %v763 = vadd.f32 0.0, %v762
      %v764 = vpop.f32.mrb[0].mxu0
      %v765 = vpop.f32.mrb[0].mxu0
      %v766 = vadd.f32 0.0, %v765
      %v767 = vpop.f32.mrb[0].mxu0
      %768 = vmatprep.mubr.bf16.mxu0 %v517
      %769 = vmatmul.mubr.bf16.gmra.mrb[0].mxu0 %v516
      %v770 = vpop.f32.mrb[0].mxu0
      %v771 = vadd.f32 0.0, %v770
      %v772 = vpop.f32.mrb[0].mxu0
      %v773 = vpop.f32.mrb[0].mxu0
      %v774 = vadd.f32 0.0, %v773
      %v775 = vpop.f32.mrb[0].mxu0
      %776 = vmatprep.mubr.bf16.mxu0 %v519
      %777 = vmatmul.mubr.bf16.gmra.mrb[0].mxu0 %v518
      %v778 = vpop.f32.mrb[0].mxu0
      %v779 = vadd.f32 0.0, %v778
      %v780 = vpop.f32.mrb[0].mxu0
      %v781 = vpop.f32.mrb[0].mxu0
      %v782 = vadd.f32 0.0, %v781
      %v783 = vpop.f32.mrb[0].mxu0
      %784 = vmatprep.mubr.bf16.mxu0 %v521
      %785 = vmatmul.mubr.bf16.gmra.mrb[0].mxu0 %v520
      %v786 = vpop.f32.mrb[0].mxu0
      %v787 = vadd.f32 0.0, %v786
      %v788 = vpop.f32.mrb[0].mxu0
      %v789 = vpop.f32.mrb[0].mxu0
      %v790 = vadd.f32 0.0, %v789
      %v791 = vpop.f32.mrb[0].mxu0
      %792 = vmatprep.mubr.bf16.mxu0 %v523
      %793 = vmatmul.mubr.bf16.gmra.mrb[0].mxu0 %v522
      %v794 = vpop.f32.mrb[0].mxu0
      %v795 = vadd.f32 0.0, %v794
      %v796 = vpop.f32.mrb[0].mxu0
      %v797 = vpop.f32.mrb[0].mxu0
      %v798 = vadd.f32 0.0, %v797
      %v799 = vpop.f32.mrb[0].mxu0
      %800 = vmatprep.mubr.bf16.mxu0 %v525
      %801 = vmatmul.mubr.bf16.gmra.mrb[0].mxu0 %v524
      %v802 = vpop.f32.mrb[0].mxu0
      %v803 = vadd.f32 0.0, %v802
      %v804 = vpop.f32.mrb[0].mxu0
      %v805 = vpop.f32.mrb[0].mxu0
      %v806 = vadd.f32 0.0, %v805
      %v807 = vpop.f32.mrb[0].mxu0
      %808 = vmatprep.mubr.bf16.mxu0 %v527
      %809 = vmatmul.mubr.bf16.gmra.mrb[0].mxu0 %v526
      %v810 = vpop.f32.mrb[0].mxu0
      %v811 = vadd.f32 0.0, %v810
      %v812 = vpop.f32.mrb[0].mxu0
      %v813 = vpop.f32.mrb[0].mxu0
      %v814 = vadd.f32 0.0, %v813
      %v815 = vpop.f32.mrb[0].mxu0
      %816 = vdwg.mxu0
      %v817 = vadd.f32 %v304, %v691
      %v818 = vadd.f32 %v305, %v694
      %v819 = vadd.f32 %v306, %v699
      %v820 = vadd.f32 %v307, %v702
      %v821 = vadd.f32 %v308, %v707
      %v822 = vadd.f32 %v309, %v710
      %v823 = vadd.f32 %v310, %v715
      %v824 = vadd.f32 %v311, %v718
      %v825 = vadd.f32 %v312, %v723
      %v826 = vadd.f32 %v313, %v726
      %v827 = vadd.f32 %v314, %v731
      %v828 = vadd.f32 %v315, %v734
      %v829 = vadd.f32 %v316, %v739
      %v830 = vadd.f32 %v317, %v742
      %v831 = vadd.f32 %v318, %v747
      %v832 = vadd.f32 %v319, %v750
      %v833 = vadd.f32 %v320, %v755
      %v834 = vadd.f32 %v321, %v758
      %v835 = vadd.f32 %v322, %v763
      %v836 = vadd.f32 %v323, %v766
      %v837 = vadd.f32 %v324, %v771
      %v838 = vadd.f32 %v325, %v774
      %v839 = vadd.f32 %v326, %v779
      %v840 = vadd.f32 %v327, %v782
      %v841 = vadd.f32 %v328, %v787
      %v842 = vadd.f32 %v329, %v790
      %v843 = vadd.f32 %v330, %v795
      %v844 = vadd.f32 %v331, %v798
      %v845 = vadd.f32 %v332, %v803
      %v846 = vadd.f32 %v333, %v806
      %v847 = vadd.f32 %v334, %v811
      %v848 = vadd.f32 %v335, %v814
      %849 = vst [vmem:[#allocation2] sm:$0xff] %v817
      %850 = vst [vmem:[#allocation2 + $0x8] sm:$0xff] %v818
      %851 = vst [vmem:[#allocation2 + $0x10] sm:$0xff] %v819
      %852 = vst [vmem:[#allocation2 + $0x18] sm:$0xff] %v820
      %853 = vst [vmem:[#allocation2 + $0x20] sm:$0xff] %v821
      %854 = vst [vmem:[#allocation2 + $0x28] sm:$0xff] %v822
      %855 = vst [vmem:[#allocation2 + $0x30] sm:$0xff] %v823
      %856 = vst [vmem:[#allocation2 + $0x38] sm:$0xff] %v824
      %857 = vst [vmem:[#allocation2 + $0x40] sm:$0xff] %v825
      %858 = vst [vmem:[#allocation2 + $0x48] sm:$0xff] %v826
      %859 = vst [vmem:[#allocation2 + $0x50] sm:$0xff] %v827
      %860 = vst [vmem:[#allocation2 + $0x58] sm:$0xff] %v828
      %861 = vst [vmem:[#allocation2 + $0x60] sm:$0xff] %v829
      %862 = vst [vmem:[#allocation2 + $0x68] sm:$0xff] %v830
      %863 = vst [vmem:[#allocation2 + $0x70] sm:$0xff] %v831
      %864 = vst [vmem:[#allocation2 + $0x78] sm:$0xff] %v832
      %865 = vst [vmem:[#allocation2 + $0x80] sm:$0xff] %v833
      %866 = vst [vmem:[#allocation2 + $0x88] sm:$0xff] %v834
      %867 = vst [vmem:[#allocation2 + $0x90] sm:$0xff] %v835
      %868 = vst [vmem:[#allocation2 + $0x98] sm:$0xff] %v836
      %869 = vst [vmem:[#allocation2 + $0xa0] sm:$0xff] %v837
      %870 = vst [vmem:[#allocation2 + $0xa8] sm:$0xff] %v838
      %871 = vst [vmem:[#allocation2 + $0xb0] sm:$0xff] %v839
      %872 = vst [vmem:[#allocation2 + $0xb8] sm:$0xff] %v840
      %873 = vst [vmem:[#allocation2 + $0xc0] sm:$0xff] %v841
      %874 = vst [vmem:[#allocation2 + $0xc8] sm:$0xff] %v842
      %875 = vst [vmem:[#allocation2 + $0xd0] sm:$0xff] %v843
      %876 = vst [vmem:[#allocation2 + $0xd8] sm:$0xff] %v844
      %877 = vst [vmem:[#allocation2 + $0xe0] sm:$0xff] %v845
      %878 = vst [vmem:[#allocation2 + $0xe8] sm:$0xff] %v846
      %879 = vst [vmem:[#allocation2 + $0xf0] sm:$0xff] %v847
      %880 = vst [vmem:[#allocation2 + $0xf8] sm:$0xff] %v848
      // Predicated region
      $region37: #{densenet_forward.181} parent=31 // pred_check
        %p881 = pneg %p268
      $region38: #{densenet_forward.181} parent=31 // pred_check_branch
        %883 = sbr.rel (%p881) target = $region40
      $region39: #{densenet_forward.181} parent=31 // pred_region
        %v884 = vld [vmem:[#allocation2] sm:$0xff]
        %v885 = vld [vmem:[#allocation2 + $0x8] sm:$0xff]
        %v886 = vld [vmem:[#allocation2 + $0x10] sm:$0xff]
        %v887 = vld [vmem:[#allocation2 + $0x18] sm:$0xff]
        %v888 = vld [vmem:[#allocation2 + $0x20] sm:$0xff]
        %v889 = vld [vmem:[#allocation2 + $0x28] sm:$0xff]
        %v890 = vld [vmem:[#allocation2 + $0x30] sm:$0xff]
        %v891 = vld [vmem:[#allocation2 + $0x38] sm:$0xff]
        %v892 = vld [vmem:[#allocation2 + $0x40] sm:$0xff]
        %v893 = vld [vmem:[#allocation2 + $0x48] sm:$0xff]
        %v894 = vld [vmem:[#allocation2 + $0x50] sm:$0xff]
        %v895 = vld [vmem:[#allocation2 + $0x58] sm:$0xff]
        %v896 = vld [vmem:[#allocation2 + $0x60] sm:$0xff]
        %v897 = vld [vmem:[#allocation2 + $0x68] sm:$0xff]
        %v898 = vld [vmem:[#allocation2 + $0x70] sm:$0xff]
        %v899 = vld [vmem:[#allocation2 + $0x78] sm:$0xff]
        %v900 = vld [vmem:[#allocation2 + $0x80] sm:$0xff]
        %v901 = vld [vmem:[#allocation2 + $0x88] sm:$0xff]
        %v902 = vld [vmem:[#allocation2 + $0x90] sm:$0xff]
        %v903 = vld [vmem:[#allocation2 + $0x98] sm:$0xff]
        %v904 = vld [vmem:[#allocation2 + $0xa0] sm:$0xff]
        %v905 = vld [vmem:[#allocation2 + $0xa8] sm:$0xff]
        %v906 = vld [vmem:[#allocation2 + $0xb0] sm:$0xff]
        %v907 = vld [vmem:[#allocation2 + $0xb8] sm:$0xff]
        %v908 = vld [vmem:[#allocation2 + $0xc0] sm:$0xff]
        %v909 = vld [vmem:[#allocation2 + $0xc8] sm:$0xff]
        %v910 = vld [vmem:[#allocation2 + $0xd0] sm:$0xff]
        %v911 = vld [vmem:[#allocation2 + $0xd8] sm:$0xff]
        %v912 = vld [vmem:[#allocation2 + $0xe0] sm:$0xff]
        %v913 = vld [vmem:[#allocation2 + $0xe8] sm:$0xff]
        %v914 = vld [vmem:[#allocation2 + $0xf0] sm:$0xff]
        %v915 = vld [vmem:[#allocation2 + $0xf8] sm:$0xff]
        %v916 = vld [vmem:[%s257] sm:$0x1]
        %v918 = vlaneseq
        %v919 = vshrl.u32 %v918, 7
        %v920 = vsub.s32 0, %v919
        %v921 = vrot.slane %v916, %v920
        %v923 = vadd.f32 %v884, %v921
        %v924 = vadd.f32 %v885, %v921
        %v925 = vadd.f32 %v886, %v921
        %v926 = vadd.f32 %v887, %v921
        %v927 = vadd.f32 %v888, %v921
        %v928 = vadd.f32 %v889, %v921
        %v929 = vadd.f32 %v890, %v921
        %v930 = vadd.f32 %v891, %v921
        %v931 = vadd.f32 %v892, %v921
        %v932 = vadd.f32 %v893, %v921
        %v933 = vadd.f32 %v894, %v921
        %v934 = vadd.f32 %v895, %v921
        %v935 = vadd.f32 %v896, %v921
        %v936 = vadd.f32 %v897, %v921
        %v937 = vadd.f32 %v898, %v921
        %v938 = vadd.f32 %v899, %v921
        %v939 = vadd.f32 %v900, %v921
        %v940 = vadd.f32 %v901, %v921
        %v941 = vadd.f32 %v902, %v921
        %v942 = vadd.f32 %v903, %v921
        %v943 = vadd.f32 %v904, %v921
        %v944 = vadd.f32 %v905, %v921
        %v945 = vadd.f32 %v906, %v921
        %v946 = vadd.f32 %v907, %v921
        %v947 = vadd.f32 %v908, %v921
        %v948 = vadd.f32 %v909, %v921
        %v949 = vadd.f32 %v910, %v921
        %v950 = vadd.f32 %v911, %v921
        %v951 = vadd.f32 %v912, %v921
        %v952 = vadd.f32 %v913, %v921
        %v953 = vadd.f32 %v914, %v921
        %v954 = vadd.f32 %v915, %v921
        %955 = vst [vmem:[%s265] sm:$0xff] %v923
        %956 = vst [vmem:[%s265 + $0x8] sm:$0xff] %v924
        %957 = vst [vmem:[%s265 + $0x10] sm:$0xff] %v925
        %958 = vst [vmem:[%s265 + $0x18] sm:$0xff] %v926
        %959 = vst [vmem:[%s265 + $0x20] sm:$0xff] %v927
        %960 = vst [vmem:[%s265 + $0x28] sm:$0xff] %v928
        %961 = vst [vmem:[%s265 + $0x30] sm:$0xff] %v929
        %962 = vst [vmem:[%s265 + $0x38] sm:$0xff] %v930
        %963 = vst [vmem:[%s265 + $0x40] sm:$0xff] %v931
        %964 = vst [vmem:[%s265 + $0x48] sm:$0xff] %v932
        %965 = vst [vmem:[%s265 + $0x50] sm:$0xff] %v933
        %966 = vst [vmem:[%s265 + $0x58] sm:$0xff] %v934
        %967 = vst [vmem:[%s265 + $0x60] sm:$0xff] %v935
        %968 = vst [vmem:[%s265 + $0x68] sm:$0xff] %v936
        %969 = vst [vmem:[%s265 + $0x70] sm:$0xff] %v937
        %970 = vst [vmem:[%s265 + $0x78] sm:$0xff] %v938
        %971 = vst [vmem:[%s265 + $0x80] sm:$0xff] %v939
        %972 = vst [vmem:[%s265 + $0x88] sm:$0xff] %v940
        %973 = vst [vmem:[%s265 + $0x90] sm:$0xff] %v941
        %974 = vst [vmem:[%s265 + $0x98] sm:$0xff] %v942
        %975 = vst [vmem:[%s265 + $0xa0] sm:$0xff] %v943
        %976 = vst [vmem:[%s265 + $0xa8] sm:$0xff] %v944
        %977 = vst [vmem:[%s265 + $0xb0] sm:$0xff] %v945
        %978 = vst [vmem:[%s265 + $0xb8] sm:$0xff] %v946
        %979 = vst [vmem:[%s265 + $0xc0] sm:$0xff] %v947
        %980 = vst [vmem:[%s265 + $0xc8] sm:$0xff] %v948
        %981 = vst [vmem:[%s265 + $0xd0] sm:$0xff] %v949
        %982 = vst [vmem:[%s265 + $0xd8] sm:$0xff] %v950
        %983 = vst [vmem:[%s265 + $0xe0] sm:$0xff] %v951
        %984 = vst [vmem:[%s265 + $0xe8] sm:$0xff] %v952
        %985 = vst [vmem:[%s265 + $0xf0] sm:$0xff] %v953
        %986 = vst [vmem:[%s265 + $0xf8] sm:$0xff] %v954
      $region40: #{densenet_forward.181} parent=31 // pred_fallthru
        _
      %s987 = smul.u32 32, %s19
      %p988 = scmp.lt.s32.totalorder %s987, 63
      %s989 = scalar_select %p988, %s987, 63
      %p990 = scmp.lt.s32.totalorder %s20, 0
      %s991 = scalar_select %p990, %s20, 0
      %s992 = sadd.s32 %s991, %s989
      %s993 = smul.addr %s992, 8
      %s994 = scalar_lea.vmem %s3, %s993
      // Predicated region
      $region41: #{densenet_forward.181} parent=31 // pred_check
        %p995 = pneg %p135
      $region42: #{densenet_forward.181} parent=31 // pred_check_branch
        %997 = sbr.rel (%p995) target = $region44
      $region43: #{densenet_forward.181} parent=31 // pred_region
        %s998 = smul.u32 32, %s19
      $region44: #{densenet_forward.181} parent=31 // pred_fallthru
        _
    $region32: #{densenet_forward.181} parent=5 // pred_fallthru
      _
    %p999 = scmp.le.s32.totalorder 2, %s9
    // Predicated region
    $region45: #{densenet_forward.181} parent=5 // pred_check
      %p1000 = pneg %p999
    $region46: #{densenet_forward.181} parent=5 // pred_check_branch
      %1002 = sbr.rel (%p1000) target = $region48
    $region47: #{densenet_forward.181} parent=5 // pred_region
      %s1003 = ssub.s32 %s9, 2
      // Predicated region
      $region49: #{densenet_forward.181} parent=47 // pred_check
        %p1004 = pneg %p141
      $region50: #{densenet_forward.181} parent=47 // pred_check_branch
        %1006 = sbr.rel (%p1004) target = $region52
      $region51: #{densenet_forward.181} parent=47 // pred_region
        %s1007 = smul.u32 32, %s22
        %p1008 = scmp.lt.s32.totalorder %s1007, 63
        %s1009 = scalar_select %p1008, %s1007, 63
        %p1010 = scmp.lt.s32.totalorder %s23, 0
        %s1011 = scalar_select %p1010, %s23, 0
        %s1012 = sadd.s32 %s1011, %s1009
        %s1013 = smul.addr %s1012, 8
        %s1014 = scalar_lea.vmem %s3, %s1013
      $region52: #{densenet_forward.181} parent=47 // pred_fallthru
        _
    $region48: #{densenet_forward.181} parent=5 // pred_fallthru
      _
  $region6: #{densenet_forward.181} parent=0 // loop_footer
    %s13 = sadd.s32 1, %s9
  $region7: #{densenet_forward.181} parent=0 // loop_footer_branch
    %8 = sbr.rel target = $region3
  $region8: #{densenet_forward.181} parent=0 // loop_exit
    _

// kernel: densenet_forward.184
$region0: #{densenet_forward.184}
  #allocation0 [shape = 'u32[]', space=smem, size = 0x4, offset = 0x4, fixed_abs, tag = 'smem constant byte address 0x4 - core index']
  #allocation1 [shape = 'u32[144,128]{1,0:T(1,128)}', space=vmem, size = 0x12000, scoped, tag = 'internal scratch']
  %s0 = inlined_call_operand.vmem [shape: f32[128,128], index: 0, kind: input, shape index: {}]
  %s1 = inlined_call_operand.vmem [shape: f32[1,128], index: 1, kind: input, shape index: {}]
  %s2 = inlined_call_operand.vmem [shape: f32[1,128], index: 2, kind: input, shape index: {}]
  %s3 = inlined_call_operand.vmem [shape: bf16[128,128], index: 3, kind: output, shape index: {}]
  %s4 = sld [smem:[#allocation0]]
  $region22: #{densenet_forward.184} parent=0
    _
  %s6 = ssub.s32 1, %s4
  %s7 = scalar_select 0, %s6, %s4
  // Predicated region
  $region2: #{densenet_forward.184} parent=0 // pred_check
    _
  $region3: #{densenet_forward.184} parent=0 // pred_check_branch
    %9 = sbr.rel (0) target = $region5
  $region4: #{densenet_forward.184} parent=0 // pred_region
    _
  $region5: #{densenet_forward.184} parent=0 // pred_fallthru
    _
  // Predicated region
  $region6: #{densenet_forward.184} parent=0 // pred_check
    _
  $region7: #{densenet_forward.184} parent=0 // pred_check_branch
    %11 = sbr.rel (0) target = $region9
  $region8: #{densenet_forward.184} parent=0 // pred_region
    _
  $region9: #{densenet_forward.184} parent=0 // pred_fallthru
    _
  // Predicated region
  $region10: #{densenet_forward.184} parent=0 // pred_check
    _
  $region11: #{densenet_forward.184} parent=0 // pred_check_branch
    %13 = sbr.rel (0) target = $region13
  $region12: #{densenet_forward.184} parent=0 // pred_region
    _
  $region13: #{densenet_forward.184} parent=0 // pred_fallthru
    _
  %v14 = vld [vmem:[%s0] sm:$0xff]
  %v15 = vld [vmem:[%s0 + $0x8] sm:$0xff]
  %v16 = vld [vmem:[%s0 + $0x10] sm:$0xff]
  %v17 = vld [vmem:[%s0 + $0x18] sm:$0xff]
  %v18 = vld [vmem:[%s0 + $0x20] sm:$0xff]
  %v19 = vld [vmem:[%s0 + $0x28] sm:$0xff]
  %v20 = vld [vmem:[%s0 + $0x30] sm:$0xff]
  %v21 = vld [vmem:[%s0 + $0x38] sm:$0xff]
  %v22 = vld [vmem:[%s0 + $0x40] sm:$0xff]
  %v23 = vld [vmem:[%s0 + $0x48] sm:$0xff]
  %v24 = vld [vmem:[%s0 + $0x50] sm:$0xff]
  %v25 = vld [vmem:[%s0 + $0x58] sm:$0xff]
  %v26 = vld [vmem:[%s0 + $0x60] sm:$0xff]
  %v27 = vld [vmem:[%s0 + $0x68] sm:$0xff]
  %v28 = vld [vmem:[%s0 + $0x70] sm:$0xff]
  %v29 = vld [vmem:[%s0 + $0x78] sm:$0xff]
  %v30 = vld [vmem:[%s1] sm:$0x1]
  %v32 = vlaneseq
  %v33 = vshrl.u32 %v32, 7
  %v34 = vsub.s32 0, %v33
  %v35 = vrot.slane %v30, %v34
  %v37 = vmul.f32 %v14, %v35
  %v38 = vmul.f32 %v15, %v35
  %v39 = vmul.f32 %v16, %v35
  %v40 = vmul.f32 %v17, %v35
  %v41 = vmul.f32 %v18, %v35
  %v42 = vmul.f32 %v19, %v35
  %v43 = vmul.f32 %v20, %v35
  %v44 = vmul.f32 %v21, %v35
  %v45 = vmul.f32 %v22, %v35
  %v46 = vmul.f32 %v23, %v35
  %v47 = vmul.f32 %v24, %v35
  %v48 = vmul.f32 %v25, %v35
  %v49 = vmul.f32 %v26, %v35
  %v50 = vmul.f32 %v27, %v35
  %v51 = vmul.f32 %v28, %v35
  %v52 = vmul.f32 %v29, %v35
  %v53 = vld [vmem:[%s2] sm:$0x1]
  %v55 = vlaneseq
  %v56 = vshrl.u32 %v55, 7
  %v57 = vsub.s32 0, %v56
  %v58 = vrot.slane %v53, %v57
  %v60 = vadd.f32 %v37, %v58
  %v61 = vadd.f32 %v38, %v58
  %v62 = vadd.f32 %v39, %v58
  %v63 = vadd.f32 %v40, %v58
  %v64 = vadd.f32 %v41, %v58
  %v65 = vadd.f32 %v42, %v58
  %v66 = vadd.f32 %v43, %v58
  %v67 = vadd.f32 %v44, %v58
  %v68 = vadd.f32 %v45, %v58
  %v69 = vadd.f32 %v46, %v58
  %v70 = vadd.f32 %v47, %v58
  %v71 = vadd.f32 %v48, %v58
  %v72 = vadd.f32 %v49, %v58
  %v73 = vadd.f32 %v50, %v58
  %v74 = vadd.f32 %v51, %v58
  %v75 = vadd.f32 %v52, %v58
  %v76 = vmax.f32 %v60, 0.0
  %v77 = vmax.f32 %v61, 0.0
  %v78 = vmax.f32 %v62, 0.0
  %v79 = vmax.f32 %v63, 0.0
  %v80 = vmax.f32 %v64, 0.0
  %v81 = vmax.f32 %v65, 0.0
  %v82 = vmax.f32 %v66, 0.0
  %v83 = vmax.f32 %v67, 0.0
  %v84 = vmax.f32 %v68, 0.0
  %v85 = vmax.f32 %v69, 0.0
  %v86 = vmax.f32 %v70, 0.0
  %v87 = vmax.f32 %v71, 0.0
  %v88 = vmax.f32 %v72, 0.0
  %v89 = vmax.f32 %v73, 0.0
  %v90 = vmax.f32 %v74, 0.0
  %v91 = vmax.f32 %v75, 0.0
  %v92 = vpack.c.bf16 %v77, %v76
  %v93 = vpack.c.bf16 %v79, %v78
  %v94 = vpack.c.bf16 %v81, %v80
  %v95 = vpack.c.bf16 %v83, %v82
  %v96 = vpack.c.bf16 %v85, %v84
  %v97 = vpack.c.bf16 %v87, %v86
  %v98 = vpack.c.bf16 %v89, %v88
  %v99 = vpack.c.bf16 %v91, %v90
  %v108 = vunpack.c.l.b16 %v92
  %v109 = vunpack.c.h.b16 %v92
  %v110 = vunpack.c.l.b16 %v93
  %v111 = vunpack.c.h.b16 %v93
  %v112 = vunpack.c.l.b16 %v94
  %v113 = vunpack.c.h.b16 %v94
  %v114 = vunpack.c.l.b16 %v95
  %v115 = vunpack.c.h.b16 %v95
  %v116 = vunpack.c.l.b16 %v96
  %v117 = vunpack.c.h.b16 %v96
  %v118 = vunpack.c.l.b16 %v97
  %v119 = vunpack.c.h.b16 %v97
  %v120 = vunpack.c.l.b16 %v98
  %v121 = vunpack.c.h.b16 %v98
  %v122 = vunpack.c.l.b16 %v99
  %v123 = vunpack.c.h.b16 %v99
  %v124 = vpack.c.b16 %v108, %v108
  %v125 = vpack.c.b16 %v109, %v109
  %v126 = vpack.c.b16 %v110, %v110
  %v127 = vpack.c.b16 %v111, %v111
  %v128 = vpack.c.b16 %v112, %v112
  %v129 = vpack.c.b16 %v113, %v113
  %v130 = vpack.c.b16 %v114, %v114
  %v131 = vpack.c.b16 %v115, %v115
  %v132 = vpack.c.b16 %v116, %v116
  %v133 = vpack.c.b16 %v117, %v117
  %v134 = vpack.c.b16 %v118, %v118
  %v135 = vpack.c.b16 %v119, %v119
  %v136 = vpack.c.b16 %v120, %v120
  %v137 = vpack.c.b16 %v121, %v121
  %v138 = vpack.c.b16 %v122, %v122
  %v139 = vpack.c.b16 %v123, %v123
  %156 = vst [vmem:[%s3] sm:$0xf] %v124
  %157 = vst [vmem:[%s3 + $0x4] sm:$0xf] %v125
  %158 = vst [vmem:[%s3 + $0x8] sm:$0xf] %v126
  %159 = vst [vmem:[%s3 + $0xc] sm:$0xf] %v127
  %160 = vst [vmem:[%s3 + $0x10] sm:$0xf] %v128
  %161 = vst [vmem:[%s3 + $0x14] sm:$0xf] %v129
  %162 = vst [vmem:[%s3 + $0x18] sm:$0xf] %v130
  %163 = vst [vmem:[%s3 + $0x1c] sm:$0xf] %v131
  %164 = vst [vmem:[%s3 + $0x20] sm:$0xf] %v132
  %165 = vst [vmem:[%s3 + $0x24] sm:$0xf] %v133
  %166 = vst [vmem:[%s3 + $0x28] sm:$0xf] %v134
  %167 = vst [vmem:[%s3 + $0x2c] sm:$0xf] %v135
  %168 = vst [vmem:[%s3 + $0x30] sm:$0xf] %v136
  %169 = vst [vmem:[%s3 + $0x34] sm:$0xf] %v137
  %170 = vst [vmem:[%s3 + $0x38] sm:$0xf] %v138
  %171 = vst [vmem:[%s3 + $0x3c] sm:$0xf] %v139
  // Predicated region
  $region14: #{densenet_forward.184} parent=0 // pred_check
    _
  $region15: #{densenet_forward.184} parent=0 // pred_check_branch
    %173 = sbr.rel (0) target = $region17
  $region16: #{densenet_forward.184} parent=0 // pred_region
    _
  $region17: #{densenet_forward.184} parent=0 // pred_fallthru
    _
  // Predicated region
  $region18: #{densenet_forward.184} parent=0 // pred_check
    _
  $region19: #{densenet_forward.184} parent=0 // pred_check_branch
    %175 = sbr.rel (0) target = $region21
  $region20: #{densenet_forward.184} parent=0 // pred_region
    _
  $region21: #{densenet_forward.184} parent=0 // pred_fallthru
    _

// kernel: densenet_forward.185
$region0: #{densenet_forward.185}
  #allocation0 [shape = 'u32[]', space=smem, size = 0x4, offset = 0x4, fixed_abs, tag = 'smem constant byte address 0x4 - core index']
  #allocation1 [shape = 'u32[144,128]{1,0:T(1,128)}', space=vmem, size = 0x12000, scoped, tag = 'internal scratch']
  #allocation2 [shape = 'f32[128,128]{1,0:T(8,128)}', space=vmem, size = 0x10000, scoped, tag = 'scratch operand']
  %s0 = inlined_call_operand.vmem [shape: bf16[128,128], index: 0, kind: input, shape index: {}]
  %s1 = inlined_call_operand.vmem [shape: bf16[128,128], index: 1, kind: input, shape index: {}]
  %s2 = inlined_call_operand.vmem [shape: f32[1,128], index: 2, kind: input, shape index: {}]
  %s3 = inlined_call_operand.vmem [shape: bf16[128,128], index: 3, kind: output, shape index: {}]
  %s4 = sld [smem:[#allocation0]]
  $region30: #{densenet_forward.185} parent=0
    _
  %s6 = ssub.s32 1, %s4
  %s7 = scalar_select 0, %s6, %s4
  // Predicated region
  $region2: #{densenet_forward.185} parent=0 // pred_check
    _
  $region3: #{densenet_forward.185} parent=0 // pred_check_branch
    %9 = sbr.rel (0) target = $region5
  $region4: #{densenet_forward.185} parent=0 // pred_region
    _
  $region5: #{densenet_forward.185} parent=0 // pred_fallthru
    _
  // Predicated region
  $region6: #{densenet_forward.185} parent=0 // pred_check
    _
  $region7: #{densenet_forward.185} parent=0 // pred_check_branch
    %11 = sbr.rel (0) target = $region9
  $region8: #{densenet_forward.185} parent=0 // pred_region
    _
  $region9: #{densenet_forward.185} parent=0 // pred_fallthru
    _
  // Predicated region
  $region10: #{densenet_forward.185} parent=0 // pred_check
    _
  $region11: #{densenet_forward.185} parent=0 // pred_check_branch
    %13 = sbr.rel (0) target = $region13
  $region12: #{densenet_forward.185} parent=0 // pred_region
    _
  $region13: #{densenet_forward.185} parent=0 // pred_fallthru
    _
  %p15 = scmp.eq.s32.totalorder 0, 0
  // Predicated region
  $region14: #{densenet_forward.185} parent=0 // pred_check
    %p16 = pneg %p15
  $region15: #{densenet_forward.185} parent=0 // pred_check_branch
    %18 = sbr.rel (%p16) target = $region17
  $region16: #{densenet_forward.185} parent=0 // pred_region
    %19 = vst [vmem:[#allocation2] sm:$0xff] 0.0
    %20 = vst [vmem:[#allocation2 + $0x8] sm:$0xff] 0.0
    %21 = vst [vmem:[#allocation2 + $0x10] sm:$0xff] 0.0
    %22 = vst [vmem:[#allocation2 + $0x18] sm:$0xff] 0.0
    %23 = vst [vmem:[#allocation2 + $0x20] sm:$0xff] 0.0
    %24 = vst [vmem:[#allocation2 + $0x28] sm:$0xff] 0.0
    %25 = vst [vmem:[#allocation2 + $0x30] sm:$0xff] 0.0
    %26 = vst [vmem:[#allocation2 + $0x38] sm:$0xff] 0.0
    %27 = vst [vmem:[#allocation2 + $0x40] sm:$0xff] 0.0
    %28 = vst [vmem:[#allocation2 + $0x48] sm:$0xff] 0.0
    %29 = vst [vmem:[#allocation2 + $0x50] sm:$0xff] 0.0
    %30 = vst [vmem:[#allocation2 + $0x58] sm:$0xff] 0.0
    %31 = vst [vmem:[#allocation2 + $0x60] sm:$0xff] 0.0
    %32 = vst [vmem:[#allocation2 + $0x68] sm:$0xff] 0.0
    %33 = vst [vmem:[#allocation2 + $0x70] sm:$0xff] 0.0
    %34 = vst [vmem:[#allocation2 + $0x78] sm:$0xff] 0.0
  $region17: #{densenet_forward.185} parent=0 // pred_fallthru
    _
  %v35 = vld [vmem:[#allocation2] sm:$0xff]
  %v36 = vld [vmem:[#allocation2 + $0x8] sm:$0xff]
  %v37 = vld [vmem:[#allocation2 + $0x10] sm:$0xff]
  %v38 = vld [vmem:[#allocation2 + $0x18] sm:$0xff]
  %v39 = vld [vmem:[#allocation2 + $0x20] sm:$0xff]
  %v40 = vld [vmem:[#allocation2 + $0x28] sm:$0xff]
  %v41 = vld [vmem:[#allocation2 + $0x30] sm:$0xff]
  %v42 = vld [vmem:[#allocation2 + $0x38] sm:$0xff]
  %v43 = vld [vmem:[#allocation2 + $0x40] sm:$0xff]
  %v44 = vld [vmem:[#allocation2 + $0x48] sm:$0xff]
  %v45 = vld [vmem:[#allocation2 + $0x50] sm:$0xff]
  %v46 = vld [vmem:[#allocation2 + $0x58] sm:$0xff]
  %v47 = vld [vmem:[#allocation2 + $0x60] sm:$0xff]
  %v48 = vld [vmem:[#allocation2 + $0x68] sm:$0xff]
  %v49 = vld [vmem:[#allocation2 + $0x70] sm:$0xff]
  %v50 = vld [vmem:[#allocation2 + $0x78] sm:$0xff]
  %v51 = vld [vmem:[%s0] sm:$0xf]
  %v52 = vld [vmem:[%s0 + $0x4] sm:$0xf]
  %v53 = vld [vmem:[%s0 + $0x8] sm:$0xf]
  %v54 = vld [vmem:[%s0 + $0xc] sm:$0xf]
  %v55 = vld [vmem:[%s0 + $0x10] sm:$0xf]
  %v56 = vld [vmem:[%s0 + $0x14] sm:$0xf]
  %v57 = vld [vmem:[%s0 + $0x18] sm:$0xf]
  %v58 = vld [vmem:[%s0 + $0x1c] sm:$0xf]
  %v59 = vld [vmem:[%s0 + $0x20] sm:$0xf]
  %v60 = vld [vmem:[%s0 + $0x24] sm:$0xf]
  %v61 = vld [vmem:[%s0 + $0x28] sm:$0xf]
  %v62 = vld [vmem:[%s0 + $0x2c] sm:$0xf]
  %v63 = vld [vmem:[%s0 + $0x30] sm:$0xf]
  %v64 = vld [vmem:[%s0 + $0x34] sm:$0xf]
  %v65 = vld [vmem:[%s0 + $0x38] sm:$0xf]
  %v66 = vld [vmem:[%s0 + $0x3c] sm:$0xf]
  %v67 = vld [vmem:[%s1] sm:$0xf]
  %v68 = vld [vmem:[%s1 + $0x4] sm:$0xf]
  %v69 = vld [vmem:[%s1 + $0x8] sm:$0xf]
  %v70 = vld [vmem:[%s1 + $0xc] sm:$0xf]
  %v71 = vld [vmem:[%s1 + $0x10] sm:$0xf]
  %v72 = vld [vmem:[%s1 + $0x14] sm:$0xf]
  %v73 = vld [vmem:[%s1 + $0x18] sm:$0xf]
  %v74 = vld [vmem:[%s1 + $0x1c] sm:$0xf]
  %v75 = vld [vmem:[%s1 + $0x20] sm:$0xf]
  %v76 = vld [vmem:[%s1 + $0x24] sm:$0xf]
  %v77 = vld [vmem:[%s1 + $0x28] sm:$0xf]
  %v78 = vld [vmem:[%s1 + $0x2c] sm:$0xf]
  %v79 = vld [vmem:[%s1 + $0x30] sm:$0xf]
  %v80 = vld [vmem:[%s1 + $0x34] sm:$0xf]
  %v81 = vld [vmem:[%s1 + $0x38] sm:$0xf]
  %v82 = vld [vmem:[%s1 + $0x3c] sm:$0xf]
  %v99 = vunpack.c.l.b16 %v51
  %v100 = vunpack.c.l.b16 %v52
  %v101 = vunpack.c.l.b16 %v53
  %v102 = vunpack.c.l.b16 %v54
  %v103 = vunpack.c.l.b16 %v55
  %v104 = vunpack.c.l.b16 %v56
  %v105 = vunpack.c.l.b16 %v57
  %v106 = vunpack.c.l.b16 %v58
  %v107 = vunpack.c.l.b16 %v59
  %v108 = vunpack.c.l.b16 %v60
  %v109 = vunpack.c.l.b16 %v61
  %v110 = vunpack.c.l.b16 %v62
  %v111 = vunpack.c.l.b16 %v63
  %v112 = vunpack.c.l.b16 %v64
  %v113 = vunpack.c.l.b16 %v65
  %v114 = vunpack.c.l.b16 %v66
  %v115 = vpack.c.b16 %v100, %v99
  %v116 = vpack.c.b16 %v102, %v101
  %v117 = vpack.c.b16 %v104, %v103
  %v118 = vpack.c.b16 %v106, %v105
  %v119 = vpack.c.b16 %v108, %v107
  %v120 = vpack.c.b16 %v110, %v109
  %v121 = vpack.c.b16 %v112, %v111
  %v122 = vpack.c.b16 %v114, %v113
  %v147 = vunpack.c.l.b16 %v67
  %v148 = vunpack.c.l.b16 %v68
  %v149 = vunpack.c.l.b16 %v69
  %v150 = vunpack.c.l.b16 %v70
  %v151 = vunpack.c.l.b16 %v71
  %v152 = vunpack.c.l.b16 %v72
  %v153 = vunpack.c.l.b16 %v73
  %v154 = vunpack.c.l.b16 %v74
  %v155 = vunpack.c.l.b16 %v75
  %v156 = vunpack.c.l.b16 %v76
  %v157 = vunpack.c.l.b16 %v77
  %v158 = vunpack.c.l.b16 %v78
  %v159 = vunpack.c.l.b16 %v79
  %v160 = vunpack.c.l.b16 %v80
  %v161 = vunpack.c.l.b16 %v81
  %v162 = vunpack.c.l.b16 %v82
  %v163 = vpack.c.b16 %v148, %v147
  %v164 = vpack.c.b16 %v150, %v149
  %v165 = vpack.c.b16 %v152, %v151
  %v166 = vpack.c.b16 %v154, %v153
  %v167 = vpack.c.b16 %v156, %v155
  %v168 = vpack.c.b16 %v158, %v157
  %v169 = vpack.c.b16 %v160, %v159
  %v170 = vpack.c.b16 %v162, %v161
  %179 = vmatprep.subr.bf16.mxu0 0
  %180 = vmatpush1.bf16.msra.mxu0 %v163
  %181 = vmatprep.subr.bf16.mxu0 0
  %182 = vmatpush1.bf16.msra.mxu0 %v164
  %183 = vmatprep.subr.bf16.mxu0 0
  %184 = vmatpush1.bf16.msra.mxu0 %v165
  %185 = vmatprep.subr.bf16.mxu0 0
  %186 = vmatpush1.bf16.msra.mxu0 %v166
  %187 = vmatprep.subr.bf16.mxu0 0
  %188 = vmatpush1.bf16.msra.mxu0 %v167
  %189 = vmatprep.subr.bf16.mxu0 0
  %190 = vmatpush1.bf16.msra.mxu0 %v168
  %191 = vmatprep.subr.bf16.mxu0 0
  %192 = vmatpush1.bf16.msra.mxu0 %v169
  %193 = vmatprep.subr.bf16.mxu0 0
  %194 = vmatpush1.bf16.msra.mxu0 %v170
  %195 = vmatprep.subr.bf16.mxu0 0
  %196 = vmatpush1.bf16.msra.mxu0 0
  %197 = vmatprep.subr.bf16.mxu0 0
  %198 = vmatpush1.bf16.msra.mxu0 0
  %199 = vmatprep.subr.bf16.mxu0 0
  %200 = vmatpush1.bf16.msra.mxu0 0
  %201 = vmatprep.subr.bf16.mxu0 0
  %202 = vmatpush1.bf16.msra.mxu0 0
  %203 = vmatprep.subr.bf16.mxu0 0
  %204 = vmatpush1.bf16.msra.mxu0 0
  %205 = vmatprep.subr.bf16.mxu0 0
  %206 = vmatpush1.bf16.msra.mxu0 0
  %207 = vmatprep.subr.bf16.mxu0 0
  %208 = vmatpush1.bf16.msra.mxu0 0
  %209 = vmatprep.subr.bf16.mxu0 0
  %210 = vmatpush1.bf16.msra.mxu0 0
  %211 = vmatprep.mubr.bf16.mxu0 0
  %212 = vmatmul.mubr.bf16.gmra.mrb[0].mxu0 %v115
  %v213 = vpop.f32.mrb[0].mxu0
  %v214 = vadd.f32 0.0, %v213
  %v215 = vpop.f32.mrb[0].mxu0
  %v216 = vpop.f32.mrb[0].mxu0
  %v217 = vadd.f32 0.0, %v216
  %v218 = vpop.f32.mrb[0].mxu0
  %219 = vmatprep.mubr.bf16.mxu0 0
  %220 = vmatmul.mubr.bf16.gmra.mrb[0].mxu0 %v116
  %v221 = vpop.f32.mrb[0].mxu0
  %v222 = vadd.f32 0.0, %v221
  %v223 = vpop.f32.mrb[0].mxu0
  %v224 = vpop.f32.mrb[0].mxu0
  %v225 = vadd.f32 0.0, %v224
  %v226 = vpop.f32.mrb[0].mxu0
  %227 = vmatprep.mubr.bf16.mxu0 0
  %228 = vmatmul.mubr.bf16.gmra.mrb[0].mxu0 %v117
  %v229 = vpop.f32.mrb[0].mxu0
  %v230 = vadd.f32 0.0, %v229
  %v231 = vpop.f32.mrb[0].mxu0
  %v232 = vpop.f32.mrb[0].mxu0
  %v233 = vadd.f32 0.0, %v232
  %v234 = vpop.f32.mrb[0].mxu0
  %235 = vmatprep.mubr.bf16.mxu0 0
  %236 = vmatmul.mubr.bf16.gmra.mrb[0].mxu0 %v118
  %v237 = vpop.f32.mrb[0].mxu0
  %v238 = vadd.f32 0.0, %v237
  %v239 = vpop.f32.mrb[0].mxu0
  %v240 = vpop.f32.mrb[0].mxu0
  %v241 = vadd.f32 0.0, %v240
  %v242 = vpop.f32.mrb[0].mxu0
  %243 = vmatprep.mubr.bf16.mxu0 0
  %244 = vmatmul.mubr.bf16.gmra.mrb[0].mxu0 %v119
  %v245 = vpop.f32.mrb[0].mxu0
  %v246 = vadd.f32 0.0, %v245
  %v247 = vpop.f32.mrb[0].mxu0
  %v248 = vpop.f32.mrb[0].mxu0
  %v249 = vadd.f32 0.0, %v248
  %v250 = vpop.f32.mrb[0].mxu0
  %251 = vmatprep.mubr.bf16.mxu0 0
  %252 = vmatmul.mubr.bf16.gmra.mrb[0].mxu0 %v120
  %v253 = vpop.f32.mrb[0].mxu0
  %v254 = vadd.f32 0.0, %v253
  %v255 = vpop.f32.mrb[0].mxu0
  %v256 = vpop.f32.mrb[0].mxu0
  %v257 = vadd.f32 0.0, %v256
  %v258 = vpop.f32.mrb[0].mxu0
  %259 = vmatprep.mubr.bf16.mxu0 0
  %260 = vmatmul.mubr.bf16.gmra.mrb[0].mxu0 %v121
  %v261 = vpop.f32.mrb[0].mxu0
  %v262 = vadd.f32 0.0, %v261
  %v263 = vpop.f32.mrb[0].mxu0
  %v264 = vpop.f32.mrb[0].mxu0
  %v265 = vadd.f32 0.0, %v264
  %v266 = vpop.f32.mrb[0].mxu0
  %267 = vmatprep.mubr.bf16.mxu0 0
  %268 = vmatmul.mubr.bf16.gmra.mrb[0].mxu0 %v122
  %v269 = vpop.f32.mrb[0].mxu0
  %v270 = vadd.f32 0.0, %v269
  %v271 = vpop.f32.mrb[0].mxu0
  %v272 = vpop.f32.mrb[0].mxu0
  %v273 = vadd.f32 0.0, %v272
  %v274 = vpop.f32.mrb[0].mxu0
  %275 = vdwg.mxu0
  %v276 = vadd.f32 %v35, %v214
  %v277 = vadd.f32 %v36, %v217
  %v278 = vadd.f32 %v37, %v222
  %v279 = vadd.f32 %v38, %v225
  %v280 = vadd.f32 %v39, %v230
  %v281 = vadd.f32 %v40, %v233
  %v282 = vadd.f32 %v41, %v238
  %v283 = vadd.f32 %v42, %v241
  %v284 = vadd.f32 %v43, %v246
  %v285 = vadd.f32 %v44, %v249
  %v286 = vadd.f32 %v45, %v254
  %v287 = vadd.f32 %v46, %v257
  %v288 = vadd.f32 %v47, %v262
  %v289 = vadd.f32 %v48, %v265
  %v290 = vadd.f32 %v49, %v270
  %v291 = vadd.f32 %v50, %v273
  %292 = vst [vmem:[#allocation2] sm:$0xff] %v276
  %293 = vst [vmem:[#allocation2 + $0x8] sm:$0xff] %v277
  %294 = vst [vmem:[#allocation2 + $0x10] sm:$0xff] %v278
  %295 = vst [vmem:[#allocation2 + $0x18] sm:$0xff] %v279
  %296 = vst [vmem:[#allocation2 + $0x20] sm:$0xff] %v280
  %297 = vst [vmem:[#allocation2 + $0x28] sm:$0xff] %v281
  %298 = vst [vmem:[#allocation2 + $0x30] sm:$0xff] %v282
  %299 = vst [vmem:[#allocation2 + $0x38] sm:$0xff] %v283
  %300 = vst [vmem:[#allocation2 + $0x40] sm:$0xff] %v284
  %301 = vst [vmem:[#allocation2 + $0x48] sm:$0xff] %v285
  %302 = vst [vmem:[#allocation2 + $0x50] sm:$0xff] %v286
  %303 = vst [vmem:[#allocation2 + $0x58] sm:$0xff] %v287
  %304 = vst [vmem:[#allocation2 + $0x60] sm:$0xff] %v288
  %305 = vst [vmem:[#allocation2 + $0x68] sm:$0xff] %v289
  %306 = vst [vmem:[#allocation2 + $0x70] sm:$0xff] %v290
  %307 = vst [vmem:[#allocation2 + $0x78] sm:$0xff] %v291
  // Predicated region
  $region18: #{densenet_forward.185} parent=0 // pred_check
    %p308 = pneg %p15
  $region19: #{densenet_forward.185} parent=0 // pred_check_branch
    %310 = sbr.rel (%p308) target = $region21
  $region20: #{densenet_forward.185} parent=0 // pred_region
    %v311 = vld [vmem:[#allocation2] sm:$0xff]
    %v312 = vld [vmem:[#allocation2 + $0x8] sm:$0xff]
    %v313 = vld [vmem:[#allocation2 + $0x10] sm:$0xff]
    %v314 = vld [vmem:[#allocation2 + $0x18] sm:$0xff]
    %v315 = vld [vmem:[#allocation2 + $0x20] sm:$0xff]
    %v316 = vld [vmem:[#allocation2 + $0x28] sm:$0xff]
    %v317 = vld [vmem:[#allocation2 + $0x30] sm:$0xff]
    %v318 = vld [vmem:[#allocation2 + $0x38] sm:$0xff]
    %v319 = vld [vmem:[#allocation2 + $0x40] sm:$0xff]
    %v320 = vld [vmem:[#allocation2 + $0x48] sm:$0xff]
    %v321 = vld [vmem:[#allocation2 + $0x50] sm:$0xff]
    %v322 = vld [vmem:[#allocation2 + $0x58] sm:$0xff]
    %v323 = vld [vmem:[#allocation2 + $0x60] sm:$0xff]
    %v324 = vld [vmem:[#allocation2 + $0x68] sm:$0xff]
    %v325 = vld [vmem:[#allocation2 + $0x70] sm:$0xff]
    %v326 = vld [vmem:[#allocation2 + $0x78] sm:$0xff]
    %v327 = vld [vmem:[%s2] sm:$0x1]
    %v329 = vlaneseq
    %v330 = vshrl.u32 %v329, 7
    %v331 = vsub.s32 0, %v330
    %v332 = vrot.slane %v327, %v331
    %v334 = vadd.f32 %v311, %v332
    %v335 = vadd.f32 %v312, %v332
    %v336 = vadd.f32 %v313, %v332
    %v337 = vadd.f32 %v314, %v332
    %v338 = vadd.f32 %v315, %v332
    %v339 = vadd.f32 %v316, %v332
    %v340 = vadd.f32 %v317, %v332
    %v341 = vadd.f32 %v318, %v332
    %v342 = vadd.f32 %v319, %v332
    %v343 = vadd.f32 %v320, %v332
    %v344 = vadd.f32 %v321, %v332
    %v345 = vadd.f32 %v322, %v332
    %v346 = vadd.f32 %v323, %v332
    %v347 = vadd.f32 %v324, %v332
    %v348 = vadd.f32 %v325, %v332
    %v349 = vadd.f32 %v326, %v332
    %v350 = vpack.c.bf16 %v335, %v334
    %v351 = vpack.c.bf16 %v337, %v336
    %v352 = vpack.c.bf16 %v339, %v338
    %v353 = vpack.c.bf16 %v341, %v340
    %v354 = vpack.c.bf16 %v343, %v342
    %v355 = vpack.c.bf16 %v345, %v344
    %v356 = vpack.c.bf16 %v347, %v346
    %v357 = vpack.c.bf16 %v349, %v348
    %v366 = vunpack.c.l.b16 %v350
    %v367 = vunpack.c.h.b16 %v350
    %v368 = vunpack.c.l.b16 %v351
    %v369 = vunpack.c.h.b16 %v351
    %v370 = vunpack.c.l.b16 %v352
    %v371 = vunpack.c.h.b16 %v352
    %v372 = vunpack.c.l.b16 %v353
    %v373 = vunpack.c.h.b16 %v353
    %v374 = vunpack.c.l.b16 %v354
    %v375 = vunpack.c.h.b16 %v354
    %v376 = vunpack.c.l.b16 %v355
    %v377 = vunpack.c.h.b16 %v355
    %v378 = vunpack.c.l.b16 %v356
    %v379 = vunpack.c.h.b16 %v356
    %v380 = vunpack.c.l.b16 %v357
    %v381 = vunpack.c.h.b16 %v357
    %v382 = vpack.c.b16 %v366, %v366
    %v383 = vpack.c.b16 %v367, %v367
    %v384 = vpack.c.b16 %v368, %v368
    %v385 = vpack.c.b16 %v369, %v369
    %v386 = vpack.c.b16 %v370, %v370
    %v387 = vpack.c.b16 %v371, %v371
    %v388 = vpack.c.b16 %v372, %v372
    %v389 = vpack.c.b16 %v373, %v373
    %v390 = vpack.c.b16 %v374, %v374
    %v391 = vpack.c.b16 %v375, %v375
    %v392 = vpack.c.b16 %v376, %v376
    %v393 = vpack.c.b16 %v377, %v377
    %v394 = vpack.c.b16 %v378, %v378
    %v395 = vpack.c.b16 %v379, %v379
    %v396 = vpack.c.b16 %v380, %v380
    %v397 = vpack.c.b16 %v381, %v381
    %414 = vst [vmem:[%s3] sm:$0xf] %v382
    %415 = vst [vmem:[%s3 + $0x4] sm:$0xf] %v383
    %416 = vst [vmem:[%s3 + $0x8] sm:$0xf] %v384
    %417 = vst [vmem:[%s3 + $0xc] sm:$0xf] %v385
    %418 = vst [vmem:[%s3 + $0x10] sm:$0xf] %v386
    %419 = vst [vmem:[%s3 + $0x14] sm:$0xf] %v387
    %420 = vst [vmem:[%s3 + $0x18] sm:$0xf] %v388
    %421 = vst [vmem:[%s3 + $0x1c] sm:$0xf] %v389
    %422 = vst [vmem:[%s3 + $0x20] sm:$0xf] %v390
    %423 = vst [vmem:[%s3 + $0x24] sm:$0xf] %v391
    %424 = vst [vmem:[%s3 + $0x28] sm:$0xf] %v392
    %425 = vst [vmem:[%s3 + $0x2c] sm:$0xf] %v393
    %426 = vst [vmem:[%s3 + $0x30] sm:$0xf] %v394
    %427 = vst [vmem:[%s3 + $0x34] sm:$0xf] %v395
    %428 = vst [vmem:[%s3 + $0x38] sm:$0xf] %v396
    %429 = vst [vmem:[%s3 + $0x3c] sm:$0xf] %v397
  $region21: #{densenet_forward.185} parent=0 // pred_fallthru
    _
  // Predicated region
  $region22: #{densenet_forward.185} parent=0 // pred_check
    _
  $region23: #{densenet_forward.185} parent=0 // pred_check_branch
    %431 = sbr.rel (0) target = $region25
  $region24: #{densenet_forward.185} parent=0 // pred_region
    _
  $region25: #{densenet_forward.185} parent=0 // pred_fallthru
    _
  // Predicated region
  $region26: #{densenet_forward.185} parent=0 // pred_check
    _
  $region27: #{densenet_forward.185} parent=0 // pred_check_branch
    %433 = sbr.rel (0) target = $region29
  $region28: #{densenet_forward.185} parent=0 // pred_region
    _
  $region29: #{densenet_forward.185} parent=0 // pred_fallthru
    _

// kernel: densenet_forward.201
$region0: #{densenet_forward.201}
  #allocation0 [shape = 'u32[]', space=smem, size = 0x4, offset = 0x4, fixed_abs, tag = 'smem constant byte address 0x4 - core index']
  #allocation1 [shape = 'u32[144,128]{1,0:T(1,128)}', space=vmem, size = 0x12000, scoped, tag = 'internal scratch']
  #allocation2 [shape = 'f32[128,128]{1,0:T(8,128)}', space=vmem, size = 0x10000, scoped, tag = 'scratch operand']
  %s0 = inlined_call_operand.vmem [shape: bf16[128,128], index: 0, kind: input, shape index: {}]
  %s1 = inlined_call_operand.vmem [shape: f32[1,128], index: 1, kind: input, shape index: {}]
  %s2 = inlined_call_operand.vmem [shape: f32[1,128], index: 2, kind: input, shape index: {}]
  %s3 = inlined_call_operand.vmem [shape: bf16[128,128], index: 3, kind: input, shape index: {}]
  %s4 = inlined_call_operand.vmem [shape: f32[1,128], index: 4, kind: input, shape index: {}]
  %s5 = inlined_call_operand.vmem [shape: bf16[128,128], index: 5, kind: output, shape index: {}]
  %s6 = sld [smem:[#allocation0]]
  $region38: #{densenet_forward.201} parent=0
    _
  %s8 = ssub.s32 1, %s6
  %s9 = scalar_select 0, %s8, %s6
  // Predicated region
  $region2: #{densenet_forward.201} parent=0 // pred_check
    _
  $region3: #{densenet_forward.201} parent=0 // pred_check_branch
    %11 = sbr.rel (0) target = $region5
  $region4: #{densenet_forward.201} parent=0 // pred_region
    _
  $region5: #{densenet_forward.201} parent=0 // pred_fallthru
    _
  // Predicated region
  $region6: #{densenet_forward.201} parent=0 // pred_check
    _
  $region7: #{densenet_forward.201} parent=0 // pred_check_branch
    %13 = sbr.rel (0) target = $region9
  $region8: #{densenet_forward.201} parent=0 // pred_region
    _
  $region9: #{densenet_forward.201} parent=0 // pred_fallthru
    _
  // Predicated region
  $region10: #{densenet_forward.201} parent=0 // pred_check
    _
  $region11: #{densenet_forward.201} parent=0 // pred_check_branch
    %15 = sbr.rel (0) target = $region13
  $region12: #{densenet_forward.201} parent=0 // pred_region
    _
  $region13: #{densenet_forward.201} parent=0 // pred_fallthru
    _
  // Predicated region
  $region14: #{densenet_forward.201} parent=0 // pred_check
    _
  $region15: #{densenet_forward.201} parent=0 // pred_check_branch
    %17 = sbr.rel (0) target = $region17
  $region16: #{densenet_forward.201} parent=0 // pred_region
    _
  $region17: #{densenet_forward.201} parent=0 // pred_fallthru
    _
  // Predicated region
  $region18: #{densenet_forward.201} parent=0 // pred_check
    _
  $region19: #{densenet_forward.201} parent=0 // pred_check_branch
    %19 = sbr.rel (0) target = $region21
  $region20: #{densenet_forward.201} parent=0 // pred_region
    _
  $region21: #{densenet_forward.201} parent=0 // pred_fallthru
    _
  %p21 = scmp.eq.s32.totalorder 0, 0
  // Predicated region
  $region22: #{densenet_forward.201} parent=0 // pred_check
    %p22 = pneg %p21
  $region23: #{densenet_forward.201} parent=0 // pred_check_branch
    %24 = sbr.rel (%p22) target = $region25
  $region24: #{densenet_forward.201} parent=0 // pred_region
    %25 = vst [vmem:[#allocation2] sm:$0xff] 0.0
    %26 = vst [vmem:[#allocation2 + $0x8] sm:$0xff] 0.0
    %27 = vst [vmem:[#allocation2 + $0x10] sm:$0xff] 0.0
    %28 = vst [vmem:[#allocation2 + $0x18] sm:$0xff] 0.0
    %29 = vst [vmem:[#allocation2 + $0x20] sm:$0xff] 0.0
    %30 = vst [vmem:[#allocation2 + $0x28] sm:$0xff] 0.0
    %31 = vst [vmem:[#allocation2 + $0x30] sm:$0xff] 0.0
    %32 = vst [vmem:[#allocation2 + $0x38] sm:$0xff] 0.0
    %33 = vst [vmem:[#allocation2 + $0x40] sm:$0xff] 0.0
    %34 = vst [vmem:[#allocation2 + $0x48] sm:$0xff] 0.0
    %35 = vst [vmem:[#allocation2 + $0x50] sm:$0xff] 0.0
    %36 = vst [vmem:[#allocation2 + $0x58] sm:$0xff] 0.0
    %37 = vst [vmem:[#allocation2 + $0x60] sm:$0xff] 0.0
    %38 = vst [vmem:[#allocation2 + $0x68] sm:$0xff] 0.0
    %39 = vst [vmem:[#allocation2 + $0x70] sm:$0xff] 0.0
    %40 = vst [vmem:[#allocation2 + $0x78] sm:$0xff] 0.0
  $region25: #{densenet_forward.201} parent=0 // pred_fallthru
    _
  %v41 = vld [vmem:[%s0] sm:$0xf]
  %v42 = vld [vmem:[%s0 + $0x4] sm:$0xf]
  %v43 = vld [vmem:[%s0 + $0x8] sm:$0xf]
  %v44 = vld [vmem:[%s0 + $0xc] sm:$0xf]
  %v45 = vld [vmem:[%s0 + $0x10] sm:$0xf]
  %v46 = vld [vmem:[%s0 + $0x14] sm:$0xf]
  %v47 = vld [vmem:[%s0 + $0x18] sm:$0xf]
  %v48 = vld [vmem:[%s0 + $0x1c] sm:$0xf]
  %v49 = vld [vmem:[%s0 + $0x20] sm:$0xf]
  %v50 = vld [vmem:[%s0 + $0x24] sm:$0xf]
  %v51 = vld [vmem:[%s0 + $0x28] sm:$0xf]
  %v52 = vld [vmem:[%s0 + $0x2c] sm:$0xf]
  %v53 = vld [vmem:[%s0 + $0x30] sm:$0xf]
  %v54 = vld [vmem:[%s0 + $0x34] sm:$0xf]
  %v55 = vld [vmem:[%s0 + $0x38] sm:$0xf]
  %v56 = vld [vmem:[%s0 + $0x3c] sm:$0xf]
  %v57 = vunpack.c.l.bf16 %v41
  %v58 = vunpack.c.l.bf16 %v42
  %v59 = vunpack.c.l.bf16 %v43
  %v60 = vunpack.c.l.bf16 %v44
  %v61 = vunpack.c.l.bf16 %v45
  %v62 = vunpack.c.l.bf16 %v46
  %v63 = vunpack.c.l.bf16 %v47
  %v64 = vunpack.c.l.bf16 %v48
  %v65 = vunpack.c.l.bf16 %v49
  %v66 = vunpack.c.l.bf16 %v50
  %v67 = vunpack.c.l.bf16 %v51
  %v68 = vunpack.c.l.bf16 %v52
  %v69 = vunpack.c.l.bf16 %v53
  %v70 = vunpack.c.l.bf16 %v54
  %v71 = vunpack.c.l.bf16 %v55
  %v72 = vunpack.c.l.bf16 %v56
  %v73 = vld [vmem:[%s1] sm:$0x1]
  %v75 = vlaneseq
  %v76 = vshrl.u32 %v75, 7
  %v77 = vsub.s32 0, %v76
  %v78 = vrot.slane %v73, %v77
  %v80 = vmul.f32 %v57, %v78
  %v81 = vmul.f32 %v58, %v78
  %v82 = vmul.f32 %v59, %v78
  %v83 = vmul.f32 %v60, %v78
  %v84 = vmul.f32 %v61, %v78
  %v85 = vmul.f32 %v62, %v78
  %v86 = vmul.f32 %v63, %v78
  %v87 = vmul.f32 %v64, %v78
  %v88 = vmul.f32 %v65, %v78
  %v89 = vmul.f32 %v66, %v78
  %v90 = vmul.f32 %v67, %v78
  %v91 = vmul.f32 %v68, %v78
  %v92 = vmul.f32 %v69, %v78
  %v93 = vmul.f32 %v70, %v78
  %v94 = vmul.f32 %v71, %v78
  %v95 = vmul.f32 %v72, %v78
  %v96 = vld [vmem:[%s2] sm:$0x1]
  %v98 = vlaneseq
  %v99 = vshrl.u32 %v98, 7
  %v100 = vsub.s32 0, %v99
  %v101 = vrot.slane %v96, %v100
  %v103 = vadd.f32 %v80, %v101
  %v104 = vadd.f32 %v81, %v101
  %v105 = vadd.f32 %v82, %v101
  %v106 = vadd.f32 %v83, %v101
  %v107 = vadd.f32 %v84, %v101
  %v108 = vadd.f32 %v85, %v101
  %v109 = vadd.f32 %v86, %v101
  %v110 = vadd.f32 %v87, %v101
  %v111 = vadd.f32 %v88, %v101
  %v112 = vadd.f32 %v89, %v101
  %v113 = vadd.f32 %v90, %v101
  %v114 = vadd.f32 %v91, %v101
  %v115 = vadd.f32 %v92, %v101
  %v116 = vadd.f32 %v93, %v101
  %v117 = vadd.f32 %v94, %v101
  %v118 = vadd.f32 %v95, %v101
  %v119 = vmax.f32 %v103, 0.0
  %v120 = vmax.f32 %v104, 0.0
  %v121 = vmax.f32 %v105, 0.0
  %v122 = vmax.f32 %v106, 0.0
  %v123 = vmax.f32 %v107, 0.0
  %v124 = vmax.f32 %v108, 0.0
  %v125 = vmax.f32 %v109, 0.0
  %v126 = vmax.f32 %v110, 0.0
  %v127 = vmax.f32 %v111, 0.0
  %v128 = vmax.f32 %v112, 0.0
  %v129 = vmax.f32 %v113, 0.0
  %v130 = vmax.f32 %v114, 0.0
  %v131 = vmax.f32 %v115, 0.0
  %v132 = vmax.f32 %v116, 0.0
  %v133 = vmax.f32 %v117, 0.0
  %v134 = vmax.f32 %v118, 0.0
  %v135 = vld [vmem:[#allocation2] sm:$0xff]
  %v136 = vld [vmem:[#allocation2 + $0x8] sm:$0xff]
  %v137 = vld [vmem:[#allocation2 + $0x10] sm:$0xff]
  %v138 = vld [vmem:[#allocation2 + $0x18] sm:$0xff]
  %v139 = vld [vmem:[#allocation2 + $0x20] sm:$0xff]
  %v140 = vld [vmem:[#allocation2 + $0x28] sm:$0xff]
  %v141 = vld [vmem:[#allocation2 + $0x30] sm:$0xff]
  %v142 = vld [vmem:[#allocation2 + $0x38] sm:$0xff]
  %v143 = vld [vmem:[#allocation2 + $0x40] sm:$0xff]
  %v144 = vld [vmem:[#allocation2 + $0x48] sm:$0xff]
  %v145 = vld [vmem:[#allocation2 + $0x50] sm:$0xff]
  %v146 = vld [vmem:[#allocation2 + $0x58] sm:$0xff]
  %v147 = vld [vmem:[#allocation2 + $0x60] sm:$0xff]
  %v148 = vld [vmem:[#allocation2 + $0x68] sm:$0xff]
  %v149 = vld [vmem:[#allocation2 + $0x70] sm:$0xff]
  %v150 = vld [vmem:[#allocation2 + $0x78] sm:$0xff]
  %v151 = vpack.c.bf16 %v120, %v119
  %v152 = vpack.c.bf16 %v122, %v121
  %v153 = vpack.c.bf16 %v124, %v123
  %v154 = vpack.c.bf16 %v126, %v125
  %v155 = vpack.c.bf16 %v128, %v127
  %v156 = vpack.c.bf16 %v130, %v129
  %v157 = vpack.c.bf16 %v132, %v131
  %v158 = vpack.c.bf16 %v134, %v133
  %v159 = vld [vmem:[%s3] sm:$0xf]
  %v160 = vld [vmem:[%s3 + $0x4] sm:$0xf]
  %v161 = vld [vmem:[%s3 + $0x8] sm:$0xf]
  %v162 = vld [vmem:[%s3 + $0xc] sm:$0xf]
  %v163 = vld [vmem:[%s3 + $0x10] sm:$0xf]
  %v164 = vld [vmem:[%s3 + $0x14] sm:$0xf]
  %v165 = vld [vmem:[%s3 + $0x18] sm:$0xf]
  %v166 = vld [vmem:[%s3 + $0x1c] sm:$0xf]
  %v167 = vld [vmem:[%s3 + $0x20] sm:$0xf]
  %v168 = vld [vmem:[%s3 + $0x24] sm:$0xf]
  %v169 = vld [vmem:[%s3 + $0x28] sm:$0xf]
  %v170 = vld [vmem:[%s3 + $0x2c] sm:$0xf]
  %v171 = vld [vmem:[%s3 + $0x30] sm:$0xf]
  %v172 = vld [vmem:[%s3 + $0x34] sm:$0xf]
  %v173 = vld [vmem:[%s3 + $0x38] sm:$0xf]
  %v174 = vld [vmem:[%s3 + $0x3c] sm:$0xf]
  %v191 = vunpack.c.l.b16 %v159
  %v192 = vunpack.c.l.b16 %v160
  %v193 = vunpack.c.l.b16 %v161
  %v194 = vunpack.c.l.b16 %v162
  %v195 = vunpack.c.l.b16 %v163
  %v196 = vunpack.c.l.b16 %v164
  %v197 = vunpack.c.l.b16 %v165
  %v198 = vunpack.c.l.b16 %v166
  %v199 = vunpack.c.l.b16 %v167
  %v200 = vunpack.c.l.b16 %v168
  %v201 = vunpack.c.l.b16 %v169
  %v202 = vunpack.c.l.b16 %v170
  %v203 = vunpack.c.l.b16 %v171
  %v204 = vunpack.c.l.b16 %v172
  %v205 = vunpack.c.l.b16 %v173
  %v206 = vunpack.c.l.b16 %v174
  %v207 = vpack.c.b16 %v192, %v191
  %v208 = vpack.c.b16 %v194, %v193
  %v209 = vpack.c.b16 %v196, %v195
  %v210 = vpack.c.b16 %v198, %v197
  %v211 = vpack.c.b16 %v200, %v199
  %v212 = vpack.c.b16 %v202, %v201
  %v213 = vpack.c.b16 %v204, %v203
  %v214 = vpack.c.b16 %v206, %v205
  %223 = vmatprep.subr.bf16.mxu0 0
  %224 = vmatpush1.bf16.msra.mxu0 %v207
  %225 = vmatprep.subr.bf16.mxu0 0
  %226 = vmatpush1.bf16.msra.mxu0 %v208
  %227 = vmatprep.subr.bf16.mxu0 0
  %228 = vmatpush1.bf16.msra.mxu0 %v209
  %229 = vmatprep.subr.bf16.mxu0 0
  %230 = vmatpush1.bf16.msra.mxu0 %v210
  %231 = vmatprep.subr.bf16.mxu0 0
  %232 = vmatpush1.bf16.msra.mxu0 %v211
  %233 = vmatprep.subr.bf16.mxu0 0
  %234 = vmatpush1.bf16.msra.mxu0 %v212
  %235 = vmatprep.subr.bf16.mxu0 0
  %236 = vmatpush1.bf16.msra.mxu0 %v213
  %237 = vmatprep.subr.bf16.mxu0 0
  %238 = vmatpush1.bf16.msra.mxu0 %v214
  %239 = vmatprep.subr.bf16.mxu0 0
  %240 = vmatpush1.bf16.msra.mxu0 0
  %241 = vmatprep.subr.bf16.mxu0 0
  %242 = vmatpush1.bf16.msra.mxu0 0
  %243 = vmatprep.subr.bf16.mxu0 0
  %244 = vmatpush1.bf16.msra.mxu0 0
  %245 = vmatprep.subr.bf16.mxu0 0
  %246 = vmatpush1.bf16.msra.mxu0 0
  %247 = vmatprep.subr.bf16.mxu0 0
  %248 = vmatpush1.bf16.msra.mxu0 0
  %249 = vmatprep.subr.bf16.mxu0 0
  %250 = vmatpush1.bf16.msra.mxu0 0
  %251 = vmatprep.subr.bf16.mxu0 0
  %252 = vmatpush1.bf16.msra.mxu0 0
  %253 = vmatprep.subr.bf16.mxu0 0
  %254 = vmatpush1.bf16.msra.mxu0 0
  %255 = vmatprep.mubr.bf16.mxu0 0
  %256 = vmatmul.mubr.bf16.gmra.mrb[0].mxu0 %v151
  %v257 = vpop.f32.mrb[0].mxu0
  %v258 = vadd.f32 0.0, %v257
  %v259 = vpop.f32.mrb[0].mxu0
  %v260 = vpop.f32.mrb[0].mxu0
  %v261 = vadd.f32 0.0, %v260
  %v262 = vpop.f32.mrb[0].mxu0
  %263 = vmatprep.mubr.bf16.mxu0 0
  %264 = vmatmul.mubr.bf16.gmra.mrb[0].mxu0 %v152
  %v265 = vpop.f32.mrb[0].mxu0
  %v266 = vadd.f32 0.0, %v265
  %v267 = vpop.f32.mrb[0].mxu0
  %v268 = vpop.f32.mrb[0].mxu0
  %v269 = vadd.f32 0.0, %v268
  %v270 = vpop.f32.mrb[0].mxu0
  %271 = vmatprep.mubr.bf16.mxu0 0
  %272 = vmatmul.mubr.bf16.gmra.mrb[0].mxu0 %v153
  %v273 = vpop.f32.mrb[0].mxu0
  %v274 = vadd.f32 0.0, %v273
  %v275 = vpop.f32.mrb[0].mxu0
  %v276 = vpop.f32.mrb[0].mxu0
  %v277 = vadd.f32 0.0, %v276
  %v278 = vpop.f32.mrb[0].mxu0
  %279 = vmatprep.mubr.bf16.mxu0 0
  %280 = vmatmul.mubr.bf16.gmra.mrb[0].mxu0 %v154
  %v281 = vpop.f32.mrb[0].mxu0
  %v282 = vadd.f32 0.0, %v281
  %v283 = vpop.f32.mrb[0].mxu0
  %v284 = vpop.f32.mrb[0].mxu0
  %v285 = vadd.f32 0.0, %v284
  %v286 = vpop.f32.mrb[0].mxu0
  %287 = vmatprep.mubr.bf16.mxu0 0
  %288 = vmatmul.mubr.bf16.gmra.mrb[0].mxu0 %v155
  %v289 = vpop.f32.mrb[0].mxu0
  %v290 = vadd.f32 0.0, %v289
  %v291 = vpop.f32.mrb[0].mxu0
  %v292 = vpop.f32.mrb[0].mxu0
  %v293 = vadd.f32 0.0, %v292
  %v294 = vpop.f32.mrb[0].mxu0
  %295 = vmatprep.mubr.bf16.mxu0 0
  %296 = vmatmul.mubr.bf16.gmra.mrb[0].mxu0 %v156
  %v297 = vpop.f32.mrb[0].mxu0
  %v298 = vadd.f32 0.0, %v297
  %v299 = vpop.f32.mrb[0].mxu0
  %v300 = vpop.f32.mrb[0].mxu0
  %v301 = vadd.f32 0.0, %v300
  %v302 = vpop.f32.mrb[0].mxu0
  %303 = vmatprep.mubr.bf16.mxu0 0
  %304 = vmatmul.mubr.bf16.gmra.mrb[0].mxu0 %v157
  %v305 = vpop.f32.mrb[0].mxu0
  %v306 = vadd.f32 0.0, %v305
  %v307 = vpop.f32.mrb[0].mxu0
  %v308 = vpop.f32.mrb[0].mxu0
  %v309 = vadd.f32 0.0, %v308
  %v310 = vpop.f32.mrb[0].mxu0
  %311 = vmatprep.mubr.bf16.mxu0 0
  %312 = vmatmul.mubr.bf16.gmra.mrb[0].mxu0 %v158
  %v313 = vpop.f32.mrb[0].mxu0
  %v314 = vadd.f32 0.0, %v313
  %v315 = vpop.f32.mrb[0].mxu0
  %v316 = vpop.f32.mrb[0].mxu0
  %v317 = vadd.f32 0.0, %v316
  %v318 = vpop.f32.mrb[0].mxu0
  %319 = vdwg.mxu0
  %v320 = vadd.f32 %v135, %v258
  %v321 = vadd.f32 %v136, %v261
  %v322 = vadd.f32 %v137, %v266
  %v323 = vadd.f32 %v138, %v269
  %v324 = vadd.f32 %v139, %v274
  %v325 = vadd.f32 %v140, %v277
  %v326 = vadd.f32 %v141, %v282
  %v327 = vadd.f32 %v142, %v285
  %v328 = vadd.f32 %v143, %v290
  %v329 = vadd.f32 %v144, %v293
  %v330 = vadd.f32 %v145, %v298
  %v331 = vadd.f32 %v146, %v301
  %v332 = vadd.f32 %v147, %v306
  %v333 = vadd.f32 %v148, %v309
  %v334 = vadd.f32 %v149, %v314
  %v335 = vadd.f32 %v150, %v317
  %336 = vst [vmem:[#allocation2] sm:$0xff] %v320
  %337 = vst [vmem:[#allocation2 + $0x8] sm:$0xff] %v321
  %338 = vst [vmem:[#allocation2 + $0x10] sm:$0xff] %v322
  %339 = vst [vmem:[#allocation2 + $0x18] sm:$0xff] %v323
  %340 = vst [vmem:[#allocation2 + $0x20] sm:$0xff] %v324
  %341 = vst [vmem:[#allocation2 + $0x28] sm:$0xff] %v325
  %342 = vst [vmem:[#allocation2 + $0x30] sm:$0xff] %v326
  %343 = vst [vmem:[#allocation2 + $0x38] sm:$0xff] %v327
  %344 = vst [vmem:[#allocation2 + $0x40] sm:$0xff] %v328
  %345 = vst [vmem:[#allocation2 + $0x48] sm:$0xff] %v329
  %346 = vst [vmem:[#allocation2 + $0x50] sm:$0xff] %v330
  %347 = vst [vmem:[#allocation2 + $0x58] sm:$0xff] %v331
  %348 = vst [vmem:[#allocation2 + $0x60] sm:$0xff] %v332
  %349 = vst [vmem:[#allocation2 + $0x68] sm:$0xff] %v333
  %350 = vst [vmem:[#allocation2 + $0x70] sm:$0xff] %v334
  %351 = vst [vmem:[#allocation2 + $0x78] sm:$0xff] %v335
  // Predicated region
  $region26: #{densenet_forward.201} parent=0 // pred_check
    %p352 = pneg %p21
  $region27: #{densenet_forward.201} parent=0 // pred_check_branch
    %354 = sbr.rel (%p352) target = $region29
  $region28: #{densenet_forward.201} parent=0 // pred_region
    %v355 = vld [vmem:[#allocation2] sm:$0xff]
    %v356 = vld [vmem:[#allocation2 + $0x8] sm:$0xff]
    %v357 = vld [vmem:[#allocation2 + $0x10] sm:$0xff]
    %v358 = vld [vmem:[#allocation2 + $0x18] sm:$0xff]
    %v359 = vld [vmem:[#allocation2 + $0x20] sm:$0xff]
    %v360 = vld [vmem:[#allocation2 + $0x28] sm:$0xff]
    %v361 = vld [vmem:[#allocation2 + $0x30] sm:$0xff]
    %v362 = vld [vmem:[#allocation2 + $0x38] sm:$0xff]
    %v363 = vld [vmem:[#allocation2 + $0x40] sm:$0xff]
    %v364 = vld [vmem:[#allocation2 + $0x48] sm:$0xff]
    %v365 = vld [vmem:[#allocation2 + $0x50] sm:$0xff]
    %v366 = vld [vmem:[#allocation2 + $0x58] sm:$0xff]
    %v367 = vld [vmem:[#allocation2 + $0x60] sm:$0xff]
    %v368 = vld [vmem:[#allocation2 + $0x68] sm:$0xff]
    %v369 = vld [vmem:[#allocation2 + $0x70] sm:$0xff]
    %v370 = vld [vmem:[#allocation2 + $0x78] sm:$0xff]
    %v371 = vld [vmem:[%s4] sm:$0x1]
    %v373 = vlaneseq
    %v374 = vshrl.u32 %v373, 7
    %v375 = vsub.s32 0, %v374
    %v376 = vrot.slane %v371, %v375
    %v378 = vadd.f32 %v355, %v376
    %v379 = vadd.f32 %v356, %v376
    %v380 = vadd.f32 %v357, %v376
    %v381 = vadd.f32 %v358, %v376
    %v382 = vadd.f32 %v359, %v376
    %v383 = vadd.f32 %v360, %v376
    %v384 = vadd.f32 %v361, %v376
    %v385 = vadd.f32 %v362, %v376
    %v386 = vadd.f32 %v363, %v376
    %v387 = vadd.f32 %v364, %v376
    %v388 = vadd.f32 %v365, %v376
    %v389 = vadd.f32 %v366, %v376
    %v390 = vadd.f32 %v367, %v376
    %v391 = vadd.f32 %v368, %v376
    %v392 = vadd.f32 %v369, %v376
    %v393 = vadd.f32 %v370, %v376
    %v394 = vpack.c.bf16 %v379, %v378
    %v395 = vpack.c.bf16 %v381, %v380
    %v396 = vpack.c.bf16 %v383, %v382
    %v397 = vpack.c.bf16 %v385, %v384
    %v398 = vpack.c.bf16 %v387, %v386
    %v399 = vpack.c.bf16 %v389, %v388
    %v400 = vpack.c.bf16 %v391, %v390
    %v401 = vpack.c.bf16 %v393, %v392
    %v410 = vunpack.c.l.b16 %v394
    %v411 = vunpack.c.h.b16 %v394
    %v412 = vunpack.c.l.b16 %v395
    %v413 = vunpack.c.h.b16 %v395
    %v414 = vunpack.c.l.b16 %v396
    %v415 = vunpack.c.h.b16 %v396
    %v416 = vunpack.c.l.b16 %v397
    %v417 = vunpack.c.h.b16 %v397
    %v418 = vunpack.c.l.b16 %v398
    %v419 = vunpack.c.h.b16 %v398
    %v420 = vunpack.c.l.b16 %v399
    %v421 = vunpack.c.h.b16 %v399
    %v422 = vunpack.c.l.b16 %v400
    %v423 = vunpack.c.h.b16 %v400
    %v424 = vunpack.c.l.b16 %v401
    %v425 = vunpack.c.h.b16 %v401
    %v426 = vpack.c.b16 %v410, %v410
    %v427 = vpack.c.b16 %v411, %v411
    %v428 = vpack.c.b16 %v412, %v412
    %v429 = vpack.c.b16 %v413, %v413
    %v430 = vpack.c.b16 %v414, %v414
    %v431 = vpack.c.b16 %v415, %v415
    %v432 = vpack.c.b16 %v416, %v416
    %v433 = vpack.c.b16 %v417, %v417
    %v434 = vpack.c.b16 %v418, %v418
    %v435 = vpack.c.b16 %v419, %v419
    %v436 = vpack.c.b16 %v420, %v420
    %v437 = vpack.c.b16 %v421, %v421
    %v438 = vpack.c.b16 %v422, %v422
    %v439 = vpack.c.b16 %v423, %v423
    %v440 = vpack.c.b16 %v424, %v424
    %v441 = vpack.c.b16 %v425, %v425
    %458 = vst [vmem:[%s5] sm:$0xf] %v426
    %459 = vst [vmem:[%s5 + $0x4] sm:$0xf] %v427
    %460 = vst [vmem:[%s5 + $0x8] sm:$0xf] %v428
    %461 = vst [vmem:[%s5 + $0xc] sm:$0xf] %v429
    %462 = vst [vmem:[%s5 + $0x10] sm:$0xf] %v430
    %463 = vst [vmem:[%s5 + $0x14] sm:$0xf] %v431
    %464 = vst [vmem:[%s5 + $0x18] sm:$0xf] %v432
    %465 = vst [vmem:[%s5 + $0x1c] sm:$0xf] %v433
    %466 = vst [vmem:[%s5 + $0x20] sm:$0xf] %v434
    %467 = vst [vmem:[%s5 + $0x24] sm:$0xf] %v435
    %468 = vst [vmem:[%s5 + $0x28] sm:$0xf] %v436
    %469 = vst [vmem:[%s5 + $0x2c] sm:$0xf] %v437
    %470 = vst [vmem:[%s5 + $0x30] sm:$0xf] %v438
    %471 = vst [vmem:[%s5 + $0x34] sm:$0xf] %v439
    %472 = vst [vmem:[%s5 + $0x38] sm:$0xf] %v440
    %473 = vst [vmem:[%s5 + $0x3c] sm:$0xf] %v441
  $region29: #{densenet_forward.201} parent=0 // pred_fallthru
    _
  // Predicated region
  $region30: #{densenet_forward.201} parent=0 // pred_check
    _
  $region31: #{densenet_forward.201} parent=0 // pred_check_branch
    %475 = sbr.rel (0) target = $region33
  $region32: #{densenet_forward.201} parent=0 // pred_region
    _
  $region33: #{densenet_forward.201} parent=0 // pred_fallthru
    _
  // Predicated region
  $region34: #{densenet_forward.201} parent=0 // pred_check
    _
  $region35: #{densenet_forward.201} parent=0 // pred_check_branch
    %477 = sbr.rel (0) target = $region37
  $region36: #{densenet_forward.201} parent=0 // pred_region
    _
  $region37: #{densenet_forward.201} parent=0 // pred_fallthru
    _

// kernel: densenet_forward.203
$region0: #{densenet_forward.203}
  #allocation0 [shape = 'u32[]', space=smem, size = 0x4, offset = 0x4, fixed_abs, tag = 'smem constant byte address 0x4 - core index']
  #allocation1 [shape = 'u32[144,128]{1,0:T(1,128)}', space=vmem, size = 0x12000, scoped, tag = 'internal scratch']
  %s0 = inlined_call_operand.vmem [shape: f32[32,128], index: 0, kind: input, shape index: {}]
  %s1 = inlined_call_operand.vmem [shape: f32[1,128], index: 1, kind: input, shape index: {}]
  %s2 = inlined_call_operand.vmem [shape: f32[1,128], index: 2, kind: input, shape index: {}]
  %s3 = inlined_call_operand.vmem [shape: bf16[32,128], index: 3, kind: output, shape index: {}]
  %s4 = sld [smem:[#allocation0]]
  $region22: #{densenet_forward.203} parent=0
    _
  %s6 = ssub.s32 1, %s4
  %s7 = scalar_select 0, %s6, %s4
  // Predicated region
  $region2: #{densenet_forward.203} parent=0 // pred_check
    _
  $region3: #{densenet_forward.203} parent=0 // pred_check_branch
    %9 = sbr.rel (0) target = $region5
  $region4: #{densenet_forward.203} parent=0 // pred_region
    _
  $region5: #{densenet_forward.203} parent=0 // pred_fallthru
    _
  // Predicated region
  $region6: #{densenet_forward.203} parent=0 // pred_check
    _
  $region7: #{densenet_forward.203} parent=0 // pred_check_branch
    %11 = sbr.rel (0) target = $region9
  $region8: #{densenet_forward.203} parent=0 // pred_region
    _
  $region9: #{densenet_forward.203} parent=0 // pred_fallthru
    _
  // Predicated region
  $region10: #{densenet_forward.203} parent=0 // pred_check
    _
  $region11: #{densenet_forward.203} parent=0 // pred_check_branch
    %13 = sbr.rel (0) target = $region13
  $region12: #{densenet_forward.203} parent=0 // pred_region
    _
  $region13: #{densenet_forward.203} parent=0 // pred_fallthru
    _
  %v14 = vld [vmem:[%s0] sm:$0xff]
  %v15 = vld [vmem:[%s0 + $0x8] sm:$0xff]
  %v16 = vld [vmem:[%s0 + $0x10] sm:$0xff]
  %v17 = vld [vmem:[%s0 + $0x18] sm:$0xff]
  %v18 = vld [vmem:[%s1] sm:$0x1]
  %v20 = vlaneseq
  %v21 = vshrl.u32 %v20, 7
  %v22 = vsub.s32 0, %v21
  %v23 = vrot.slane %v18, %v22
  %v25 = vmul.f32 %v14, %v23
  %v26 = vmul.f32 %v15, %v23
  %v27 = vmul.f32 %v16, %v23
  %v28 = vmul.f32 %v17, %v23
  %v29 = vld [vmem:[%s2] sm:$0x1]
  %v31 = vlaneseq
  %v32 = vshrl.u32 %v31, 7
  %v33 = vsub.s32 0, %v32
  %v34 = vrot.slane %v29, %v33
  %v36 = vadd.f32 %v25, %v34
  %v37 = vadd.f32 %v26, %v34
  %v38 = vadd.f32 %v27, %v34
  %v39 = vadd.f32 %v28, %v34
  %v40 = vmax.f32 %v36, 0.0
  %v41 = vmax.f32 %v37, 0.0
  %v42 = vmax.f32 %v38, 0.0
  %v43 = vmax.f32 %v39, 0.0
  %v44 = vpack.c.bf16 %v41, %v40
  %v45 = vpack.c.bf16 %v43, %v42
  %v48 = vunpack.c.l.b16 %v44
  %v49 = vunpack.c.h.b16 %v44
  %v50 = vunpack.c.l.b16 %v45
  %v51 = vunpack.c.h.b16 %v45
  %v52 = vpack.c.b16 %v48, %v48
  %v53 = vpack.c.b16 %v49, %v49
  %v54 = vpack.c.b16 %v50, %v50
  %v55 = vpack.c.b16 %v51, %v51
  %60 = vst [vmem:[%s3] sm:$0xf] %v52
  %61 = vst [vmem:[%s3 + $0x4] sm:$0xf] %v53
  %62 = vst [vmem:[%s3 + $0x8] sm:$0xf] %v54
  %63 = vst [vmem:[%s3 + $0xc] sm:$0xf] %v55
  // Predicated region
  $region14: #{densenet_forward.203} parent=0 // pred_check
    _
  $region15: #{densenet_forward.203} parent=0 // pred_check_branch
    %65 = sbr.rel (0) target = $region17
  $region16: #{densenet_forward.203} parent=0 // pred_region
    _
  $region17: #{densenet_forward.203} parent=0 // pred_fallthru
    _
  // Predicated region
  $region18: #{densenet_forward.203} parent=0 // pred_check
    _
  $region19: #{densenet_forward.203} parent=0 // pred_check_branch
    %67 = sbr.rel (0) target = $region21
  $region20: #{densenet_forward.203} parent=0 // pred_region
    _
  $region21: #{densenet_forward.203} parent=0 // pred_fallthru
    _

// kernel: densenet_forward.202
$region0: #{densenet_forward.202}
  #allocation0 [shape = 'u32[]', space=smem, size = 0x4, offset = 0x4, fixed_abs, tag = 'smem constant byte address 0x4 - core index']
  #allocation1 [shape = 'u32[144,128]{1,0:T(1,128)}', space=vmem, size = 0x12000, scoped, tag = 'internal scratch']
  #allocation2 [shape = 'f32[32,128]{1,0:T(8,128)}', space=vmem, size = 0x4000, scoped, tag = 'scratch operand']
  %s0 = inlined_call_operand.vmem [shape: bf16[32,128], index: 0, kind: input, shape index: {}]
  %s1 = inlined_call_operand.vmem [shape: f32[1,128], index: 1, kind: input, shape index: {}]
  %s2 = inlined_call_operand.vmem [shape: f32[1,128], index: 2, kind: input, shape index: {}]
  %s3 = inlined_call_operand.vmem [shape: bf16[128,128], index: 3, kind: input, shape index: {}]
  %s4 = inlined_call_operand.vmem [shape: f32[1,128], index: 4, kind: input, shape index: {}]
  %s5 = inlined_call_operand.vmem [shape: f32[32,128], index: 5, kind: output, shape index: {}]
  %s6 = sld [smem:[#allocation0]]
  $region38: #{densenet_forward.202} parent=0
    _
  %s8 = ssub.s32 1, %s6
  %s9 = scalar_select 0, %s8, %s6
  // Predicated region
  $region2: #{densenet_forward.202} parent=0 // pred_check
    _
  $region3: #{densenet_forward.202} parent=0 // pred_check_branch
    %11 = sbr.rel (0) target = $region5
  $region4: #{densenet_forward.202} parent=0 // pred_region
    _
  $region5: #{densenet_forward.202} parent=0 // pred_fallthru
    _
  // Predicated region
  $region6: #{densenet_forward.202} parent=0 // pred_check
    _
  $region7: #{densenet_forward.202} parent=0 // pred_check_branch
    %13 = sbr.rel (0) target = $region9
  $region8: #{densenet_forward.202} parent=0 // pred_region
    _
  $region9: #{densenet_forward.202} parent=0 // pred_fallthru
    _
  // Predicated region
  $region10: #{densenet_forward.202} parent=0 // pred_check
    _
  $region11: #{densenet_forward.202} parent=0 // pred_check_branch
    %15 = sbr.rel (0) target = $region13
  $region12: #{densenet_forward.202} parent=0 // pred_region
    _
  $region13: #{densenet_forward.202} parent=0 // pred_fallthru
    _
  // Predicated region
  $region14: #{densenet_forward.202} parent=0 // pred_check
    _
  $region15: #{densenet_forward.202} parent=0 // pred_check_branch
    %17 = sbr.rel (0) target = $region17
  $region16: #{densenet_forward.202} parent=0 // pred_region
    _
  $region17: #{densenet_forward.202} parent=0 // pred_fallthru
    _
  // Predicated region
  $region18: #{densenet_forward.202} parent=0 // pred_check
    _
  $region19: #{densenet_forward.202} parent=0 // pred_check_branch
    %19 = sbr.rel (0) target = $region21
  $region20: #{densenet_forward.202} parent=0 // pred_region
    _
  $region21: #{densenet_forward.202} parent=0 // pred_fallthru
    _
  %p21 = scmp.eq.s32.totalorder 0, 0
  // Predicated region
  $region22: #{densenet_forward.202} parent=0 // pred_check
    %p22 = pneg %p21
  $region23: #{densenet_forward.202} parent=0 // pred_check_branch
    %24 = sbr.rel (%p22) target = $region25
  $region24: #{densenet_forward.202} parent=0 // pred_region
    %25 = vst [vmem:[#allocation2] sm:$0xff] 0.0
    %26 = vst [vmem:[#allocation2 + $0x8] sm:$0xff] 0.0
    %27 = vst [vmem:[#allocation2 + $0x10] sm:$0xff] 0.0
    %28 = vst [vmem:[#allocation2 + $0x18] sm:$0xff] 0.0
  $region25: #{densenet_forward.202} parent=0 // pred_fallthru
    _
  %v29 = vld [vmem:[%s0] sm:$0xf]
  %v30 = vld [vmem:[%s0 + $0x4] sm:$0xf]
  %v31 = vld [vmem:[%s0 + $0x8] sm:$0xf]
  %v32 = vld [vmem:[%s0 + $0xc] sm:$0xf]
  %v33 = vunpack.c.l.bf16 %v29
  %v34 = vunpack.c.l.bf16 %v30
  %v35 = vunpack.c.l.bf16 %v31
  %v36 = vunpack.c.l.bf16 %v32
  %v37 = vld [vmem:[%s1] sm:$0x1]
  %v39 = vlaneseq
  %v40 = vshrl.u32 %v39, 7
  %v41 = vsub.s32 0, %v40
  %v42 = vrot.slane %v37, %v41
  %v44 = vmul.f32 %v33, %v42
  %v45 = vmul.f32 %v34, %v42
  %v46 = vmul.f32 %v35, %v42
  %v47 = vmul.f32 %v36, %v42
  %v48 = vld [vmem:[%s2] sm:$0x1]
  %v50 = vlaneseq
  %v51 = vshrl.u32 %v50, 7
  %v52 = vsub.s32 0, %v51
  %v53 = vrot.slane %v48, %v52
  %v55 = vadd.f32 %v44, %v53
  %v56 = vadd.f32 %v45, %v53
  %v57 = vadd.f32 %v46, %v53
  %v58 = vadd.f32 %v47, %v53
  %v59 = vmax.f32 %v55, 0.0
  %v60 = vmax.f32 %v56, 0.0
  %v61 = vmax.f32 %v57, 0.0
  %v62 = vmax.f32 %v58, 0.0
  %v63 = vld [vmem:[#allocation2] sm:$0xff]
  %v64 = vld [vmem:[#allocation2 + $0x8] sm:$0xff]
  %v65 = vld [vmem:[#allocation2 + $0x10] sm:$0xff]
  %v66 = vld [vmem:[#allocation2 + $0x18] sm:$0xff]
  %v67 = vpack.c.bf16 %v60, %v59
  %v68 = vpack.c.bf16 %v62, %v61
  %v69 = vld [vmem:[%s3] sm:$0xf]
  %v70 = vld [vmem:[%s3 + $0x4] sm:$0xf]
  %v71 = vld [vmem:[%s3 + $0x8] sm:$0xf]
  %v72 = vld [vmem:[%s3 + $0xc] sm:$0xf]
  %v73 = vld [vmem:[%s3 + $0x10] sm:$0xf]
  %v74 = vld [vmem:[%s3 + $0x14] sm:$0xf]
  %v75 = vld [vmem:[%s3 + $0x18] sm:$0xf]
  %v76 = vld [vmem:[%s3 + $0x1c] sm:$0xf]
  %v77 = vld [vmem:[%s3 + $0x20] sm:$0xf]
  %v78 = vld [vmem:[%s3 + $0x24] sm:$0xf]
  %v79 = vld [vmem:[%s3 + $0x28] sm:$0xf]
  %v80 = vld [vmem:[%s3 + $0x2c] sm:$0xf]
  %v81 = vld [vmem:[%s3 + $0x30] sm:$0xf]
  %v82 = vld [vmem:[%s3 + $0x34] sm:$0xf]
  %v83 = vld [vmem:[%s3 + $0x38] sm:$0xf]
  %v84 = vld [vmem:[%s3 + $0x3c] sm:$0xf]
  %v101 = vunpack.c.l.b16 %v69
  %v102 = vunpack.c.l.b16 %v70
  %v103 = vunpack.c.l.b16 %v71
  %v104 = vunpack.c.l.b16 %v72
  %v105 = vunpack.c.l.b16 %v73
  %v106 = vunpack.c.l.b16 %v74
  %v107 = vunpack.c.l.b16 %v75
  %v108 = vunpack.c.l.b16 %v76
  %v109 = vunpack.c.l.b16 %v77
  %v110 = vunpack.c.l.b16 %v78
  %v111 = vunpack.c.l.b16 %v79
  %v112 = vunpack.c.l.b16 %v80
  %v113 = vunpack.c.l.b16 %v81
  %v114 = vunpack.c.l.b16 %v82
  %v115 = vunpack.c.l.b16 %v83
  %v116 = vunpack.c.l.b16 %v84
  %v117 = vpack.c.b16 %v102, %v101
  %v118 = vpack.c.b16 %v104, %v103
  %v119 = vpack.c.b16 %v106, %v105
  %v120 = vpack.c.b16 %v108, %v107
  %v121 = vpack.c.b16 %v110, %v109
  %v122 = vpack.c.b16 %v112, %v111
  %v123 = vpack.c.b16 %v114, %v113
  %v124 = vpack.c.b16 %v116, %v115
  %133 = vmatprep.subr.bf16.mxu0 0
  %134 = vmatpush1.bf16.msra.mxu0 %v117
  %135 = vmatprep.subr.bf16.mxu0 0
  %136 = vmatpush1.bf16.msra.mxu0 %v118
  %137 = vmatprep.subr.bf16.mxu0 0
  %138 = vmatpush1.bf16.msra.mxu0 %v119
  %139 = vmatprep.subr.bf16.mxu0 0
  %140 = vmatpush1.bf16.msra.mxu0 %v120
  %141 = vmatprep.subr.bf16.mxu0 0
  %142 = vmatpush1.bf16.msra.mxu0 %v121
  %143 = vmatprep.subr.bf16.mxu0 0
  %144 = vmatpush1.bf16.msra.mxu0 %v122
  %145 = vmatprep.subr.bf16.mxu0 0
  %146 = vmatpush1.bf16.msra.mxu0 %v123
  %147 = vmatprep.subr.bf16.mxu0 0
  %148 = vmatpush1.bf16.msra.mxu0 %v124
  %149 = vmatprep.subr.bf16.mxu0 0
  %150 = vmatpush1.bf16.msra.mxu0 0
  %151 = vmatprep.subr.bf16.mxu0 0
  %152 = vmatpush1.bf16.msra.mxu0 0
  %153 = vmatprep.subr.bf16.mxu0 0
  %154 = vmatpush1.bf16.msra.mxu0 0
  %155 = vmatprep.subr.bf16.mxu0 0
  %156 = vmatpush1.bf16.msra.mxu0 0
  %157 = vmatprep.subr.bf16.mxu0 0
  %158 = vmatpush1.bf16.msra.mxu0 0
  %159 = vmatprep.subr.bf16.mxu0 0
  %160 = vmatpush1.bf16.msra.mxu0 0
  %161 = vmatprep.subr.bf16.mxu0 0
  %162 = vmatpush1.bf16.msra.mxu0 0
  %163 = vmatprep.subr.bf16.mxu0 0
  %164 = vmatpush1.bf16.msra.mxu0 0
  %165 = vmatprep.mubr.bf16.mxu0 0
  %166 = vmatmul.mubr.bf16.gmra.mrb[0].mxu0 %v67
  %v167 = vpop.f32.mrb[0].mxu0
  %v168 = vadd.f32 0.0, %v167
  %v169 = vpop.f32.mrb[0].mxu0
  %v170 = vpop.f32.mrb[0].mxu0
  %v171 = vadd.f32 0.0, %v170
  %v172 = vpop.f32.mrb[0].mxu0
  %173 = vmatprep.mubr.bf16.mxu0 0
  %174 = vmatmul.mubr.bf16.gmra.mrb[0].mxu0 %v68
  %v175 = vpop.f32.mrb[0].mxu0
  %v176 = vadd.f32 0.0, %v175
  %v177 = vpop.f32.mrb[0].mxu0
  %v178 = vpop.f32.mrb[0].mxu0
  %v179 = vadd.f32 0.0, %v178
  %v180 = vpop.f32.mrb[0].mxu0
  %181 = vdwg.mxu0
  %v182 = vadd.f32 %v63, %v168
  %v183 = vadd.f32 %v64, %v171
  %v184 = vadd.f32 %v65, %v176
  %v185 = vadd.f32 %v66, %v179
  %186 = vst [vmem:[#allocation2] sm:$0xff] %v182
  %187 = vst [vmem:[#allocation2 + $0x8] sm:$0xff] %v183
  %188 = vst [vmem:[#allocation2 + $0x10] sm:$0xff] %v184
  %189 = vst [vmem:[#allocation2 + $0x18] sm:$0xff] %v185
  // Predicated region
  $region26: #{densenet_forward.202} parent=0 // pred_check
    %p190 = pneg %p21
  $region27: #{densenet_forward.202} parent=0 // pred_check_branch
    %192 = sbr.rel (%p190) target = $region29
  $region28: #{densenet_forward.202} parent=0 // pred_region
    %v193 = vld [vmem:[#allocation2] sm:$0xff]
    %v194 = vld [vmem:[#allocation2 + $0x8] sm:$0xff]
    %v195 = vld [vmem:[#allocation2 + $0x10] sm:$0xff]
    %v196 = vld [vmem:[#allocation2 + $0x18] sm:$0xff]
    %v197 = vld [vmem:[%s4] sm:$0x1]
    %v199 = vlaneseq
    %v200 = vshrl.u32 %v199, 7
    %v201 = vsub.s32 0, %v200
    %v202 = vrot.slane %v197, %v201
    %v204 = vadd.f32 %v193, %v202
    %v205 = vadd.f32 %v194, %v202
    %v206 = vadd.f32 %v195, %v202
    %v207 = vadd.f32 %v196, %v202
    %208 = vst [vmem:[%s5] sm:$0xff] %v204
    %209 = vst [vmem:[%s5 + $0x8] sm:$0xff] %v205
    %210 = vst [vmem:[%s5 + $0x10] sm:$0xff] %v206
    %211 = vst [vmem:[%s5 + $0x18] sm:$0xff] %v207
  $region29: #{densenet_forward.202} parent=0 // pred_fallthru
    _
  // Predicated region
  $region30: #{densenet_forward.202} parent=0 // pred_check
    _
  $region31: #{densenet_forward.202} parent=0 // pred_check_branch
    %213 = sbr.rel (0) target = $region33
  $region32: #{densenet_forward.202} parent=0 // pred_region
    _
  $region33: #{densenet_forward.202} parent=0 // pred_fallthru
    _
  // Predicated region
  $region34: #{densenet_forward.202} parent=0 // pred_check
    _
  $region35: #{densenet_forward.202} parent=0 // pred_check_branch
    %215 = sbr.rel (0) target = $region37
  $region36: #{densenet_forward.202} parent=0 // pred_region
    _
  $region37: #{densenet_forward.202} parent=0 // pred_fallthru
    _

// kernel: densenet_forward.204
$region0: #{densenet_forward.204}
  #allocation0 [shape = 'u32[]', space=smem, size = 0x4, offset = 0x4, fixed_abs, tag = 'smem constant byte address 0x4 - core index']
  #allocation1 [shape = 'u32[144,128]{1,0:T(1,128)}', space=vmem, size = 0x12000, scoped, tag = 'internal scratch']
  #allocation2 [shape = 'f32[32,128]{1,0:T(8,128)}', space=vmem, size = 0x4000, scoped, tag = 'scratch operand']
  %s0 = inlined_call_operand.vmem [shape: bf16[32,128], index: 0, kind: input, shape index: {}]
  %s1 = inlined_call_operand.vmem [shape: bf16[128,128], index: 1, kind: input, shape index: {}]
  %s2 = inlined_call_operand.vmem [shape: f32[1,128], index: 2, kind: input, shape index: {}]
  %s3 = inlined_call_operand.vmem [shape: bf16[32,128], index: 3, kind: output, shape index: {}]
  %s4 = sld [smem:[#allocation0]]
  $region30: #{densenet_forward.204} parent=0
    _
  %s6 = ssub.s32 1, %s4
  %s7 = scalar_select 0, %s6, %s4
  // Predicated region
  $region2: #{densenet_forward.204} parent=0 // pred_check
    _
  $region3: #{densenet_forward.204} parent=0 // pred_check_branch
    %9 = sbr.rel (0) target = $region5
  $region4: #{densenet_forward.204} parent=0 // pred_region
    _
  $region5: #{densenet_forward.204} parent=0 // pred_fallthru
    _
  // Predicated region
  $region6: #{densenet_forward.204} parent=0 // pred_check
    _
  $region7: #{densenet_forward.204} parent=0 // pred_check_branch
    %11 = sbr.rel (0) target = $region9
  $region8: #{densenet_forward.204} parent=0 // pred_region
    _
  $region9: #{densenet_forward.204} parent=0 // pred_fallthru
    _
  // Predicated region
  $region10: #{densenet_forward.204} parent=0 // pred_check
    _
  $region11: #{densenet_forward.204} parent=0 // pred_check_branch
    %13 = sbr.rel (0) target = $region13
  $region12: #{densenet_forward.204} parent=0 // pred_region
    _
  $region13: #{densenet_forward.204} parent=0 // pred_fallthru
    _
  %p15 = scmp.eq.s32.totalorder 0, 0
  // Predicated region
  $region14: #{densenet_forward.204} parent=0 // pred_check
    %p16 = pneg %p15
  $region15: #{densenet_forward.204} parent=0 // pred_check_branch
    %18 = sbr.rel (%p16) target = $region17
  $region16: #{densenet_forward.204} parent=0 // pred_region
    %19 = vst [vmem:[#allocation2] sm:$0xff] 0.0
    %20 = vst [vmem:[#allocation2 + $0x8] sm:$0xff] 0.0
    %21 = vst [vmem:[#allocation2 + $0x10] sm:$0xff] 0.0
    %22 = vst [vmem:[#allocation2 + $0x18] sm:$0xff] 0.0
  $region17: #{densenet_forward.204} parent=0 // pred_fallthru
    _
  %v23 = vld [vmem:[#allocation2] sm:$0xff]
  %v24 = vld [vmem:[#allocation2 + $0x8] sm:$0xff]
  %v25 = vld [vmem:[#allocation2 + $0x10] sm:$0xff]
  %v26 = vld [vmem:[#allocation2 + $0x18] sm:$0xff]
  %v27 = vld [vmem:[%s0] sm:$0xf]
  %v28 = vld [vmem:[%s0 + $0x4] sm:$0xf]
  %v29 = vld [vmem:[%s0 + $0x8] sm:$0xf]
  %v30 = vld [vmem:[%s0 + $0xc] sm:$0xf]
  %v31 = vld [vmem:[%s1] sm:$0xf]
  %v32 = vld [vmem:[%s1 + $0x4] sm:$0xf]
  %v33 = vld [vmem:[%s1 + $0x8] sm:$0xf]
  %v34 = vld [vmem:[%s1 + $0xc] sm:$0xf]
  %v35 = vld [vmem:[%s1 + $0x10] sm:$0xf]
  %v36 = vld [vmem:[%s1 + $0x14] sm:$0xf]
  %v37 = vld [vmem:[%s1 + $0x18] sm:$0xf]
  %v38 = vld [vmem:[%s1 + $0x1c] sm:$0xf]
  %v39 = vld [vmem:[%s1 + $0x20] sm:$0xf]
  %v40 = vld [vmem:[%s1 + $0x24] sm:$0xf]
  %v41 = vld [vmem:[%s1 + $0x28] sm:$0xf]
  %v42 = vld [vmem:[%s1 + $0x2c] sm:$0xf]
  %v43 = vld [vmem:[%s1 + $0x30] sm:$0xf]
  %v44 = vld [vmem:[%s1 + $0x34] sm:$0xf]
  %v45 = vld [vmem:[%s1 + $0x38] sm:$0xf]
  %v46 = vld [vmem:[%s1 + $0x3c] sm:$0xf]
  %v51 = vunpack.c.l.b16 %v27
  %v52 = vunpack.c.l.b16 %v28
  %v53 = vunpack.c.l.b16 %v29
  %v54 = vunpack.c.l.b16 %v30
  %v55 = vpack.c.b16 %v52, %v51
  %v56 = vpack.c.b16 %v54, %v53
  %v75 = vunpack.c.l.b16 %v31
  %v76 = vunpack.c.l.b16 %v32
  %v77 = vunpack.c.l.b16 %v33
  %v78 = vunpack.c.l.b16 %v34
  %v79 = vunpack.c.l.b16 %v35
  %v80 = vunpack.c.l.b16 %v36
  %v81 = vunpack.c.l.b16 %v37
  %v82 = vunpack.c.l.b16 %v38
  %v83 = vunpack.c.l.b16 %v39
  %v84 = vunpack.c.l.b16 %v40
  %v85 = vunpack.c.l.b16 %v41
  %v86 = vunpack.c.l.b16 %v42
  %v87 = vunpack.c.l.b16 %v43
  %v88 = vunpack.c.l.b16 %v44
  %v89 = vunpack.c.l.b16 %v45
  %v90 = vunpack.c.l.b16 %v46
  %v91 = vpack.c.b16 %v76, %v75
  %v92 = vpack.c.b16 %v78, %v77
  %v93 = vpack.c.b16 %v80, %v79
  %v94 = vpack.c.b16 %v82, %v81
  %v95 = vpack.c.b16 %v84, %v83
  %v96 = vpack.c.b16 %v86, %v85
  %v97 = vpack.c.b16 %v88, %v87
  %v98 = vpack.c.b16 %v90, %v89
  %107 = vmatprep.subr.bf16.mxu0 0
  %108 = vmatpush1.bf16.msra.mxu0 %v91
  %109 = vmatprep.subr.bf16.mxu0 0
  %110 = vmatpush1.bf16.msra.mxu0 %v92
  %111 = vmatprep.subr.bf16.mxu0 0
  %112 = vmatpush1.bf16.msra.mxu0 %v93
  %113 = vmatprep.subr.bf16.mxu0 0
  %114 = vmatpush1.bf16.msra.mxu0 %v94
  %115 = vmatprep.subr.bf16.mxu0 0
  %116 = vmatpush1.bf16.msra.mxu0 %v95
  %117 = vmatprep.subr.bf16.mxu0 0
  %118 = vmatpush1.bf16.msra.mxu0 %v96
  %119 = vmatprep.subr.bf16.mxu0 0
  %120 = vmatpush1.bf16.msra.mxu0 %v97
  %121 = vmatprep.subr.bf16.mxu0 0
  %122 = vmatpush1.bf16.msra.mxu0 %v98
  %123 = vmatprep.subr.bf16.mxu0 0
  %124 = vmatpush1.bf16.msra.mxu0 0
  %125 = vmatprep.subr.bf16.mxu0 0
  %126 = vmatpush1.bf16.msra.mxu0 0
  %127 = vmatprep.subr.bf16.mxu0 0
  %128 = vmatpush1.bf16.msra.mxu0 0
  %129 = vmatprep.subr.bf16.mxu0 0
  %130 = vmatpush1.bf16.msra.mxu0 0
  %131 = vmatprep.subr.bf16.mxu0 0
  %132 = vmatpush1.bf16.msra.mxu0 0
  %133 = vmatprep.subr.bf16.mxu0 0
  %134 = vmatpush1.bf16.msra.mxu0 0
  %135 = vmatprep.subr.bf16.mxu0 0
  %136 = vmatpush1.bf16.msra.mxu0 0
  %137 = vmatprep.subr.bf16.mxu0 0
  %138 = vmatpush1.bf16.msra.mxu0 0
  %139 = vmatprep.mubr.bf16.mxu0 0
  %140 = vmatmul.mubr.bf16.gmra.mrb[0].mxu0 %v55
  %v141 = vpop.f32.mrb[0].mxu0
  %v142 = vadd.f32 0.0, %v141
  %v143 = vpop.f32.mrb[0].mxu0
  %v144 = vpop.f32.mrb[0].mxu0
  %v145 = vadd.f32 0.0, %v144
  %v146 = vpop.f32.mrb[0].mxu0
  %147 = vmatprep.mubr.bf16.mxu0 0
  %148 = vmatmul.mubr.bf16.gmra.mrb[0].mxu0 %v56
  %v149 = vpop.f32.mrb[0].mxu0
  %v150 = vadd.f32 0.0, %v149
  %v151 = vpop.f32.mrb[0].mxu0
  %v152 = vpop.f32.mrb[0].mxu0
  %v153 = vadd.f32 0.0, %v152
  %v154 = vpop.f32.mrb[0].mxu0
  %155 = vdwg.mxu0
  %v156 = vadd.f32 %v23, %v142
  %v157 = vadd.f32 %v24, %v145
  %v158 = vadd.f32 %v25, %v150
  %v159 = vadd.f32 %v26, %v153
  %160 = vst [vmem:[#allocation2] sm:$0xff] %v156
  %161 = vst [vmem:[#allocation2 + $0x8] sm:$0xff] %v157
  %162 = vst [vmem:[#allocation2 + $0x10] sm:$0xff] %v158
  %163 = vst [vmem:[#allocation2 + $0x18] sm:$0xff] %v159
  // Predicated region
  $region18: #{densenet_forward.204} parent=0 // pred_check
    %p164 = pneg %p15
  $region19: #{densenet_forward.204} parent=0 // pred_check_branch
    %166 = sbr.rel (%p164) target = $region21
  $region20: #{densenet_forward.204} parent=0 // pred_region
    %v167 = vld [vmem:[#allocation2] sm:$0xff]
    %v168 = vld [vmem:[#allocation2 + $0x8] sm:$0xff]
    %v169 = vld [vmem:[#allocation2 + $0x10] sm:$0xff]
    %v170 = vld [vmem:[#allocation2 + $0x18] sm:$0xff]
    %v171 = vld [vmem:[%s2] sm:$0x1]
    %v173 = vlaneseq
    %v174 = vshrl.u32 %v173, 7
    %v175 = vsub.s32 0, %v174
    %v176 = vrot.slane %v171, %v175
    %v178 = vadd.f32 %v167, %v176
    %v179 = vadd.f32 %v168, %v176
    %v180 = vadd.f32 %v169, %v176
    %v181 = vadd.f32 %v170, %v176
    %v182 = vpack.c.bf16 %v179, %v178
    %v183 = vpack.c.bf16 %v181, %v180
    %v186 = vunpack.c.l.b16 %v182
    %v187 = vunpack.c.h.b16 %v182
    %v188 = vunpack.c.l.b16 %v183
    %v189 = vunpack.c.h.b16 %v183
    %v190 = vpack.c.b16 %v186, %v186
    %v191 = vpack.c.b16 %v187, %v187
    %v192 = vpack.c.b16 %v188, %v188
    %v193 = vpack.c.b16 %v189, %v189
    %198 = vst [vmem:[%s3] sm:$0xf] %v190
    %199 = vst [vmem:[%s3 + $0x4] sm:$0xf] %v191
    %200 = vst [vmem:[%s3 + $0x8] sm:$0xf] %v192
    %201 = vst [vmem:[%s3 + $0xc] sm:$0xf] %v193
  $region21: #{densenet_forward.204} parent=0 // pred_fallthru
    _
  // Predicated region
  $region22: #{densenet_forward.204} parent=0 // pred_check
    _
  $region23: #{densenet_forward.204} parent=0 // pred_check_branch
    %203 = sbr.rel (0) target = $region25
  $region24: #{densenet_forward.204} parent=0 // pred_region
    _
  $region25: #{densenet_forward.204} parent=0 // pred_fallthru
    _
  // Predicated region
  $region26: #{densenet_forward.204} parent=0 // pred_check
    _
  $region27: #{densenet_forward.204} parent=0 // pred_check_branch
    %205 = sbr.rel (0) target = $region29
  $region28: #{densenet_forward.204} parent=0 // pred_region
    _
  $region29: #{densenet_forward.204} parent=0 // pred_fallthru
    _

// kernel: densenet_forward.238
$region0: #{densenet_forward.238}
  #allocation0 [shape = 'u32[]', space=smem, size = 0x4, offset = 0x4, fixed_abs, tag = 'smem constant byte address 0x4 - core index']
  #allocation1 [shape = 'u32[144,128]{1,0:T(1,128)}', space=vmem, size = 0x12000, scoped, tag = 'internal scratch']
  #allocation2 [shape = 'f32[32,128]{1,0:T(8,128)}', space=vmem, size = 0x4000, scoped, tag = 'scratch operand']
  %s0 = inlined_call_operand.vmem [shape: bf16[32,128], index: 0, kind: input, shape index: {}]
  %s1 = inlined_call_operand.vmem [shape: f32[1,128], index: 1, kind: input, shape index: {}]
  %s2 = inlined_call_operand.vmem [shape: f32[1,128], index: 2, kind: input, shape index: {}]
  %s3 = inlined_call_operand.vmem [shape: bf16[128,128], index: 3, kind: input, shape index: {}]
  %s4 = inlined_call_operand.vmem [shape: f32[1,128], index: 4, kind: input, shape index: {}]
  %s5 = inlined_call_operand.vmem [shape: bf16[32,128], index: 5, kind: output, shape index: {}]
  %s6 = sld [smem:[#allocation0]]
  $region38: #{densenet_forward.238} parent=0
    _
  %s8 = ssub.s32 1, %s6
  %s9 = scalar_select 0, %s8, %s6
  // Predicated region
  $region2: #{densenet_forward.238} parent=0 // pred_check
    _
  $region3: #{densenet_forward.238} parent=0 // pred_check_branch
    %11 = sbr.rel (0) target = $region5
  $region4: #{densenet_forward.238} parent=0 // pred_region
    _
  $region5: #{densenet_forward.238} parent=0 // pred_fallthru
    _
  // Predicated region
  $region6: #{densenet_forward.238} parent=0 // pred_check
    _
  $region7: #{densenet_forward.238} parent=0 // pred_check_branch
    %13 = sbr.rel (0) target = $region9
  $region8: #{densenet_forward.238} parent=0 // pred_region
    _
  $region9: #{densenet_forward.238} parent=0 // pred_fallthru
    _
  // Predicated region
  $region10: #{densenet_forward.238} parent=0 // pred_check
    _
  $region11: #{densenet_forward.238} parent=0 // pred_check_branch
    %15 = sbr.rel (0) target = $region13
  $region12: #{densenet_forward.238} parent=0 // pred_region
    _
  $region13: #{densenet_forward.238} parent=0 // pred_fallthru
    _
  // Predicated region
  $region14: #{densenet_forward.238} parent=0 // pred_check
    _
  $region15: #{densenet_forward.238} parent=0 // pred_check_branch
    %17 = sbr.rel (0) target = $region17
  $region16: #{densenet_forward.238} parent=0 // pred_region
    _
  $region17: #{densenet_forward.238} parent=0 // pred_fallthru
    _
  // Predicated region
  $region18: #{densenet_forward.238} parent=0 // pred_check
    _
  $region19: #{densenet_forward.238} parent=0 // pred_check_branch
    %19 = sbr.rel (0) target = $region21
  $region20: #{densenet_forward.238} parent=0 // pred_region
    _
  $region21: #{densenet_forward.238} parent=0 // pred_fallthru
    _
  %p21 = scmp.eq.s32.totalorder 0, 0
  // Predicated region
  $region22: #{densenet_forward.238} parent=0 // pred_check
    %p22 = pneg %p21
  $region23: #{densenet_forward.238} parent=0 // pred_check_branch
    %24 = sbr.rel (%p22) target = $region25
  $region24: #{densenet_forward.238} parent=0 // pred_region
    %25 = vst [vmem:[#allocation2] sm:$0xff] 0.0
    %26 = vst [vmem:[#allocation2 + $0x8] sm:$0xff] 0.0
    %27 = vst [vmem:[#allocation2 + $0x10] sm:$0xff] 0.0
    %28 = vst [vmem:[#allocation2 + $0x18] sm:$0xff] 0.0
  $region25: #{densenet_forward.238} parent=0 // pred_fallthru
    _
  %v29 = vld [vmem:[%s0] sm:$0xf]
  %v30 = vld [vmem:[%s0 + $0x4] sm:$0xf]
  %v31 = vld [vmem:[%s0 + $0x8] sm:$0xf]
  %v32 = vld [vmem:[%s0 + $0xc] sm:$0xf]
  %v33 = vunpack.c.l.bf16 %v29
  %v34 = vunpack.c.l.bf16 %v30
  %v35 = vunpack.c.l.bf16 %v31
  %v36 = vunpack.c.l.bf16 %v32
  %v37 = vld [vmem:[%s1] sm:$0x1]
  %v39 = vlaneseq
  %v40 = vshrl.u32 %v39, 7
  %v41 = vsub.s32 0, %v40
  %v42 = vrot.slane %v37, %v41
  %v44 = vmul.f32 %v33, %v42
  %v45 = vmul.f32 %v34, %v42
  %v46 = vmul.f32 %v35, %v42
  %v47 = vmul.f32 %v36, %v42
  %v48 = vld [vmem:[%s2] sm:$0x1]
  %v50 = vlaneseq
  %v51 = vshrl.u32 %v50, 7
  %v52 = vsub.s32 0, %v51
  %v53 = vrot.slane %v48, %v52
  %v55 = vadd.f32 %v44, %v53
  %v56 = vadd.f32 %v45, %v53
  %v57 = vadd.f32 %v46, %v53
  %v58 = vadd.f32 %v47, %v53
  %v59 = vmax.f32 %v55, 0.0
  %v60 = vmax.f32 %v56, 0.0
  %v61 = vmax.f32 %v57, 0.0
  %v62 = vmax.f32 %v58, 0.0
  %v63 = vld [vmem:[#allocation2] sm:$0xff]
  %v64 = vld [vmem:[#allocation2 + $0x8] sm:$0xff]
  %v65 = vld [vmem:[#allocation2 + $0x10] sm:$0xff]
  %v66 = vld [vmem:[#allocation2 + $0x18] sm:$0xff]
  %v67 = vpack.c.bf16 %v60, %v59
  %v68 = vpack.c.bf16 %v62, %v61
  %v69 = vld [vmem:[%s3] sm:$0xf]
  %v70 = vld [vmem:[%s3 + $0x4] sm:$0xf]
  %v71 = vld [vmem:[%s3 + $0x8] sm:$0xf]
  %v72 = vld [vmem:[%s3 + $0xc] sm:$0xf]
  %v73 = vld [vmem:[%s3 + $0x10] sm:$0xf]
  %v74 = vld [vmem:[%s3 + $0x14] sm:$0xf]
  %v75 = vld [vmem:[%s3 + $0x18] sm:$0xf]
  %v76 = vld [vmem:[%s3 + $0x1c] sm:$0xf]
  %v77 = vld [vmem:[%s3 + $0x20] sm:$0xf]
  %v78 = vld [vmem:[%s3 + $0x24] sm:$0xf]
  %v79 = vld [vmem:[%s3 + $0x28] sm:$0xf]
  %v80 = vld [vmem:[%s3 + $0x2c] sm:$0xf]
  %v81 = vld [vmem:[%s3 + $0x30] sm:$0xf]
  %v82 = vld [vmem:[%s3 + $0x34] sm:$0xf]
  %v83 = vld [vmem:[%s3 + $0x38] sm:$0xf]
  %v84 = vld [vmem:[%s3 + $0x3c] sm:$0xf]
  %v101 = vunpack.c.l.b16 %v69
  %v102 = vunpack.c.l.b16 %v70
  %v103 = vunpack.c.l.b16 %v71
  %v104 = vunpack.c.l.b16 %v72
  %v105 = vunpack.c.l.b16 %v73
  %v106 = vunpack.c.l.b16 %v74
  %v107 = vunpack.c.l.b16 %v75
  %v108 = vunpack.c.l.b16 %v76
  %v109 = vunpack.c.l.b16 %v77
  %v110 = vunpack.c.l.b16 %v78
  %v111 = vunpack.c.l.b16 %v79
  %v112 = vunpack.c.l.b16 %v80
  %v113 = vunpack.c.l.b16 %v81
  %v114 = vunpack.c.l.b16 %v82
  %v115 = vunpack.c.l.b16 %v83
  %v116 = vunpack.c.l.b16 %v84
  %v117 = vpack.c.b16 %v102, %v101
  %v118 = vpack.c.b16 %v104, %v103
  %v119 = vpack.c.b16 %v106, %v105
  %v120 = vpack.c.b16 %v108, %v107
  %v121 = vpack.c.b16 %v110, %v109
  %v122 = vpack.c.b16 %v112, %v111
  %v123 = vpack.c.b16 %v114, %v113
  %v124 = vpack.c.b16 %v116, %v115
  %133 = vmatprep.subr.bf16.mxu0 0
  %134 = vmatpush1.bf16.msra.mxu0 %v117
  %135 = vmatprep.subr.bf16.mxu0 0
  %136 = vmatpush1.bf16.msra.mxu0 %v118
  %137 = vmatprep.subr.bf16.mxu0 0
  %138 = vmatpush1.bf16.msra.mxu0 %v119
  %139 = vmatprep.subr.bf16.mxu0 0
  %140 = vmatpush1.bf16.msra.mxu0 %v120
  %141 = vmatprep.subr.bf16.mxu0 0
  %142 = vmatpush1.bf16.msra.mxu0 %v121
  %143 = vmatprep.subr.bf16.mxu0 0
  %144 = vmatpush1.bf16.msra.mxu0 %v122
  %145 = vmatprep.subr.bf16.mxu0 0
  %146 = vmatpush1.bf16.msra.mxu0 %v123
  %147 = vmatprep.subr.bf16.mxu0 0
  %148 = vmatpush1.bf16.msra.mxu0 %v124
  %149 = vmatprep.subr.bf16.mxu0 0
  %150 = vmatpush1.bf16.msra.mxu0 0
  %151 = vmatprep.subr.bf16.mxu0 0
  %152 = vmatpush1.bf16.msra.mxu0 0
  %153 = vmatprep.subr.bf16.mxu0 0
  %154 = vmatpush1.bf16.msra.mxu0 0
  %155 = vmatprep.subr.bf16.mxu0 0
  %156 = vmatpush1.bf16.msra.mxu0 0
  %157 = vmatprep.subr.bf16.mxu0 0
  %158 = vmatpush1.bf16.msra.mxu0 0
  %159 = vmatprep.subr.bf16.mxu0 0
  %160 = vmatpush1.bf16.msra.mxu0 0
  %161 = vmatprep.subr.bf16.mxu0 0
  %162 = vmatpush1.bf16.msra.mxu0 0
  %163 = vmatprep.subr.bf16.mxu0 0
  %164 = vmatpush1.bf16.msra.mxu0 0
  %165 = vmatprep.mubr.bf16.mxu0 0
  %166 = vmatmul.mubr.bf16.gmra.mrb[0].mxu0 %v67
  %v167 = vpop.f32.mrb[0].mxu0
  %v168 = vadd.f32 0.0, %v167
  %v169 = vpop.f32.mrb[0].mxu0
  %v170 = vpop.f32.mrb[0].mxu0
  %v171 = vadd.f32 0.0, %v170
  %v172 = vpop.f32.mrb[0].mxu0
  %173 = vmatprep.mubr.bf16.mxu0 0
  %174 = vmatmul.mubr.bf16.gmra.mrb[0].mxu0 %v68
  %v175 = vpop.f32.mrb[0].mxu0
  %v176 = vadd.f32 0.0, %v175
  %v177 = vpop.f32.mrb[0].mxu0
  %v178 = vpop.f32.mrb[0].mxu0
  %v179 = vadd.f32 0.0, %v178
  %v180 = vpop.f32.mrb[0].mxu0
  %181 = vdwg.mxu0
  %v182 = vadd.f32 %v63, %v168
  %v183 = vadd.f32 %v64, %v171
  %v184 = vadd.f32 %v65, %v176
  %v185 = vadd.f32 %v66, %v179
  %186 = vst [vmem:[#allocation2] sm:$0xff] %v182
  %187 = vst [vmem:[#allocation2 + $0x8] sm:$0xff] %v183
  %188 = vst [vmem:[#allocation2 + $0x10] sm:$0xff] %v184
  %189 = vst [vmem:[#allocation2 + $0x18] sm:$0xff] %v185
  // Predicated region
  $region26: #{densenet_forward.238} parent=0 // pred_check
    %p190 = pneg %p21
  $region27: #{densenet_forward.238} parent=0 // pred_check_branch
    %192 = sbr.rel (%p190) target = $region29
  $region28: #{densenet_forward.238} parent=0 // pred_region
    %v193 = vld [vmem:[#allocation2] sm:$0xff]
    %v194 = vld [vmem:[#allocation2 + $0x8] sm:$0xff]
    %v195 = vld [vmem:[#allocation2 + $0x10] sm:$0xff]
    %v196 = vld [vmem:[#allocation2 + $0x18] sm:$0xff]
    %v197 = vld [vmem:[%s4] sm:$0x1]
    %v199 = vlaneseq
    %v200 = vshrl.u32 %v199, 7
    %v201 = vsub.s32 0, %v200
    %v202 = vrot.slane %v197, %v201
    %v204 = vadd.f32 %v193, %v202
    %v205 = vadd.f32 %v194, %v202
    %v206 = vadd.f32 %v195, %v202
    %v207 = vadd.f32 %v196, %v202
    %v208 = vpack.c.bf16 %v205, %v204
    %v209 = vpack.c.bf16 %v207, %v206
    %v212 = vunpack.c.l.b16 %v208
    %v213 = vunpack.c.h.b16 %v208
    %v214 = vunpack.c.l.b16 %v209
    %v215 = vunpack.c.h.b16 %v209
    %v216 = vpack.c.b16 %v212, %v212
    %v217 = vpack.c.b16 %v213, %v213
    %v218 = vpack.c.b16 %v214, %v214
    %v219 = vpack.c.b16 %v215, %v215
    %224 = vst [vmem:[%s5] sm:$0xf] %v216
    %225 = vst [vmem:[%s5 + $0x4] sm:$0xf] %v217
    %226 = vst [vmem:[%s5 + $0x8] sm:$0xf] %v218
    %227 = vst [vmem:[%s5 + $0xc] sm:$0xf] %v219
  $region29: #{densenet_forward.238} parent=0 // pred_fallthru
    _
  // Predicated region
  $region30: #{densenet_forward.238} parent=0 // pred_check
    _
  $region31: #{densenet_forward.238} parent=0 // pred_check_branch
    %229 = sbr.rel (0) target = $region33
  $region32: #{densenet_forward.238} parent=0 // pred_region
    _
  $region33: #{densenet_forward.238} parent=0 // pred_fallthru
    _
  // Predicated region
  $region34: #{densenet_forward.238} parent=0 // pred_check
    _
  $region35: #{densenet_forward.238} parent=0 // pred_check_branch
    %231 = sbr.rel (0) target = $region37
  $region36: #{densenet_forward.238} parent=0 // pred_region
    _
  $region37: #{densenet_forward.238} parent=0 // pred_fallthru
    _

// kernel: densenet_forward.361
$region0: #{densenet_forward.361}
  #allocation0 [shape = 'u32[]', space=smem, size = 0x4, offset = 0x4, fixed_abs, tag = 'smem constant byte address 0x4 - core index']
  #allocation1 [shape = 'u32[144,128]{1,0:T(1,128)}', space=vmem, size = 0x12000, scoped, tag = 'internal scratch']
  #allocation2 [shape = 'f32[32,128]{1,0:T(8,128)}', space=vmem, size = 0x4000, scoped, tag = 'scratch operand']
  %s0 = inlined_call_operand.vmem [shape: bf16[32,128], index: 0, kind: input, shape index: {}]
  %s1 = inlined_call_operand.vmem [shape: bf16[128,128], index: 1, kind: input, shape index: {}]
  %s2 = inlined_call_operand.vmem [shape: f32[1,128], index: 2, kind: input, shape index: {}]
  %s3 = inlined_call_operand.vmem [shape: f32[32,128], index: 3, kind: output, shape index: {}]
  %s4 = sld [smem:[#allocation0]]
  $region30: #{densenet_forward.361} parent=0
    _
  %s6 = ssub.s32 1, %s4
  %s7 = scalar_select 0, %s6, %s4
  // Predicated region
  $region2: #{densenet_forward.361} parent=0 // pred_check
    _
  $region3: #{densenet_forward.361} parent=0 // pred_check_branch
    %9 = sbr.rel (0) target = $region5
  $region4: #{densenet_forward.361} parent=0 // pred_region
    _
  $region5: #{densenet_forward.361} parent=0 // pred_fallthru
    _
  // Predicated region
  $region6: #{densenet_forward.361} parent=0 // pred_check
    _
  $region7: #{densenet_forward.361} parent=0 // pred_check_branch
    %11 = sbr.rel (0) target = $region9
  $region8: #{densenet_forward.361} parent=0 // pred_region
    _
  $region9: #{densenet_forward.361} parent=0 // pred_fallthru
    _
  // Predicated region
  $region10: #{densenet_forward.361} parent=0 // pred_check
    _
  $region11: #{densenet_forward.361} parent=0 // pred_check_branch
    %13 = sbr.rel (0) target = $region13
  $region12: #{densenet_forward.361} parent=0 // pred_region
    _
  $region13: #{densenet_forward.361} parent=0 // pred_fallthru
    _
  %p15 = scmp.eq.s32.totalorder 0, 0
  // Predicated region
  $region14: #{densenet_forward.361} parent=0 // pred_check
    %p16 = pneg %p15
  $region15: #{densenet_forward.361} parent=0 // pred_check_branch
    %18 = sbr.rel (%p16) target = $region17
  $region16: #{densenet_forward.361} parent=0 // pred_region
    %19 = vst [vmem:[#allocation2] sm:$0xff] 0.0
    %20 = vst [vmem:[#allocation2 + $0x8] sm:$0xff] 0.0
    %21 = vst [vmem:[#allocation2 + $0x10] sm:$0xff] 0.0
    %22 = vst [vmem:[#allocation2 + $0x18] sm:$0xff] 0.0
  $region17: #{densenet_forward.361} parent=0 // pred_fallthru
    _
  %v23 = vld [vmem:[#allocation2] sm:$0xff]
  %v24 = vld [vmem:[#allocation2 + $0x8] sm:$0xff]
  %v25 = vld [vmem:[#allocation2 + $0x10] sm:$0xff]
  %v26 = vld [vmem:[#allocation2 + $0x18] sm:$0xff]
  %v27 = vld [vmem:[%s0] sm:$0xf]
  %v28 = vld [vmem:[%s0 + $0x4] sm:$0xf]
  %v29 = vld [vmem:[%s0 + $0x8] sm:$0xf]
  %v30 = vld [vmem:[%s0 + $0xc] sm:$0xf]
  %v31 = vld [vmem:[%s1] sm:$0xf]
  %v32 = vld [vmem:[%s1 + $0x4] sm:$0xf]
  %v33 = vld [vmem:[%s1 + $0x8] sm:$0xf]
  %v34 = vld [vmem:[%s1 + $0xc] sm:$0xf]
  %v35 = vld [vmem:[%s1 + $0x10] sm:$0xf]
  %v36 = vld [vmem:[%s1 + $0x14] sm:$0xf]
  %v37 = vld [vmem:[%s1 + $0x18] sm:$0xf]
  %v38 = vld [vmem:[%s1 + $0x1c] sm:$0xf]
  %v39 = vld [vmem:[%s1 + $0x20] sm:$0xf]
  %v40 = vld [vmem:[%s1 + $0x24] sm:$0xf]
  %v41 = vld [vmem:[%s1 + $0x28] sm:$0xf]
  %v42 = vld [vmem:[%s1 + $0x2c] sm:$0xf]
  %v43 = vld [vmem:[%s1 + $0x30] sm:$0xf]
  %v44 = vld [vmem:[%s1 + $0x34] sm:$0xf]
  %v45 = vld [vmem:[%s1 + $0x38] sm:$0xf]
  %v46 = vld [vmem:[%s1 + $0x3c] sm:$0xf]
  %v51 = vunpack.c.l.b16 %v27
  %v52 = vunpack.c.l.b16 %v28
  %v53 = vunpack.c.l.b16 %v29
  %v54 = vunpack.c.l.b16 %v30
  %v55 = vpack.c.b16 %v52, %v51
  %v56 = vpack.c.b16 %v54, %v53
  %v75 = vunpack.c.l.b16 %v31
  %v76 = vunpack.c.l.b16 %v32
  %v77 = vunpack.c.l.b16 %v33
  %v78 = vunpack.c.l.b16 %v34
  %v79 = vunpack.c.l.b16 %v35
  %v80 = vunpack.c.l.b16 %v36
  %v81 = vunpack.c.l.b16 %v37
  %v82 = vunpack.c.l.b16 %v38
  %v83 = vunpack.c.l.b16 %v39
  %v84 = vunpack.c.l.b16 %v40
  %v85 = vunpack.c.l.b16 %v41
  %v86 = vunpack.c.l.b16 %v42
  %v87 = vunpack.c.l.b16 %v43
  %v88 = vunpack.c.l.b16 %v44
  %v89 = vunpack.c.l.b16 %v45
  %v90 = vunpack.c.l.b16 %v46
  %v91 = vpack.c.b16 %v76, %v75
  %v92 = vpack.c.b16 %v78, %v77
  %v93 = vpack.c.b16 %v80, %v79
  %v94 = vpack.c.b16 %v82, %v81
  %v95 = vpack.c.b16 %v84, %v83
  %v96 = vpack.c.b16 %v86, %v85
  %v97 = vpack.c.b16 %v88, %v87
  %v98 = vpack.c.b16 %v90, %v89
  %107 = vmatprep.subr.bf16.mxu0 0
  %108 = vmatpush1.bf16.msra.mxu0 %v91
  %109 = vmatprep.subr.bf16.mxu0 0
  %110 = vmatpush1.bf16.msra.mxu0 %v92
  %111 = vmatprep.subr.bf16.mxu0 0
  %112 = vmatpush1.bf16.msra.mxu0 %v93
  %113 = vmatprep.subr.bf16.mxu0 0
  %114 = vmatpush1.bf16.msra.mxu0 %v94
  %115 = vmatprep.subr.bf16.mxu0 0
  %116 = vmatpush1.bf16.msra.mxu0 %v95
  %117 = vmatprep.subr.bf16.mxu0 0
  %118 = vmatpush1.bf16.msra.mxu0 %v96
  %119 = vmatprep.subr.bf16.mxu0 0
  %120 = vmatpush1.bf16.msra.mxu0 %v97
  %121 = vmatprep.subr.bf16.mxu0 0
  %122 = vmatpush1.bf16.msra.mxu0 %v98
  %123 = vmatprep.subr.bf16.mxu0 0
  %124 = vmatpush1.bf16.msra.mxu0 0
  %125 = vmatprep.subr.bf16.mxu0 0
  %126 = vmatpush1.bf16.msra.mxu0 0
  %127 = vmatprep.subr.bf16.mxu0 0
  %128 = vmatpush1.bf16.msra.mxu0 0
  %129 = vmatprep.subr.bf16.mxu0 0
  %130 = vmatpush1.bf16.msra.mxu0 0
  %131 = vmatprep.subr.bf16.mxu0 0
  %132 = vmatpush1.bf16.msra.mxu0 0
  %133 = vmatprep.subr.bf16.mxu0 0
  %134 = vmatpush1.bf16.msra.mxu0 0
  %135 = vmatprep.subr.bf16.mxu0 0
  %136 = vmatpush1.bf16.msra.mxu0 0
  %137 = vmatprep.subr.bf16.mxu0 0
  %138 = vmatpush1.bf16.msra.mxu0 0
  %139 = vmatprep.mubr.bf16.mxu0 0
  %140 = vmatmul.mubr.bf16.gmra.mrb[0].mxu0 %v55
  %v141 = vpop.f32.mrb[0].mxu0
  %v142 = vadd.f32 0.0, %v141
  %v143 = vpop.f32.mrb[0].mxu0
  %v144 = vpop.f32.mrb[0].mxu0
  %v145 = vadd.f32 0.0, %v144
  %v146 = vpop.f32.mrb[0].mxu0
  %147 = vmatprep.mubr.bf16.mxu0 0
  %148 = vmatmul.mubr.bf16.gmra.mrb[0].mxu0 %v56
  %v149 = vpop.f32.mrb[0].mxu0
  %v150 = vadd.f32 0.0, %v149
  %v151 = vpop.f32.mrb[0].mxu0
  %v152 = vpop.f32.mrb[0].mxu0
  %v153 = vadd.f32 0.0, %v152
  %v154 = vpop.f32.mrb[0].mxu0
  %155 = vdwg.mxu0
  %v156 = vadd.f32 %v23, %v142
  %v157 = vadd.f32 %v24, %v145
  %v158 = vadd.f32 %v25, %v150
  %v159 = vadd.f32 %v26, %v153
  %160 = vst [vmem:[#allocation2] sm:$0xff] %v156
  %161 = vst [vmem:[#allocation2 + $0x8] sm:$0xff] %v157
  %162 = vst [vmem:[#allocation2 + $0x10] sm:$0xff] %v158
  %163 = vst [vmem:[#allocation2 + $0x18] sm:$0xff] %v159
  // Predicated region
  $region18: #{densenet_forward.361} parent=0 // pred_check
    %p164 = pneg %p15
  $region19: #{densenet_forward.361} parent=0 // pred_check_branch
    %166 = sbr.rel (%p164) target = $region21
  $region20: #{densenet_forward.361} parent=0 // pred_region
    %v167 = vld [vmem:[#allocation2] sm:$0xff]
    %v168 = vld [vmem:[#allocation2 + $0x8] sm:$0xff]
    %v169 = vld [vmem:[#allocation2 + $0x10] sm:$0xff]
    %v170 = vld [vmem:[#allocation2 + $0x18] sm:$0xff]
    %v171 = vld [vmem:[%s2] sm:$0x1]
    %v173 = vlaneseq
    %v174 = vshrl.u32 %v173, 7
    %v175 = vsub.s32 0, %v174
    %v176 = vrot.slane %v171, %v175
    %v178 = vadd.f32 %v167, %v176
    %v179 = vadd.f32 %v168, %v176
    %v180 = vadd.f32 %v169, %v176
    %v181 = vadd.f32 %v170, %v176
    %182 = vst [vmem:[%s3] sm:$0xff] %v178
    %183 = vst [vmem:[%s3 + $0x8] sm:$0xff] %v179
    %184 = vst [vmem:[%s3 + $0x10] sm:$0xff] %v180
    %185 = vst [vmem:[%s3 + $0x18] sm:$0xff] %v181
  $region21: #{densenet_forward.361} parent=0 // pred_fallthru
    _
  // Predicated region
  $region22: #{densenet_forward.361} parent=0 // pred_check
    _
  $region23: #{densenet_forward.361} parent=0 // pred_check_branch
    %187 = sbr.rel (0) target = $region25
  $region24: #{densenet_forward.361} parent=0 // pred_region
    _
  $region25: #{densenet_forward.361} parent=0 // pred_fallthru
    _
  // Predicated region
  $region26: #{densenet_forward.361} parent=0 // pred_check
    _
  $region27: #{densenet_forward.361} parent=0 // pred_check_branch
    %189 = sbr.rel (0) target = $region29
  $region28: #{densenet_forward.361} parent=0 // pred_region
    _
  $region29: #{densenet_forward.361} parent=0 // pred_fallthru
    _

// kernel: densenet_forward.360
$region0: #{densenet_forward.360}
  #allocation0 [shape = 'u32[]', space=smem, size = 0x4, offset = 0x4, fixed_abs, tag = 'smem constant byte address 0x4 - core index']
  #allocation1 [shape = 'u32[144,128]{1,0:T(1,128)}', space=vmem, size = 0x12000, scoped, tag = 'internal scratch']
  %s0 = inlined_call_operand.vmem [shape: bf16[32,128], index: 0, kind: input, shape index: {}]
  %s1 = inlined_call_operand.vmem [shape: f32[1,128], index: 1, kind: input, shape index: {}]
  %s2 = inlined_call_operand.vmem [shape: f32[1,128], index: 2, kind: input, shape index: {}]
  %s3 = inlined_call_operand.vmem [shape: f32[32,128], index: 3, kind: output, shape index: {}]
  %s4 = sld [smem:[#allocation0]]
  $region22: #{densenet_forward.360} parent=0
    _
  %s6 = ssub.s32 1, %s4
  %s7 = scalar_select 0, %s6, %s4
  // Predicated region
  $region2: #{densenet_forward.360} parent=0 // pred_check
    _
  $region3: #{densenet_forward.360} parent=0 // pred_check_branch
    %9 = sbr.rel (0) target = $region5
  $region4: #{densenet_forward.360} parent=0 // pred_region
    _
  $region5: #{densenet_forward.360} parent=0 // pred_fallthru
    _
  // Predicated region
  $region6: #{densenet_forward.360} parent=0 // pred_check
    _
  $region7: #{densenet_forward.360} parent=0 // pred_check_branch
    %11 = sbr.rel (0) target = $region9
  $region8: #{densenet_forward.360} parent=0 // pred_region
    _
  $region9: #{densenet_forward.360} parent=0 // pred_fallthru
    _
  // Predicated region
  $region10: #{densenet_forward.360} parent=0 // pred_check
    _
  $region11: #{densenet_forward.360} parent=0 // pred_check_branch
    %13 = sbr.rel (0) target = $region13
  $region12: #{densenet_forward.360} parent=0 // pred_region
    _
  $region13: #{densenet_forward.360} parent=0 // pred_fallthru
    _
  %v14 = vld [vmem:[%s0] sm:$0xf]
  %v15 = vld [vmem:[%s0 + $0x4] sm:$0xf]
  %v16 = vld [vmem:[%s0 + $0x8] sm:$0xf]
  %v17 = vld [vmem:[%s0 + $0xc] sm:$0xf]
  %v18 = vunpack.c.l.bf16 %v14
  %v19 = vunpack.c.l.bf16 %v15
  %v20 = vunpack.c.l.bf16 %v16
  %v21 = vunpack.c.l.bf16 %v17
  %v22 = vld [vmem:[%s1] sm:$0x1]
  %v24 = vlaneseq
  %v25 = vshrl.u32 %v24, 7
  %v26 = vsub.s32 0, %v25
  %v27 = vrot.slane %v22, %v26
  %v29 = vmul.f32 %v18, %v27
  %v30 = vmul.f32 %v19, %v27
  %v31 = vmul.f32 %v20, %v27
  %v32 = vmul.f32 %v21, %v27
  %v33 = vld [vmem:[%s2] sm:$0x1]
  %v35 = vlaneseq
  %v36 = vshrl.u32 %v35, 7
  %v37 = vsub.s32 0, %v36
  %v38 = vrot.slane %v33, %v37
  %v40 = vadd.f32 %v29, %v38
  %v41 = vadd.f32 %v30, %v38
  %v42 = vadd.f32 %v31, %v38
  %v43 = vadd.f32 %v32, %v38
  %v44 = vmax.f32 %v40, 0.0
  %v45 = vmax.f32 %v41, 0.0
  %v46 = vmax.f32 %v42, 0.0
  %v47 = vmax.f32 %v43, 0.0
  %48 = vst [vmem:[%s3] sm:$0xff] %v44
  %49 = vst [vmem:[%s3 + $0x8] sm:$0xff] %v45
  %50 = vst [vmem:[%s3 + $0x10] sm:$0xff] %v46
  %51 = vst [vmem:[%s3 + $0x18] sm:$0xff] %v47
  // Predicated region
  $region14: #{densenet_forward.360} parent=0 // pred_check
    _
  $region15: #{densenet_forward.360} parent=0 // pred_check_branch
    %53 = sbr.rel (0) target = $region17
  $region16: #{densenet_forward.360} parent=0 // pred_region
    _
  $region17: #{densenet_forward.360} parent=0 // pred_fallthru
    _
  // Predicated region
  $region18: #{densenet_forward.360} parent=0 // pred_check
    _
  $region19: #{densenet_forward.360} parent=0 // pred_check_branch
    %55 = sbr.rel (0) target = $region21
  $region20: #{densenet_forward.360} parent=0 // pred_region
    _
  $region21: #{densenet_forward.360} parent=0 // pred_fallthru
    _

</llo_original>
